<compile_context>
chip_gen: v7x
topology: tpu7x:2x2x1
jax: 0.10.0
libtpu: 0.0.40
codegen_flags: <defaults>
</compile_context>

<pallas_src>
import functools

import jax
import jax.numpy as jnp
from jax.experimental import pallas as pl
from jax.experimental.pallas import tpu as pltpu


# ---------------------------------------------------------------------------
# Pallas kernel: fused VAE forward (one batch tile per grid step)
# ---------------------------------------------------------------------------
def vae_kernel(
    x_ref, eps_ref,                                   # activations (bf16 / f32)
    we1_ref, be1_ref, we2_ref, be2_ref,               # encoder
    wmv_ref, bmv_ref,                                 # fused  mean | log_var  head
    wdc_ref, bdc_ref,                                 # fused  decoder-1 | classifier-1
    wd2_ref, bd2_ref,                                 # decoder output layer
    wc2_ref, bc2_ref, wc3_ref, bc3_ref,               # classifier layers 2, 3
    xhat_ref, mean_ref, logvar_ref, ypred_ref,        # outputs
):
    f32 = jnp.float32
    bf16 = jnp.bfloat16

    def linear(a_bf16, w_ref, b_ref):
        # bf16 x bf16 -> f32 accumulation on the MXU, f32 bias add on the VPU.
        return jnp.dot(a_bf16, w_ref[...], preferred_element_type=f32) + b_ref[...]

    x = x_ref[...]                                                      # bf16

    # ----- encoder -----
    h = jnp.maximum(linear(x, we1_ref, be1_ref), 0.0).astype(bf16)
    h = jnp.maximum(linear(h, we2_ref, be2_ref), 0.0).astype(bf16)

    # ----- fused latent heads: one wide matmul, then split (L_p is 128-aligned) -----
    L = mean_ref.shape[-1]
    mv = linear(h, wmv_ref, bmv_ref)                                    # (TB, 2*L_p) f32
    mean = mv[:, :L]
    log_var = mv[:, L:]

    # ----- reparameterize: z = mean + log_var * eps (faithful to source) -----
    z = mean + log_var * eps_ref[...]                                   # f32
    z_b = z.astype(bf16)

    # ----- fused decoder-1 | classifier-1 (both consume z, both ReLU) -----
    H = wd2_ref.shape[0]                                                # hidden_p (128-aligned)
    dc = jnp.maximum(linear(z_b, wdc_ref, bdc_ref), 0.0)                # (TB, H_p + Hc_p) f32
    d = dc[:, :H].astype(bf16)
    c = dc[:, H:].astype(bf16)

    # ----- decoder output -----
    x_hat = jnp.tanh(linear(d, wd2_ref, bd2_ref))                       # EUP tanh, f32

    # ----- classifier tail -----
    c = jnp.maximum(linear(c, wc2_ref, bc2_ref), 0.0).astype(bf16)
    y_pred = linear(c, wc3_ref, bc3_ref)

    xhat_ref[...] = x_hat.astype(xhat_ref.dtype)
    mean_ref[...] = mean.astype(mean_ref.dtype)
    logvar_ref[...] = log_var.astype(logvar_ref.dtype)
    ypred_ref[...] = y_pred.astype(ypred_ref.dtype)


# ---------------------------------------------------------------------------
# Helpers
# ---------------------------------------------------------------------------
def _round_up(n, m):
    return ((n + m - 1) // m) * m


def _cdiv(a, b):
    return (a + b - 1) // b


def _pad_to(a, shape):
    pads = [(0, t - s) for s, t in zip(a.shape, shape)]
    return jnp.pad(a, pads)


# ---------------------------------------------------------------------------
# One-time weight preparation: pad to 128-lane-dense shapes, fuse heads, cast bf16.
# Call ONCE per set of weights and reuse across forward calls (hoisted out of the
# hot path — the pad/concat/cast traffic is larger than the kernel's own weight DMA).
# ---------------------------------------------------------------------------
def prepare_vae_params(params):
    """params: flat list [We1,be1,We2,be2,Wm,bm,Wv,bv,Wd1,bd1,Wd2,bd2,Wc1,bc1,Wc2,bc2,Wc3,bc3]
    with weights shaped (in_features, out_features), biases (1, out_features).

    Returns (prepared_weights_list, (input_dim, latent_dim, num_classes))."""
    (we1, be1, we2, be2, wm, bm, wv, bv,
     wd1, bd1, wd2, bd2, wc1, bc1, wc2, bc2, wc3, bc3) = params

    f32, bf16 = jnp.float32, jnp.bfloat16

    Din, H = we1.shape
    L = wm.shape[1]
    Hc = wc1.shape[1]
    C = wc3.shape[1]

    Din_p = _round_up(Din, 128)
    H_p = _round_up(H, 128)
    L_p = _round_up(L, 128)
    Hc_p = _round_up(Hc, 128)
    C_p = _round_up(C, 128)

    def pw(w, r, c):  # zero-padded weight -> bf16
        return _pad_to(w.astype(f32), (r, c)).astype(bf16)

    def pb(b, c):     # zero-padded bias -> f32, shape (1, c)
        return _pad_to(b.reshape(1, -1).astype(f32), (1, c))

    we1_p, be1_p = pw(we1, Din_p, H_p), pb(be1, H_p)
    we2_p, be2_p = pw(we2, H_p, H_p), pb(be2, H_p)
    # Fuse mean | log_var heads into one (H_p, 2*L_p) matmul.
    wmv_p = jnp.concatenate([pw(wm, H_p, L_p), pw(wv, H_p, L_p)], axis=1)
    bmv_p = jnp.concatenate([pb(bm, L_p), pb(bv, L_p)], axis=1)
    # Fuse decoder layer-1 | classifier layer-1 (both consume z).
    wdc_p = jnp.concatenate([pw(wd1, L_p, H_p), pw(wc1, L_p, Hc_p)], axis=1)
    bdc_p = jnp.concatenate([pb(bd1, H_p), pb(bc1, Hc_p)], axis=1)
    wd2_p, bd2_p = pw(wd2, H_p, Din_p), pb(bd2, Din_p)
    wc2_p, bc2_p = pw(wc2, Hc_p, Hc_p), pb(bc2, Hc_p)
    wc3_p, bc3_p = pw(wc3, Hc_p, C_p), pb(bc3, C_p)

    weights = [we1_p, be1_p, we2_p, be2_p, wmv_p, bmv_p, wdc_p, bdc_p,
               wd2_p, bd2_p, wc2_p, bc2_p, wc3_p, bc3_p]
    return weights, (Din, L, C)


# ---------------------------------------------------------------------------
# Forward wrapper: pad activations, build grid / BlockSpecs, run the kernel.
# ---------------------------------------------------------------------------
def vae_forward(x, eps, weights, out_dims, *, batch_tile=256, single_buffer_weights=True):
    """weights/out_dims: output of prepare_vae_params. x: (B, input_dim), eps: (B, latent_dim)."""
    Din, L, C = out_dims
    (we1_p, be1_p, we2_p, be2_p, wmv_p, bmv_p, wdc_p, bdc_p,
     wd2_p, bd2_p, wc2_p, bc2_p, wc3_p, bc3_p) = weights

    f32, bf16 = jnp.float32, jnp.bfloat16

    # Padded feature dims are recovered from the prepared weight shapes.
    Din_p = we1_p.shape[0]
    H_p = we2_p.shape[0]
    L_p = wmv_p.shape[1] // 2
    Hc_p = wc2_p.shape[0]
    C_p = wc3_p.shape[1]

    B = x.shape[0]

    # Batch tiling.  Always produce >= 2 grid steps so the "parallel" batch axis can
    # shard across both TensorCores on v7x.  Tiles are multiples of 16 rows so bf16
    # LHS sublane packing stays dense.
    if B <= batch_tile:
        TB = _round_up(_cdiv(max(B, 2), 2), 16)
        B_p = 2 * TB
    else:
        TB = batch_tile
        B_p = _round_up(B, TB)
    grid = (B_p // TB,)

    x_p = _pad_to(x.astype(f32), (B_p, Din_p)).astype(bf16)
    eps_p = _pad_to(eps.astype(f32), (B_p, L_p))

    def row_spec(cols):
        # Batch-tiled activation / output block.
        return pl.BlockSpec((TB, cols), lambda i: (i, 0))

    def resident(arr):
        # Whole array, constant block index -> DMA'd once, stays resident in VMEM.
        # Single-buffered (the block never changes) so it doesn't pay 2x VMEM.
        if single_buffer_weights:
            return pl.BlockSpec(arr.shape, lambda i: (0,) * arr.ndim,
                                pipeline_mode=pl.Buffered(1))
        return pl.BlockSpec(arr.shape, lambda i: (0,) * arr.ndim)

    in_specs = [row_spec(Din_p), row_spec(L_p)] + [resident(w) for w in weights]

    out_shape = (
        jax.ShapeDtypeStruct((B_p, Din_p), f32),   # x_hat
        jax.ShapeDtypeStruct((B_p, L_p), f32),     # mean
        jax.ShapeDtypeStruct((B_p, L_p), f32),     # log_var
        jax.ShapeDtypeStruct((B_p, C_p), f32),     # y_pred
    )
    out_specs = (row_spec(Din_p), row_spec(L_p), row_spec(L_p), row_spec(C_p))

    # --- VMEM budget: resident weights + double-buffered I/O tiles + scratch slack ---
    w_bytes = sum(int(w.size) * w.dtype.itemsize for w in weights)
    w_buf_bytes = w_bytes if single_buffer_weights else 2 * w_bytes
    io_tile_bytes = (2 * TB * Din_p + 4 * TB * L_p              # x (bf16) + eps (f32) inputs
                     + 4 * TB * (Din_p + 2 * L_p + C_p))        # f32 outputs
    needed = w_buf_bytes + 2 * io_tile_bytes + (8 << 20)        # + compiler scratch slack

    # Per-generation VMEM cap: 128 MiB on v5e/v6e, 64 MiB per-TC on v7x; leave ~14 MiB
    # of headroom for compiler scratch/spill instead of requesting the physical max.
    try:
        phys_vmem = int(pltpu.get_tpu_info().vmem_capacity_bytes)
    except Exception:
        phys_vmem = 64 << 20
    safe_cap = max(32 << 20, phys_vmem - (14 << 20))
    vmem_limit = int(min(safe_cap, max(32 << 20, needed)))

    # --- cost estimate: 7 fused matmuls + tanh transcendentals ---
    flops = 2 * B_p * (Din_p * H_p + H_p * H_p + H_p * (2 * L_p)
                       + L_p * (H_p + Hc_p) + H_p * Din_p
                       + Hc_p * Hc_p + Hc_p * C_p)
    out_bytes = sum(int(s.size) * 4 for s in out_shape)
    cost = pl.CostEstimate(
        flops=flops,
        transcendentals=B_p * Din_p,
        bytes_accessed=w_bytes + int(x_p.size) * 2 + int(eps_p.size) * 4 + out_bytes,
    )

    x_hat_p, mean_p, logvar_p, ypred_p = pl.pallas_call(
        vae_kernel,
        out_shape=out_shape,
        grid=grid,
        in_specs=in_specs,
        out_specs=out_specs,
        compiler_params=pltpu.CompilerParams(
            dimension_semantics=("parallel",),
            vmem_limit_bytes=vmem_limit,
        ),
        cost_estimate=cost,
    )(x_p, eps_p, *weights)

    # Slice away batch / feature padding (padded weight/bias columns are zero).
    return (x_hat_p[:B, :Din], mean_p[:B, :L], logvar_p[:B, :L], ypred_p[:B, :C])


def vae_forward_raw(x, eps, params, **kwargs):
    """Convenience one-shot wrapper (prepares weights per call)."""
    weights, out_dims = prepare_vae_params(params)
    return vae_forward(x, eps, weights, out_dims, **kwargs)


# ---------------------------------------------------------------------------
# Deterministic parameter init (PyTorch-Linear-style uniform, our own seed)
# ---------------------------------------------------------------------------
def init_linear(key, fan_in, fan_out):
    kw, kb = jax.random.split(key)
    bound = 1.0 / jnp.sqrt(jnp.float32(fan_in))
    w = jax.random.uniform(kw, (fan_in, fan_out), jnp.float32, -bound, bound)
    b = jax.random.uniform(kb, (1, fan_out), jnp.float32, -bound, bound)
    return w, b


def build_params(key, input_dim, hidden_dim, hidden_dim_classifier, latent_dim, num_classes):
    keys = jax.random.split(key, 10)
    we1, be1 = init_linear(keys[0], input_dim, hidden_dim)
    we2, be2 = init_linear(keys[1], hidden_dim, hidden_dim)
    wm, bm = init_linear(keys[2], hidden_dim, latent_dim)
    wv, bv = init_linear(keys[3], hidden_dim, latent_dim)
    wd1, bd1 = init_linear(keys[4], latent_dim, hidden_dim)
    wd2, bd2 = init_linear(keys[5], hidden_dim, input_dim)
    wc1, bc1 = init_linear(keys[6], latent_dim, hidden_dim_classifier)
    wc2, bc2 = init_linear(keys[7], hidden_dim_classifier, hidden_dim_classifier)
    wc3, bc3 = init_linear(keys[8], hidden_dim_classifier, num_classes)
    return [we1, be1, we2, be2, wm, bm, wv, bv,
            wd1, bd1, wd2, bd2, wc1, bc1, wc2, bc2, wc3, bc3]


# ---------------------------------------------------------------------------
# Pure-JAX reference emulating the kernel's bf16 input/weight casts (f32 accumulation)
# ---------------------------------------------------------------------------
def vae_ref_bf16(x, eps, p):
    f32, bf16 = jnp.float32, jnp.bfloat16
    q = lambda a: a.astype(bf16).astype(f32)
    (we1, be1, we2, be2, wm, bm, wv, bv,
     wd1, bd1, wd2, bd2, wc1, bc1, wc2, bc2, wc3, bc3) = p

    def lin(a, w, b):
        return jnp.dot(q(a), q(w), preferred_element_type=f32) + b.astype(f32)

    h = jnp.maximum(lin(x, we1, be1), 0.0)
    h = jnp.maximum(lin(h, we2, be2), 0.0)
    mean = lin(h, wm, bm)
    log_var = lin(h, wv, bv)
    z = mean + log_var * eps
    d = jnp.maximum(lin(z, wd1, bd1), 0.0)
    x_hat = jnp.tanh(lin(d, wd2, bd2))
    c = jnp.maximum(lin(z, wc1, bc1), 0.0)
    c = jnp.maximum(lin(c, wc2, bc2), 0.0)
    y_pred = lin(c, wc3, bc3)
    return x_hat, mean, log_var, y_pred


# TODO(synk): training loop, KNN, optimizer/scheduler and losses from the PyTorch module are
# host-side / sklearn code with no Pallas equivalent; only forward() is implemented here.

# ---------------------------------------------------------------------------
if __name__ == "__main__":
    # Small shapes consistent with the module's forward pass (real model: 1000/100/720).
    B = 20
    input_dim = 32
    hidden_dim = 96               # stands in for hidden_dim=1000
    hidden_dim_classifier = 24    # stands in for 100
    latent_dim = 48               # stands in for 720
    num_classes = 7

    key = jax.random.PRNGKey(0)
    kx, keps, kp = jax.random.split(key, 3)

    x = jax.random.normal(kx, (B, input_dim), jnp.float32)
    eps = jax.random.normal(keps, (B, latent_dim), jnp.float32)   # reparameterization noise
    params = build_params(kp, input_dim, hidden_dim, hidden_dim_classifier,
                          latent_dim, num_classes)

    # One-time weight prep (pad / fuse / bf16 cast), hoisted out of the hot forward path.
    weights, out_dims = prepare_vae_params(params)

    def make_fwd(single_buffer):
        return jax.jit(functools.partial(vae_forward, out_dims=out_dims,
                                         single_buffer_weights=single_buffer))

    try:
        fwd = make_fwd(True)
        outs = jax.block_until_ready(fwd(x, eps, weights))
    except Exception:
        # Fallback if this JAX install rejects pipeline_mode=pl.Buffered(1).
        fwd = make_fwd(False)
        outs = jax.block_until_ready(fwd(x, eps, weights))

    x_hat, mean, log_var, y_pred = outs

    assert x_hat.shape == (B, input_dim)
    assert mean.shape == (B, latent_dim)
    assert log_var.shape == (B, latent_dim)
    assert y_pred.shape == (B, num_classes)

    rx, rm, rv, ry = vae_ref_bf16(x, eps, params)
    for name, got, ref in (("x_hat", x_hat, rx), ("mean", mean, rm),
                           ("log_var", log_var, rv), ("y_pred", y_pred, ry)):
        assert jnp.allclose(got, ref, atol=1e-2, rtol=1e-2), (
            name, float(jnp.max(jnp.abs(got - ref))))

    print("KERNEL_OK")
</pallas_src>

<mosaic_0001>
module attributes {stable_mosaic.version = 11 : i64} {
  func.func @vae_kernel(%arg0: i32, %arg1: memref<16x128xbf16, #tpu.memory_space<vmem>>, %arg2: memref<16x128xf32, #tpu.memory_space<vmem>>, %arg3: memref<128x128xbf16, #tpu.memory_space<vmem>>, %arg4: memref<1x128xf32, #tpu.memory_space<vmem>>, %arg5: memref<128x128xbf16, #tpu.memory_space<vmem>>, %arg6: memref<1x128xf32, #tpu.memory_space<vmem>>, %arg7: memref<128x256xbf16, #tpu.memory_space<vmem>>, %arg8: memref<1x256xf32, #tpu.memory_space<vmem>>, %arg9: memref<128x256xbf16, #tpu.memory_space<vmem>>, %arg10: memref<1x256xf32, #tpu.memory_space<vmem>>, %arg11: memref<128x128xbf16, #tpu.memory_space<vmem>>, %arg12: memref<1x128xf32, #tpu.memory_space<vmem>>, %arg13: memref<128x128xbf16, #tpu.memory_space<vmem>>, %arg14: memref<1x128xf32, #tpu.memory_space<vmem>>, %arg15: memref<128x128xbf16, #tpu.memory_space<vmem>>, %arg16: memref<1x128xf32, #tpu.memory_space<vmem>>, %arg17: memref<16x128xf32, #tpu.memory_space<vmem>>, %arg18: memref<16x128xf32, #tpu.memory_space<vmem>>, %arg19: memref<16x128xf32, #tpu.memory_space<vmem>>, %arg20: memref<16x128xf32, #tpu.memory_space<vmem>>) attributes {dimension_semantics = [#tpu.dimension_semantics<parallel>], iteration_bounds = array<i64: 2>, scalar_prefetch = 0 : i64, scratch_operands = 0 : i64, tpu.core_type = #tpu.core_type<tc>, window_params = [{transform_indices = @transform_0, window_bounds = array<i64: 16, 128>}, {transform_indices = @transform_1, window_bounds = array<i64: 16, 128>}, {pipeline_mode = #tpu.pipeline_mode<synchronous>, transform_indices = @transform_2, window_bounds = array<i64: 128, 128>}, {pipeline_mode = #tpu.pipeline_mode<synchronous>, transform_indices = @transform_3, window_bounds = array<i64: 1, 128>}, {pipeline_mode = #tpu.pipeline_mode<synchronous>, transform_indices = @transform_4, window_bounds = array<i64: 128, 128>}, {pipeline_mode = #tpu.pipeline_mode<synchronous>, transform_indices = @transform_5, window_bounds = array<i64: 1, 128>}, {pipeline_mode = #tpu.pipeline_mode<synchronous>, transform_indices = @transform_6, window_bounds = array<i64: 128, 256>}, {pipeline_mode = #tpu.pipeline_mode<synchronous>, transform_indices = @transform_7, window_bounds = array<i64: 1, 256>}, {pipeline_mode = #tpu.pipeline_mode<synchronous>, transform_indices = @transform_8, window_bounds = array<i64: 128, 256>}, {pipeline_mode = #tpu.pipeline_mode<synchronous>, transform_indices = @transform_9, window_bounds = array<i64: 1, 256>}, {pipeline_mode = #tpu.pipeline_mode<synchronous>, transform_indices = @transform_10, window_bounds = array<i64: 128, 128>}, {pipeline_mode = #tpu.pipeline_mode<synchronous>, transform_indices = @transform_11, window_bounds = array<i64: 1, 128>}, {pipeline_mode = #tpu.pipeline_mode<synchronous>, transform_indices = @transform_12, window_bounds = array<i64: 128, 128>}, {pipeline_mode = #tpu.pipeline_mode<synchronous>, transform_indices = @transform_13, window_bounds = array<i64: 1, 128>}, {pipeline_mode = #tpu.pipeline_mode<synchronous>, transform_indices = @transform_14, window_bounds = array<i64: 128, 128>}, {pipeline_mode = #tpu.pipeline_mode<synchronous>, transform_indices = @transform_15, window_bounds = array<i64: 1, 128>}, {transform_indices = @transform_16, window_bounds = array<i64: 16, 128>}, {transform_indices = @transform_17, window_bounds = array<i64: 16, 128>}, {transform_indices = @transform_18, window_bounds = array<i64: 16, 128>}, {transform_indices = @transform_19, window_bounds = array<i64: 16, 128>}]} {
    %c0 = arith.constant 0 : index
    %c0_0 = arith.constant 0 : index
    %0 = vector.load %arg1[%c0, %c0_0] : memref<16x128xbf16, #tpu.memory_space<vmem>>, vector<16x128xbf16>
    %c0_1 = arith.constant 0 : index
    %c0_2 = arith.constant 0 : index
    %1 = vector.load %arg3[%c0_1, %c0_2] : memref<128x128xbf16, #tpu.memory_space<vmem>>, vector<128x128xbf16>
    %cst = arith.constant dense<0.000000e+00> : vector<16x128xf32>
    %2 = tpu.matmul %0, %1, %cst {dimension_numbers = #tpu.dot_dimension_numbers<[1], [0], [0], [1], [0, 0, 1, 1], [], []>} : vector<16x128xbf16>, vector<128x128xbf16>, vector<16x128xf32> -> vector<16x128xf32>
    %c0_3 = arith.constant 0 : index
    %c0_4 = arith.constant 0 : index
    %3 = vector.load %arg4[%c0_3, %c0_4] : memref<1x128xf32, #tpu.memory_space<vmem>>, vector<1x128xf32>
    %4 = vector.broadcast %3 : vector<1x128xf32> to vector<16x128xf32>
    %5 = arith.addf %2, %4 : vector<16x128xf32>
    %cst_5 = arith.constant 0.000000e+00 : f32
    %6 = vector.broadcast %cst_5 : f32 to vector<16x128xf32>
    %7 = arith.maximumf %5, %6 : vector<16x128xf32>
    %8 = arith.truncf %7 : vector<16x128xf32> to vector<16x128xbf16>
    %c0_6 = arith.constant 0 : index
    %c0_7 = arith.constant 0 : index
    %9 = vector.load %arg5[%c0_6, %c0_7] : memref<128x128xbf16, #tpu.memory_space<vmem>>, vector<128x128xbf16>
    %cst_8 = arith.constant dense<0.000000e+00> : vector<16x128xf32>
    %10 = tpu.matmul %8, %9, %cst_8 {dimension_numbers = #tpu.dot_dimension_numbers<[1], [0], [0], [1], [0, 0, 1, 1], [], []>} : vector<16x128xbf16>, vector<128x128xbf16>, vector<16x128xf32> -> vector<16x128xf32>
    %c0_9 = arith.constant 0 : index
    %c0_10 = arith.constant 0 : index
    %11 = vector.load %arg6[%c0_9, %c0_10] : memref<1x128xf32, #tpu.memory_space<vmem>>, vector<1x128xf32>
    %12 = vector.broadcast %11 : vector<1x128xf32> to vector<16x128xf32>
    %13 = arith.addf %10, %12 : vector<16x128xf32>
    %cst_11 = arith.constant 0.000000e+00 : f32
    %14 = vector.broadcast %cst_11 : f32 to vector<16x128xf32>
    %15 = arith.maximumf %13, %14 : vector<16x128xf32>
    %16 = arith.truncf %15 : vector<16x128xf32> to vector<16x128xbf16>
    %c0_12 = arith.constant 0 : index
    %c0_13 = arith.constant 0 : index
    %17 = vector.load %arg7[%c0_12, %c0_13] : memref<128x256xbf16, #tpu.memory_space<vmem>>, vector<128x256xbf16>
    %cst_14 = arith.constant dense<0.000000e+00> : vector<16x256xf32>
    %18 = tpu.matmul %16, %17, %cst_14 {dimension_numbers = #tpu.dot_dimension_numbers<[1], [0], [0], [1], [0, 0, 1, 1], [], []>} : vector<16x128xbf16>, vector<128x256xbf16>, vector<16x256xf32> -> vector<16x256xf32>
    %c0_15 = arith.constant 0 : index
    %c0_16 = arith.constant 0 : index
    %19 = vector.load %arg8[%c0_15, %c0_16] : memref<1x256xf32, #tpu.memory_space<vmem>>, vector<1x256xf32>
    %20 = vector.broadcast %19 : vector<1x256xf32> to vector<16x256xf32>
    %21 = arith.addf %18, %20 : vector<16x256xf32>
    %22 = vector.extract_strided_slice %21 {offsets = [0, 0], sizes = [16, 128], strides = [1, 1]} : vector<16x256xf32> to vector<16x128xf32>
    %23 = vector.extract_strided_slice %21 {offsets = [0, 128], sizes = [16, 128], strides = [1, 1]} : vector<16x256xf32> to vector<16x128xf32>
    %c0_17 = arith.constant 0 : index
    %c0_18 = arith.constant 0 : index
    %24 = vector.load %arg2[%c0_17, %c0_18] : memref<16x128xf32, #tpu.memory_space<vmem>>, vector<16x128xf32>
    %25 = arith.mulf %23, %24 : vector<16x128xf32>
    %26 = arith.addf %22, %25 : vector<16x128xf32>
    %27 = arith.truncf %26 : vector<16x128xf32> to vector<16x128xbf16>
    %c0_19 = arith.constant 0 : index
    %c0_20 = arith.constant 0 : index
    %28 = vector.load %arg9[%c0_19, %c0_20] : memref<128x256xbf16, #tpu.memory_space<vmem>>, vector<128x256xbf16>
    %cst_21 = arith.constant dense<0.000000e+00> : vector<16x256xf32>
    %29 = tpu.matmul %27, %28, %cst_21 {dimension_numbers = #tpu.dot_dimension_numbers<[1], [0], [0], [1], [0, 0, 1, 1], [], []>} : vector<16x128xbf16>, vector<128x256xbf16>, vector<16x256xf32> -> vector<16x256xf32>
    %c0_22 = arith.constant 0 : index
    %c0_23 = arith.constant 0 : index
    %30 = vector.load %arg10[%c0_22, %c0_23] : memref<1x256xf32, #tpu.memory_space<vmem>>, vector<1x256xf32>
    %31 = vector.broadcast %30 : vector<1x256xf32> to vector<16x256xf32>
    %32 = arith.addf %29, %31 : vector<16x256xf32>
    %cst_24 = arith.constant 0.000000e+00 : f32
    %33 = vector.broadcast %cst_24 : f32 to vector<16x256xf32>
    %34 = arith.maximumf %32, %33 : vector<16x256xf32>
    %35 = vector.extract_strided_slice %34 {offsets = [0, 0], sizes = [16, 128], strides = [1, 1]} : vector<16x256xf32> to vector<16x128xf32>
    %36 = arith.truncf %35 : vector<16x128xf32> to vector<16x128xbf16>
    %37 = vector.extract_strided_slice %34 {offsets = [0, 128], sizes = [16, 128], strides = [1, 1]} : vector<16x256xf32> to vector<16x128xf32>
    %38 = arith.truncf %37 : vector<16x128xf32> to vector<16x128xbf16>
    %c0_25 = arith.constant 0 : index
    %c0_26 = arith.constant 0 : index
    %39 = vector.load %arg11[%c0_25, %c0_26] : memref<128x128xbf16, #tpu.memory_space<vmem>>, vector<128x128xbf16>
    %cst_27 = arith.constant dense<0.000000e+00> : vector<16x128xf32>
    %40 = tpu.matmul %36, %39, %cst_27 {dimension_numbers = #tpu.dot_dimension_numbers<[1], [0], [0], [1], [0, 0, 1, 1], [], []>} : vector<16x128xbf16>, vector<128x128xbf16>, vector<16x128xf32> -> vector<16x128xf32>
    %c0_28 = arith.constant 0 : index
    %c0_29 = arith.constant 0 : index
    %41 = vector.load %arg12[%c0_28, %c0_29] : memref<1x128xf32, #tpu.memory_space<vmem>>, vector<1x128xf32>
    %42 = vector.broadcast %41 : vector<1x128xf32> to vector<16x128xf32>
    %43 = arith.addf %40, %42 : vector<16x128xf32>
    %44 = math.tanh %43 : vector<16x128xf32>
    %c0_30 = arith.constant 0 : index
    %c0_31 = arith.constant 0 : index
    %45 = vector.load %arg13[%c0_30, %c0_31] : memref<128x128xbf16, #tpu.memory_space<vmem>>, vector<128x128xbf16>
    %cst_32 = arith.constant dense<0.000000e+00> : vector<16x128xf32>
    %46 = tpu.matmul %38, %45, %cst_32 {dimension_numbers = #tpu.dot_dimension_numbers<[1], [0], [0], [1], [0, 0, 1, 1], [], []>} : vector<16x128xbf16>, vector<128x128xbf16>, vector<16x128xf32> -> vector<16x128xf32>
    %c0_33 = arith.constant 0 : index
    %c0_34 = arith.constant 0 : index
    %47 = vector.load %arg14[%c0_33, %c0_34] : memref<1x128xf32, #tpu.memory_space<vmem>>, vector<1x128xf32>
    %48 = vector.broadcast %47 : vector<1x128xf32> to vector<16x128xf32>
    %49 = arith.addf %46, %48 : vector<16x128xf32>
    %cst_35 = arith.constant 0.000000e+00 : f32
    %50 = vector.broadcast %cst_35 : f32 to vector<16x128xf32>
    %51 = arith.maximumf %49, %50 : vector<16x128xf32>
    %52 = arith.truncf %51 : vector<16x128xf32> to vector<16x128xbf16>
    %c0_36 = arith.constant 0 : index
    %c0_37 = arith.constant 0 : index
    %53 = vector.load %arg15[%c0_36, %c0_37] : memref<128x128xbf16, #tpu.memory_space<vmem>>, vector<128x128xbf16>
    %cst_38 = arith.constant dense<0.000000e+00> : vector<16x128xf32>
    %54 = tpu.matmul %52, %53, %cst_38 {dimension_numbers = #tpu.dot_dimension_numbers<[1], [0], [0], [1], [0, 0, 1, 1], [], []>} : vector<16x128xbf16>, vector<128x128xbf16>, vector<16x128xf32> -> vector<16x128xf32>
    %c0_39 = arith.constant 0 : index
    %c0_40 = arith.constant 0 : index
    %55 = vector.load %arg16[%c0_39, %c0_40] : memref<1x128xf32, #tpu.memory_space<vmem>>, vector<1x128xf32>
    %56 = vector.broadcast %55 : vector<1x128xf32> to vector<16x128xf32>
    %57 = arith.addf %54, %56 : vector<16x128xf32>
    %c0_41 = arith.constant 0 : index
    %c0_42 = arith.constant 0 : index
    %58 = vector.load %arg17[%c0_41, %c0_42] : memref<16x128xf32, #tpu.memory_space<vmem>>, vector<16x128xf32>
    tpu.vector_store %arg17[%c0_41, %c0_42], %44 {strides = array<i32>} : memref<16x128xf32, #tpu.memory_space<vmem>>, vector<16x128xf32>,
    %c0_43 = arith.constant 0 : index
    %c0_44 = arith.constant 0 : index
    %59 = vector.load %arg18[%c0_43, %c0_44] : memref<16x128xf32, #tpu.memory_space<vmem>>, vector<16x128xf32>
    tpu.vector_store %arg18[%c0_43, %c0_44], %22 {strides = array<i32>} : memref<16x128xf32, #tpu.memory_space<vmem>>, vector<16x128xf32>,
    %c0_45 = arith.constant 0 : index
    %c0_46 = arith.constant 0 : index
    %60 = vector.load %arg19[%c0_45, %c0_46] : memref<16x128xf32, #tpu.memory_space<vmem>>, vector<16x128xf32>
    tpu.vector_store %arg19[%c0_45, %c0_46], %23 {strides = array<i32>} : memref<16x128xf32, #tpu.memory_space<vmem>>, vector<16x128xf32>,
    %c0_47 = arith.constant 0 : index
    %c0_48 = arith.constant 0 : index
    %61 = vector.load %arg20[%c0_47, %c0_48] : memref<16x128xf32, #tpu.memory_space<vmem>>, vector<16x128xf32>
    tpu.vector_store %arg20[%c0_47, %c0_48], %57 {strides = array<i32>} : memref<16x128xf32, #tpu.memory_space<vmem>>, vector<16x128xf32>,
    return
  }
  func.func @transform_0(%arg0: i32) -> (i32, i32) {
    %c0_i32 = arith.constant 0 : i32
    %c0_i32_0 = arith.constant 0 : i32
    return %arg0, %c0_i32 : i32, i32
  }
  func.func @transform_1(%arg0: i32) -> (i32, i32) {
    %c0_i32 = arith.constant 0 : i32
    %c0_i32_0 = arith.constant 0 : i32
    return %arg0, %c0_i32 : i32, i32
  }
  func.func @transform_2(%arg0: i32) -> (i32, i32) {
    %c0_i32 = arith.constant 0 : i32
    %c0_i32_0 = arith.constant 0 : i32
    %c0_i32_1 = arith.constant 0 : i32
    return %c0_i32, %c0_i32_0 : i32, i32
  }
  func.func @transform_3(%arg0: i32) -> (i32, i32) {
    %c0_i32 = arith.constant 0 : i32
    %c0_i32_0 = arith.constant 0 : i32
    %c0_i32_1 = arith.constant 0 : i32
    return %c0_i32, %c0_i32_0 : i32, i32
  }
  func.func @transform_4(%arg0: i32) -> (i32, i32) {
    %c0_i32 = arith.constant 0 : i32
    %c0_i32_0 = arith.constant 0 : i32
    %c0_i32_1 = arith.constant 0 : i32
    return %c0_i32, %c0_i32_0 : i32, i32
  }
  func.func @transform_5(%arg0: i32) -> (i32, i32) {
    %c0_i32 = arith.constant 0 : i32
    %c0_i32_0 = arith.constant 0 : i32
    %c0_i32_1 = arith.constant 0 : i32
    return %c0_i32, %c0_i32_0 : i32, i32
  }
  func.func @transform_6(%arg0: i32) -> (i32, i32) {
    %c0_i32 = arith.constant 0 : i32
    %c0_i32_0 = arith.constant 0 : i32
    %c0_i32_1 = arith.constant 0 : i32
    return %c0_i32, %c0_i32_0 : i32, i32
  }
  func.func @transform_7(%arg0: i32) -> (i32, i32) {
    %c0_i32 = arith.constant 0 : i32
    %c0_i32_0 = arith.constant 0 : i32
    %c0_i32_1 = arith.constant 0 : i32
    return %c0_i32, %c0_i32_0 : i32, i32
  }
  func.func @transform_8(%arg0: i32) -> (i32, i32) {
    %c0_i32 = arith.constant 0 : i32
    %c0_i32_0 = arith.constant 0 : i32
    %c0_i32_1 = arith.constant 0 : i32
    return %c0_i32, %c0_i32_0 : i32, i32
  }
  func.func @transform_9(%arg0: i32) -> (i32, i32) {
    %c0_i32 = arith.constant 0 : i32
    %c0_i32_0 = arith.constant 0 : i32
    %c0_i32_1 = arith.constant 0 : i32
    return %c0_i32, %c0_i32_0 : i32, i32
  }
  func.func @transform_10(%arg0: i32) -> (i32, i32) {
    %c0_i32 = arith.constant 0 : i32
    %c0_i32_0 = arith.constant 0 : i32
    %c0_i32_1 = arith.constant 0 : i32
    return %c0_i32, %c0_i32_0 : i32, i32
  }
  func.func @transform_11(%arg0: i32) -> (i32, i32) {
    %c0_i32 = arith.constant 0 : i32
    %c0_i32_0 = arith.constant 0 : i32
    %c0_i32_1 = arith.constant 0 : i32
    return %c0_i32, %c0_i32_0 : i32, i32
  }
  func.func @transform_12(%arg0: i32) -> (i32, i32) {
    %c0_i32 = arith.constant 0 : i32
    %c0_i32_0 = arith.constant 0 : i32
    %c0_i32_1 = arith.constant 0 : i32
    return %c0_i32, %c0_i32_0 : i32, i32
  }
  func.func @transform_13(%arg0: i32) -> (i32, i32) {
    %c0_i32 = arith.constant 0 : i32
    %c0_i32_0 = arith.constant 0 : i32
    %c0_i32_1 = arith.constant 0 : i32
    return %c0_i32, %c0_i32_0 : i32, i32
  }
  func.func @transform_14(%arg0: i32) -> (i32, i32) {
    %c0_i32 = arith.constant 0 : i32
    %c0_i32_0 = arith.constant 0 : i32
    %c0_i32_1 = arith.constant 0 : i32
    return %c0_i32, %c0_i32_0 : i32, i32
  }
  func.func @transform_15(%arg0: i32) -> (i32, i32) {
    %c0_i32 = arith.constant 0 : i32
    %c0_i32_0 = arith.constant 0 : i32
    %c0_i32_1 = arith.constant 0 : i32
    return %c0_i32, %c0_i32_0 : i32, i32
  }
  func.func @transform_16(%arg0: i32) -> (i32, i32) {
    %c0_i32 = arith.constant 0 : i32
    %c0_i32_0 = arith.constant 0 : i32
    return %arg0, %c0_i32 : i32, i32
  }
  func.func @transform_17(%arg0: i32) -> (i32, i32) {
    %c0_i32 = arith.constant 0 : i32
    %c0_i32_0 = arith.constant 0 : i32
    return %arg0, %c0_i32 : i32, i32
  }
  func.func @transform_18(%arg0: i32) -> (i32, i32) {
    %c0_i32 = arith.constant 0 : i32
    %c0_i32_0 = arith.constant 0 : i32
    return %arg0, %c0_i32 : i32, i32
  }
  func.func @transform_19(%arg0: i32) -> (i32, i32) {
    %c0_i32 = arith.constant 0 : i32
    %c0_i32_0 = arith.constant 0 : i32
    return %arg0, %c0_i32 : i32, i32
  }
}

module attributes {stable_mosaic.version = 11 : i64} {
  func.func @vae_kernel(%arg0: i32, %arg1: memref<16x128xbf16, #tpu.memory_space<vmem>>, %arg2: memref<16x128xf32, #tpu.memory_space<vmem>>, %arg3: memref<128x128xbf16, #tpu.memory_space<vmem>>, %arg4: memref<1x128xf32, #tpu.memory_space<vmem>>, %arg5: memref<128x128xbf16, #tpu.memory_space<vmem>>, %arg6: memref<1x128xf32, #tpu.memory_space<vmem>>, %arg7: memref<128x256xbf16, #tpu.memory_space<vmem>>, %arg8: memref<1x256xf32, #tpu.memory_space<vmem>>, %arg9: memref<128x256xbf16, #tpu.memory_space<vmem>>, %arg10: memref<1x256xf32, #tpu.memory_space<vmem>>, %arg11: memref<128x128xbf16, #tpu.memory_space<vmem>>, %arg12: memref<1x128xf32, #tpu.memory_space<vmem>>, %arg13: memref<128x128xbf16, #tpu.memory_space<vmem>>, %arg14: memref<1x128xf32, #tpu.memory_space<vmem>>, %arg15: memref<128x128xbf16, #tpu.memory_space<vmem>>, %arg16: memref<1x128xf32, #tpu.memory_space<vmem>>, %arg17: memref<16x128xf32, #tpu.memory_space<vmem>>, %arg18: memref<16x128xf32, #tpu.memory_space<vmem>>, %arg19: memref<16x128xf32, #tpu.memory_space<vmem>>, %arg20: memref<16x128xf32, #tpu.memory_space<vmem>>) attributes {dimension_semantics = [#tpu.dimension_semantics<parallel>], iteration_bounds = array<i64: 2>, scalar_prefetch = 0 : i64, scratch_operands = 0 : i64, tpu.core_type = #tpu.core_type<tc>, window_params = [{transform_indices = @transform_0, window_bounds = array<i64: 16, 128>}, {transform_indices = @transform_1, window_bounds = array<i64: 16, 128>}, {pipeline_mode = #tpu.pipeline_mode<synchronous>, transform_indices = @transform_2, window_bounds = array<i64: 128, 128>}, {pipeline_mode = #tpu.pipeline_mode<synchronous>, transform_indices = @transform_3, window_bounds = array<i64: 1, 128>}, {pipeline_mode = #tpu.pipeline_mode<synchronous>, transform_indices = @transform_4, window_bounds = array<i64: 128, 128>}, {pipeline_mode = #tpu.pipeline_mode<synchronous>, transform_indices = @transform_5, window_bounds = array<i64: 1, 128>}, {pipeline_mode = #tpu.pipeline_mode<synchronous>, transform_indices = @transform_6, window_bounds = array<i64: 128, 256>}, {pipeline_mode = #tpu.pipeline_mode<synchronous>, transform_indices = @transform_7, window_bounds = array<i64: 1, 256>}, {pipeline_mode = #tpu.pipeline_mode<synchronous>, transform_indices = @transform_8, window_bounds = array<i64: 128, 256>}, {pipeline_mode = #tpu.pipeline_mode<synchronous>, transform_indices = @transform_9, window_bounds = array<i64: 1, 256>}, {pipeline_mode = #tpu.pipeline_mode<synchronous>, transform_indices = @transform_10, window_bounds = array<i64: 128, 128>}, {pipeline_mode = #tpu.pipeline_mode<synchronous>, transform_indices = @transform_11, window_bounds = array<i64: 1, 128>}, {pipeline_mode = #tpu.pipeline_mode<synchronous>, transform_indices = @transform_12, window_bounds = array<i64: 128, 128>}, {pipeline_mode = #tpu.pipeline_mode<synchronous>, transform_indices = @transform_13, window_bounds = array<i64: 1, 128>}, {pipeline_mode = #tpu.pipeline_mode<synchronous>, transform_indices = @transform_14, window_bounds = array<i64: 128, 128>}, {pipeline_mode = #tpu.pipeline_mode<synchronous>, transform_indices = @transform_15, window_bounds = array<i64: 1, 128>}, {transform_indices = @transform_16, window_bounds = array<i64: 16, 128>}, {transform_indices = @transform_17, window_bounds = array<i64: 16, 128>}, {transform_indices = @transform_18, window_bounds = array<i64: 16, 128>}, {transform_indices = @transform_19, window_bounds = array<i64: 16, 128>}]} {
    %c0 = arith.constant 0 : index
    %c0_0 = arith.constant 0 : index
    %0 = vector.load %arg1[%c0, %c0_0] : memref<16x128xbf16, #tpu.memory_space<vmem>>, vector<16x128xbf16>
    %c0_1 = arith.constant 0 : index
    %c0_2 = arith.constant 0 : index
    %1 = vector.load %arg3[%c0_1, %c0_2] : memref<128x128xbf16, #tpu.memory_space<vmem>>, vector<128x128xbf16>
    %cst = arith.constant dense<0.000000e+00> : vector<16x128xf32>
    %2 = tpu.matmul %0, %1, %cst {dimension_numbers = #tpu.dot_dimension_numbers<[1], [0], [0], [1], [0, 0, 1, 1], [], []>} : vector<16x128xbf16>, vector<128x128xbf16>, vector<16x128xf32> -> vector<16x128xf32>
    %c0_3 = arith.constant 0 : index
    %c0_4 = arith.constant 0 : index
    %3 = vector.load %arg4[%c0_3, %c0_4] : memref<1x128xf32, #tpu.memory_space<vmem>>, vector<1x128xf32>
    %4 = vector.broadcast %3 : vector<1x128xf32> to vector<16x128xf32>
    %5 = arith.addf %2, %4 : vector<16x128xf32>
    %cst_5 = arith.constant 0.000000e+00 : f32
    %6 = vector.broadcast %cst_5 : f32 to vector<16x128xf32>
    %7 = arith.maximumf %5, %6 : vector<16x128xf32>
    %8 = arith.truncf %7 : vector<16x128xf32> to vector<16x128xbf16>
    %c0_6 = arith.constant 0 : index
    %c0_7 = arith.constant 0 : index
    %9 = vector.load %arg5[%c0_6, %c0_7] : memref<128x128xbf16, #tpu.memory_space<vmem>>, vector<128x128xbf16>
    %cst_8 = arith.constant dense<0.000000e+00> : vector<16x128xf32>
    %10 = tpu.matmul %8, %9, %cst_8 {dimension_numbers = #tpu.dot_dimension_numbers<[1], [0], [0], [1], [0, 0, 1, 1], [], []>} : vector<16x128xbf16>, vector<128x128xbf16>, vector<16x128xf32> -> vector<16x128xf32>
    %c0_9 = arith.constant 0 : index
    %c0_10 = arith.constant 0 : index
    %11 = vector.load %arg6[%c0_9, %c0_10] : memref<1x128xf32, #tpu.memory_space<vmem>>, vector<1x128xf32>
    %12 = vector.broadcast %11 : vector<1x128xf32> to vector<16x128xf32>
    %13 = arith.addf %10, %12 : vector<16x128xf32>
    %cst_11 = arith.constant 0.000000e+00 : f32
    %14 = vector.broadcast %cst_11 : f32 to vector<16x128xf32>
    %15 = arith.maximumf %13, %14 : vector<16x128xf32>
    %16 = arith.truncf %15 : vector<16x128xf32> to vector<16x128xbf16>
    %c0_12 = arith.constant 0 : index
    %c0_13 = arith.constant 0 : index
    %17 = vector.load %arg7[%c0_12, %c0_13] : memref<128x256xbf16, #tpu.memory_space<vmem>>, vector<128x256xbf16>
    %cst_14 = arith.constant dense<0.000000e+00> : vector<16x256xf32>
    %18 = tpu.matmul %16, %17, %cst_14 {dimension_numbers = #tpu.dot_dimension_numbers<[1], [0], [0], [1], [0, 0, 1, 1], [], []>} : vector<16x128xbf16>, vector<128x256xbf16>, vector<16x256xf32> -> vector<16x256xf32>
    %c0_15 = arith.constant 0 : index
    %c0_16 = arith.constant 0 : index
    %19 = vector.load %arg8[%c0_15, %c0_16] : memref<1x256xf32, #tpu.memory_space<vmem>>, vector<1x256xf32>
    %20 = vector.broadcast %19 : vector<1x256xf32> to vector<16x256xf32>
    %21 = arith.addf %18, %20 : vector<16x256xf32>
    %22 = vector.extract_strided_slice %21 {offsets = [0, 0], sizes = [16, 128], strides = [1, 1]} : vector<16x256xf32> to vector<16x128xf32>
    %23 = vector.extract_strided_slice %21 {offsets = [0, 128], sizes = [16, 128], strides = [1, 1]} : vector<16x256xf32> to vector<16x128xf32>
    %c0_17 = arith.constant 0 : index
    %c0_18 = arith.constant 0 : index
    %24 = vector.load %arg2[%c0_17, %c0_18] : memref<16x128xf32, #tpu.memory_space<vmem>>, vector<16x128xf32>
    %25 = arith.mulf %23, %24 : vector<16x128xf32>
    %26 = arith.addf %22, %25 : vector<16x128xf32>
    %27 = arith.truncf %26 : vector<16x128xf32> to vector<16x128xbf16>
    %c0_19 = arith.constant 0 : index
    %c0_20 = arith.constant 0 : index
    %28 = vector.load %arg9[%c0_19, %c0_20] : memref<128x256xbf16, #tpu.memory_space<vmem>>, vector<128x256xbf16>
    %cst_21 = arith.constant dense<0.000000e+00> : vector<16x256xf32>
    %29 = tpu.matmul %27, %28, %cst_21 {dimension_numbers = #tpu.dot_dimension_numbers<[1], [0], [0], [1], [0, 0, 1, 1], [], []>} : vector<16x128xbf16>, vector<128x256xbf16>, vector<16x256xf32> -> vector<16x256xf32>
    %c0_22 = arith.constant 0 : index
    %c0_23 = arith.constant 0 : index
    %30 = vector.load %arg10[%c0_22, %c0_23] : memref<1x256xf32, #tpu.memory_space<vmem>>, vector<1x256xf32>
    %31 = vector.broadcast %30 : vector<1x256xf32> to vector<16x256xf32>
    %32 = arith.addf %29, %31 : vector<16x256xf32>
    %cst_24 = arith.constant 0.000000e+00 : f32
    %33 = vector.broadcast %cst_24 : f32 to vector<16x256xf32>
    %34 = arith.maximumf %32, %33 : vector<16x256xf32>
    %35 = vector.extract_strided_slice %34 {offsets = [0, 0], sizes = [16, 128], strides = [1, 1]} : vector<16x256xf32> to vector<16x128xf32>
    %36 = arith.truncf %35 : vector<16x128xf32> to vector<16x128xbf16>
    %37 = vector.extract_strided_slice %34 {offsets = [0, 128], sizes = [16, 128], strides = [1, 1]} : vector<16x256xf32> to vector<16x128xf32>
    %38 = arith.truncf %37 : vector<16x128xf32> to vector<16x128xbf16>
    %c0_25 = arith.constant 0 : index
    %c0_26 = arith.constant 0 : index
    %39 = vector.load %arg11[%c0_25, %c0_26] : memref<128x128xbf16, #tpu.memory_space<vmem>>, vector<128x128xbf16>
    %cst_27 = arith.constant dense<0.000000e+00> : vector<16x128xf32>
    %40 = tpu.matmul %36, %39, %cst_27 {dimension_numbers = #tpu.dot_dimension_numbers<[1], [0], [0], [1], [0, 0, 1, 1], [], []>} : vector<16x128xbf16>, vector<128x128xbf16>, vector<16x128xf32> -> vector<16x128xf32>
    %c0_28 = arith.constant 0 : index
    %c0_29 = arith.constant 0 : index
    %41 = vector.load %arg12[%c0_28, %c0_29] : memref<1x128xf32, #tpu.memory_space<vmem>>, vector<1x128xf32>
    %42 = vector.broadcast %41 : vector<1x128xf32> to vector<16x128xf32>
    %43 = arith.addf %40, %42 : vector<16x128xf32>
    %44 = math.tanh %43 : vector<16x128xf32>
    %c0_30 = arith.constant 0 : index
    %c0_31 = arith.constant 0 : index
    %45 = vector.load %arg13[%c0_30, %c0_31] : memref<128x128xbf16, #tpu.memory_space<vmem>>, vector<128x128xbf16>
    %cst_32 = arith.constant dense<0.000000e+00> : vector<16x128xf32>
    %46 = tpu.matmul %38, %45, %cst_32 {dimension_numbers = #tpu.dot_dimension_numbers<[1], [0], [0], [1], [0, 0, 1, 1], [], []>} : vector<16x128xbf16>, vector<128x128xbf16>, vector<16x128xf32> -> vector<16x128xf32>
    %c0_33 = arith.constant 0 : index
    %c0_34 = arith.constant 0 : index
    %47 = vector.load %arg14[%c0_33, %c0_34] : memref<1x128xf32, #tpu.memory_space<vmem>>, vector<1x128xf32>
    %48 = vector.broadcast %47 : vector<1x128xf32> to vector<16x128xf32>
    %49 = arith.addf %46, %48 : vector<16x128xf32>
    %cst_35 = arith.constant 0.000000e+00 : f32
    %50 = vector.broadcast %cst_35 : f32 to vector<16x128xf32>
    %51 = arith.maximumf %49, %50 : vector<16x128xf32>
    %52 = arith.truncf %51 : vector<16x128xf32> to vector<16x128xbf16>
    %c0_36 = arith.constant 0 : index
    %c0_37 = arith.constant 0 : index
    %53 = vector.load %arg15[%c0_36, %c0_37] : memref<128x128xbf16, #tpu.memory_space<vmem>>, vector<128x128xbf16>
    %cst_38 = arith.constant dense<0.000000e+00> : vector<16x128xf32>
    %54 = tpu.matmul %52, %53, %cst_38 {dimension_numbers = #tpu.dot_dimension_numbers<[1], [0], [0], [1], [0, 0, 1, 1], [], []>} : vector<16x128xbf16>, vector<128x128xbf16>, vector<16x128xf32> -> vector<16x128xf32>
    %c0_39 = arith.constant 0 : index
    %c0_40 = arith.constant 0 : index
    %55 = vector.load %arg16[%c0_39, %c0_40] : memref<1x128xf32, #tpu.memory_space<vmem>>, vector<1x128xf32>
    %56 = vector.broadcast %55 : vector<1x128xf32> to vector<16x128xf32>
    %57 = arith.addf %54, %56 : vector<16x128xf32>
    %c0_41 = arith.constant 0 : index
    %c0_42 = arith.constant 0 : index
    %58 = vector.load %arg17[%c0_41, %c0_42] : memref<16x128xf32, #tpu.memory_space<vmem>>, vector<16x128xf32>
    tpu.vector_store %arg17[%c0_41, %c0_42], %44 {strides = array<i32>} : memref<16x128xf32, #tpu.memory_space<vmem>>, vector<16x128xf32>,
    %c0_43 = arith.constant 0 : index
    %c0_44 = arith.constant 0 : index
    %59 = vector.load %arg18[%c0_43, %c0_44] : memref<16x128xf32, #tpu.memory_space<vmem>>, vector<16x128xf32>
    tpu.vector_store %arg18[%c0_43, %c0_44], %22 {strides = array<i32>} : memref<16x128xf32, #tpu.memory_space<vmem>>, vector<16x128xf32>,
    %c0_45 = arith.constant 0 : index
    %c0_46 = arith.constant 0 : index
    %60 = vector.load %arg19[%c0_45, %c0_46] : memref<16x128xf32, #tpu.memory_space<vmem>>, vector<16x128xf32>
    tpu.vector_store %arg19[%c0_45, %c0_46], %23 {strides = array<i32>} : memref<16x128xf32, #tpu.memory_space<vmem>>, vector<16x128xf32>,
    %c0_47 = arith.constant 0 : index
    %c0_48 = arith.constant 0 : index
    %61 = vector.load %arg20[%c0_47, %c0_48] : memref<16x128xf32, #tpu.memory_space<vmem>>, vector<16x128xf32>
    tpu.vector_store %arg20[%c0_47, %c0_48], %57 {strides = array<i32>} : memref<16x128xf32, #tpu.memory_space<vmem>>, vector<16x128xf32>,
    return
  }
  func.func @transform_0(%arg0: i32) -> (i32, i32) {
    %c0_i32 = arith.constant 0 : i32
    %c0_i32_0 = arith.constant 0 : i32
    return %arg0, %c0_i32 : i32, i32
  }
  func.func @transform_1(%arg0: i32) -> (i32, i32) {
    %c0_i32 = arith.constant 0 : i32
    %c0_i32_0 = arith.constant 0 : i32
    return %arg0, %c0_i32 : i32, i32
  }
  func.func @transform_2(%arg0: i32) -> (i32, i32) {
    %c0_i32 = arith.constant 0 : i32
    %c0_i32_0 = arith.constant 0 : i32
    %c0_i32_1 = arith.constant 0 : i32
    return %c0_i32, %c0_i32_0 : i32, i32
  }
  func.func @transform_3(%arg0: i32) -> (i32, i32) {
    %c0_i32 = arith.constant 0 : i32
    %c0_i32_0 = arith.constant 0 : i32
    %c0_i32_1 = arith.constant 0 : i32
    return %c0_i32, %c0_i32_0 : i32, i32
  }
  func.func @transform_4(%arg0: i32) -> (i32, i32) {
    %c0_i32 = arith.constant 0 : i32
    %c0_i32_0 = arith.constant 0 : i32
    %c0_i32_1 = arith.constant 0 : i32
    return %c0_i32, %c0_i32_0 : i32, i32
  }
  func.func @transform_5(%arg0: i32) -> (i32, i32) {
    %c0_i32 = arith.constant 0 : i32
    %c0_i32_0 = arith.constant 0 : i32
    %c0_i32_1 = arith.constant 0 : i32
    return %c0_i32, %c0_i32_0 : i32, i32
  }
  func.func @transform_6(%arg0: i32) -> (i32, i32) {
    %c0_i32 = arith.constant 0 : i32
    %c0_i32_0 = arith.constant 0 : i32
    %c0_i32_1 = arith.constant 0 : i32
    return %c0_i32, %c0_i32_0 : i32, i32
  }
  func.func @transform_7(%arg0: i32) -> (i32, i32) {
    %c0_i32 = arith.constant 0 : i32
    %c0_i32_0 = arith.constant 0 : i32
    %c0_i32_1 = arith.constant 0 : i32
    return %c0_i32, %c0_i32_0 : i32, i32
  }
  func.func @transform_8(%arg0: i32) -> (i32, i32) {
    %c0_i32 = arith.constant 0 : i32
    %c0_i32_0 = arith.constant 0 : i32
    %c0_i32_1 = arith.constant 0 : i32
    return %c0_i32, %c0_i32_0 : i32, i32
  }
  func.func @transform_9(%arg0: i32) -> (i32, i32) {
    %c0_i32 = arith.constant 0 : i32
    %c0_i32_0 = arith.constant 0 : i32
    %c0_i32_1 = arith.constant 0 : i32
    return %c0_i32, %c0_i32_0 : i32, i32
  }
  func.func @transform_10(%arg0: i32) -> (i32, i32) {
    %c0_i32 = arith.constant 0 : i32
    %c0_i32_0 = arith.constant 0 : i32
    %c0_i32_1 = arith.constant 0 : i32
    return %c0_i32, %c0_i32_0 : i32, i32
  }
  func.func @transform_11(%arg0: i32) -> (i32, i32) {
    %c0_i32 = arith.constant 0 : i32
    %c0_i32_0 = arith.constant 0 : i32
    %c0_i32_1 = arith.constant 0 : i32
    return %c0_i32, %c0_i32_0 : i32, i32
  }
  func.func @transform_12(%arg0: i32) -> (i32, i32) {
    %c0_i32 = arith.constant 0 : i32
    %c0_i32_0 = arith.constant 0 : i32
    %c0_i32_1 = arith.constant 0 : i32
    return %c0_i32, %c0_i32_0 : i32, i32
  }
  func.func @transform_13(%arg0: i32) -> (i32, i32) {
    %c0_i32 = arith.constant 0 : i32
    %c0_i32_0 = arith.constant 0 : i32
    %c0_i32_1 = arith.constant 0 : i32
    return %c0_i32, %c0_i32_0 : i32, i32
  }
  func.func @transform_14(%arg0: i32) -> (i32, i32) {
    %c0_i32 = arith.constant 0 : i32
    %c0_i32_0 = arith.constant 0 : i32
    %c0_i32_1 = arith.constant 0 : i32
    return %c0_i32, %c0_i32_0 : i32, i32
  }
  func.func @transform_15(%arg0: i32) -> (i32, i32) {
    %c0_i32 = arith.constant 0 : i32
    %c0_i32_0 = arith.constant 0 : i32
    %c0_i32_1 = arith.constant 0 : i32
    return %c0_i32, %c0_i32_0 : i32, i32
  }
  func.func @transform_16(%arg0: i32) -> (i32, i32) {
    %c0_i32 = arith.constant 0 : i32
    %c0_i32_0 = arith.constant 0 : i32
    return %arg0, %c0_i32 : i32, i32
  }
  func.func @transform_17(%arg0: i32) -> (i32, i32) {
    %c0_i32 = arith.constant 0 : i32
    %c0_i32_0 = arith.constant 0 : i32
    return %arg0, %c0_i32 : i32, i32
  }
  func.func @transform_18(%arg0: i32) -> (i32, i32) {
    %c0_i32 = arith.constant 0 : i32
    %c0_i32_0 = arith.constant 0 : i32
    return %arg0, %c0_i32 : i32, i32
  }
  func.func @transform_19(%arg0: i32) -> (i32, i32) {
    %c0_i32 = arith.constant 0 : i32
    %c0_i32_0 = arith.constant 0 : i32
    return %arg0, %c0_i32 : i32, i32
  }
}

</mosaic_0001>

<llo_original>
// kernel: vae_forward.1
$region0: #{vae_forward.1}
  #allocation0 [shape = 'u32[]', space=smem, size = 0x4, offset = 0x4, fixed_abs, tag = 'smem constant byte address 0x4 - core index']
  #allocation1 [shape = 'u32[144,128]{1,0:T(1,128)}', space=vmem, size = 0x12000, scoped, tag = 'internal scratch']
  %s0 = inlined_call_operand.vmem [shape: bf16[32,128], index: 0, kind: input, shape index: {}]
  %s1 = inlined_call_operand.vmem [shape: f32[32,128], index: 1, kind: input, shape index: {}]
  %s2 = inlined_call_operand.hbm [shape: bf16[128,128], index: 2, kind: input, shape index: {}]
  %s3 = inlined_call_operand.vmem [shape: f32[1,128], index: 3, kind: input, shape index: {}]
  %s4 = inlined_call_operand.hbm [shape: bf16[128,128], index: 4, kind: input, shape index: {}]
  %s5 = inlined_call_operand.vmem [shape: f32[1,128], index: 5, kind: input, shape index: {}]
  %s6 = inlined_call_operand.vmem [shape: bf16[128,256], index: 6, kind: input, shape index: {}]
  %s7 = inlined_call_operand.vmem [shape: f32[1,256], index: 7, kind: input, shape index: {}]
  %s8 = inlined_call_operand.hbm [shape: bf16[128,256], index: 8, kind: input, shape index: {}]
  %s9 = inlined_call_operand.vmem [shape: f32[1,256], index: 9, kind: input, shape index: {}]
  %s10 = inlined_call_operand.hbm [shape: bf16[128,128], index: 10, kind: input, shape index: {}]
  %s11 = inlined_call_operand.vmem [shape: f32[1,128], index: 11, kind: input, shape index: {}]
  %s12 = inlined_call_operand.hbm [shape: bf16[128,128], index: 12, kind: input, shape index: {}]
  %s13 = inlined_call_operand.vmem [shape: f32[1,128], index: 13, kind: input, shape index: {}]
  %s14 = inlined_call_operand.hbm [shape: bf16[128,128], index: 14, kind: input, shape index: {}]
  %s15 = inlined_call_operand.vmem [shape: f32[1,128], index: 15, kind: input, shape index: {}]
  %s16 = inlined_call_operand.vmem [shape: f32[32,128], index: 16, kind: output, shape index: {0}]
  %s17 = inlined_call_operand.vmem [shape: f32[32,128], index: 17, kind: output, shape index: {1}]
  %s18 = inlined_call_operand.vmem [shape: f32[32,128], index: 18, kind: output, shape index: {2}]
  %s19 = inlined_call_operand.vmem [shape: f32[32,128], index: 19, kind: output, shape index: {3}]
  %20 = xla_tuple %s16, %s17, %s18, %s19
  %s21 = sld [smem:[#allocation0]]
  $region145: #{vae_forward.1} parent=0
    _
  %s23 = ssub.s32 1, %s21
  %s24 = scalar_select 0, %s23, %s21
  $region1: #{vae_forward.1} parent=0
    #allocation2 [shape = 'u8[32768]{0}', space=vmem, size = 0x8000, scoped, tag = 'input window, operand 2, single buffered']
    #allocation3 [shape = 's32[2]{0}', space=sflag, size = 0x8, scoped, tag = 'scoped memory for vae_forward.1']
    #allocation4 [shape = 'u8[32768]{0}', space=vmem, size = 0x8000, scoped, tag = 'input window, operand 4, single buffered']
    #allocation5 [shape = 's32[1]{0}', space=sflag, size = 0x4, scoped, tag = 'scoped memory for vae_forward.1']
    #allocation6 [shape = 'u8[65536]{0}', space=vmem, size = 0x10000, scoped, tag = 'input window, operand 8, single buffered']
    #allocation7 [shape = 'u8[32768]{0}', space=vmem, size = 0x8000, scoped, tag = 'input window, operand 10, single buffered']
    #allocation8 [shape = 's32[1]{0}', space=sflag, size = 0x4, scoped, tag = 'scoped memory for vae_forward.1']
    #allocation9 [shape = 'u8[32768]{0}', space=vmem, size = 0x8000, scoped, tag = 'input window, operand 12, single buffered']
    #allocation10 [shape = 'u8[32768]{0}', space=vmem, size = 0x8000, scoped, tag = 'input window, operand 14, single buffered']
    #allocation11 [shape = 's32[1]{0}', space=sflag, size = 0x4, scoped, tag = 'scoped memory for vae_forward.1']
    %25 = vsyncpa [#allocation3], 0
    %26 = vsyncpa [#allocation5], 0
    %27 = vsyncpa [#allocation8], 0
    %28 = vsyncpa [#allocation11], 0
    loop: start=0, step=1, limit=4
    $region2: #{vae_forward.1} parent=1 // loop_pre_header
      _
    $region3: #{vae_forward.1} parent=1 // loop_header
      %s30 = sphi 0, %s34
      %p31 = scmp.ge.s32.totalorder %s30, 4
      %s40 = sphi 0, %s42
      %s43 = sphi 0, %s40
      %s44 = sphi 0, %s43
      %s60 = sphi 0, %s44
      %s66 = sphi 0, %s68
      %s69 = sphi 0, %s66
      %s70 = sphi 0, %s69
      %s86 = sphi 0, %s70
      %s90 = sphi 0, %s90
      %s92 = sphi 0, %s90
      %s93 = sphi 0, %s92
      %s107 = sphi 0, %s93
      %s111 = sphi 0, %s111
      %s113 = sphi 0, %s111
      %s114 = sphi 0, %s113
      %s128 = sphi 0, %s114
      %s132 = sphi 0, %s132
      %s134 = sphi 0, %s132
      %s135 = sphi 0, %s134
      %s149 = sphi 0, %s135
      %s153 = sphi 0, %s153
      %s155 = sphi 0, %s153
      %s156 = sphi 0, %s155
      %s170 = sphi 0, %s156
      %s174 = sphi 0, %s174
      %s176 = sphi 0, %s174
      %s177 = sphi 0, %s176
      %s191 = sphi 0, %s177
      %s195 = sphi 0, %s195
      %s197 = sphi 0, %s195
      %s198 = sphi 0, %s197
      %s212 = sphi 0, %s198
      %s216 = sphi 0, %s216
      %s218 = sphi 0, %s216
      %s219 = sphi 0, %s218
      %s233 = sphi 0, %s219
      %s237 = sphi 0, %s237
      %s239 = sphi 0, %s237
      %s240 = sphi 0, %s239
      %s254 = sphi 0, %s240
      %s258 = sphi 0, %s258
      %s260 = sphi 0, %s258
      %s261 = sphi 0, %s260
      %s275 = sphi 0, %s261
      %s279 = sphi 0, %s279
      %s281 = sphi 0, %s279
      %s282 = sphi 0, %s281
      %s296 = sphi 0, %s282
      %s300 = sphi 0, %s300
      %s302 = sphi 0, %s300
      %s303 = sphi 0, %s302
      %s317 = sphi 0, %s303
      %s321 = sphi 0, %s321
      %s323 = sphi 0, %s321
      %s324 = sphi 0, %s323
      %s338 = sphi 0, %s324
      %s342 = sphi 0, %s342
      %s344 = sphi 0, %s342
      %s345 = sphi 0, %s344
      %s359 = sphi 0, %s345
      %s363 = sphi 0, %s363
      %s365 = sphi 0, %s363
      %s366 = sphi 0, %s365
      %s380 = sphi 0, %s366
      %s386 = sphi 0, %s388
      %s389 = sphi 0, %s386
      %s390 = sphi 0, %s389
      %s406 = sphi 0, %s390
      %s412 = sphi 0, %s414
      %s415 = sphi 0, %s412
      %s416 = sphi 0, %s415
      %s432 = sphi 0, %s416
      %s438 = sphi 0, %s440
      %s441 = sphi 0, %s438
      %s442 = sphi 0, %s441
      %s458 = sphi 0, %s442
      %s464 = sphi 0, %s466
      %s467 = sphi 0, %s464
      %s468 = sphi 0, %s467
      %s484 = sphi 0, %s468
    $region4: #{vae_forward.1} parent=1 // loop_header_branch
      %33 = sbr.rel (%p31) target = $region8
    $region5: #{vae_forward.1} parent=1 // loop_body
      %s35 = ssub.s32 %s30, 1
      %s36 = ssub.s32 %s30, 2
      %s37 = sadd.s32 %s30, 1
      %s38 = ssub.s32 %s30, %s37
      %p39 = scmp.eq.s32.totalorder %s38, 0
      %s41 = sadd.s32 %s40, 1
      %s42 = scalar_select %p39, %s40, %s41
      %p45 = pneg %p39
      %p46 = scmp.eq.s32.totalorder %s30, 1
      %p47 = por %p45, %p46
      %p48 = scmp.ne.s32.totalorder %s40, %s43
      %p49 = scmp.eq.s32.totalorder %s30, 0
      %p50 = por %p48, %p49
      %p51 = scmp.ne.s32.totalorder %s40, %s43
      %p52 = scmp.eq.s32.totalorder %s35, 1
      %p53 = por %p51, %p52
      %p54 = scmp.ne.s32.totalorder %s43, %s44
      %p55 = scmp.eq.s32.totalorder %s35, 0
      %p56 = por %p54, %p55
      %p57 = scmp.ne.s32.totalorder %s43, %s44
      %p58 = scmp.eq.s32.totalorder %s36, 1
      %p59 = por %p57, %p58
      %p61 = scmp.ne.s32.totalorder %s44, %s60
      %p62 = scmp.eq.s32.totalorder %s36, 0
      %p63 = por %p61, %p62
      %s64 = ssub.s32 %s30, %s37
      %p65 = scmp.eq.s32.totalorder %s64, 0
      %s67 = sadd.s32 %s66, 1
      %s68 = scalar_select %p65, %s66, %s67
      %p71 = pneg %p65
      %p72 = scmp.eq.s32.totalorder %s30, 1
      %p73 = por %p71, %p72
      %p74 = scmp.ne.s32.totalorder %s66, %s69
      %p75 = scmp.eq.s32.totalorder %s30, 0
      %p76 = por %p74, %p75
      %p77 = scmp.ne.s32.totalorder %s66, %s69
      %p78 = scmp.eq.s32.totalorder %s35, 1
      %p79 = por %p77, %p78
      %p80 = scmp.ne.s32.totalorder %s69, %s70
      %p81 = scmp.eq.s32.totalorder %s35, 0
      %p82 = por %p80, %p81
      %p83 = scmp.ne.s32.totalorder %s69, %s70
      %p84 = scmp.eq.s32.totalorder %s36, 1
      %p85 = por %p83, %p84
      %p87 = scmp.ne.s32.totalorder %s70, %s86
      %p88 = scmp.eq.s32.totalorder %s36, 0
      %p89 = por %p87, %p88
      %s91 = sadd.s32 %s90, 1
      %p94 = scmp.eq.s32.totalorder %s30, 1
      %p95 = scmp.ne.s32.totalorder %s90, %s92
      %p96 = scmp.eq.s32.totalorder %s30, 0
      %p97 = por %p95, %p96
      %p98 = scmp.ne.s32.totalorder %s90, %s92
      %p99 = scmp.eq.s32.totalorder %s35, 1
      %p100 = por %p98, %p99
      %p101 = scmp.ne.s32.totalorder %s92, %s93
      %p102 = scmp.eq.s32.totalorder %s35, 0
      %p103 = por %p101, %p102
      %p104 = scmp.ne.s32.totalorder %s92, %s93
      %p105 = scmp.eq.s32.totalorder %s36, 1
      %p106 = por %p104, %p105
      %p108 = scmp.ne.s32.totalorder %s93, %s107
      %p109 = scmp.eq.s32.totalorder %s36, 0
      %p110 = por %p108, %p109
      %s112 = sadd.s32 %s111, 1
      %p115 = scmp.eq.s32.totalorder %s30, 1
      %p116 = scmp.ne.s32.totalorder %s111, %s113
      %p117 = scmp.eq.s32.totalorder %s30, 0
      %p118 = por %p116, %p117
      %p119 = scmp.ne.s32.totalorder %s111, %s113
      %p120 = scmp.eq.s32.totalorder %s35, 1
      %p121 = por %p119, %p120
      %p122 = scmp.ne.s32.totalorder %s113, %s114
      %p123 = scmp.eq.s32.totalorder %s35, 0
      %p124 = por %p122, %p123
      %p125 = scmp.ne.s32.totalorder %s113, %s114
      %p126 = scmp.eq.s32.totalorder %s36, 1
      %p127 = por %p125, %p126
      %p129 = scmp.ne.s32.totalorder %s114, %s128
      %p130 = scmp.eq.s32.totalorder %s36, 0
      %p131 = por %p129, %p130
      %s133 = sadd.s32 %s132, 1
      %p136 = scmp.eq.s32.totalorder %s30, 1
      %p137 = scmp.ne.s32.totalorder %s132, %s134
      %p138 = scmp.eq.s32.totalorder %s30, 0
      %p139 = por %p137, %p138
      %p140 = scmp.ne.s32.totalorder %s132, %s134
      %p141 = scmp.eq.s32.totalorder %s35, 1
      %p142 = por %p140, %p141
      %p143 = scmp.ne.s32.totalorder %s134, %s135
      %p144 = scmp.eq.s32.totalorder %s35, 0
      %p145 = por %p143, %p144
      %p146 = scmp.ne.s32.totalorder %s134, %s135
      %p147 = scmp.eq.s32.totalorder %s36, 1
      %p148 = por %p146, %p147
      %p150 = scmp.ne.s32.totalorder %s135, %s149
      %p151 = scmp.eq.s32.totalorder %s36, 0
      %p152 = por %p150, %p151
      %s154 = sadd.s32 %s153, 1
      %p157 = scmp.eq.s32.totalorder %s30, 1
      %p158 = scmp.ne.s32.totalorder %s153, %s155
      %p159 = scmp.eq.s32.totalorder %s30, 0
      %p160 = por %p158, %p159
      %p161 = scmp.ne.s32.totalorder %s153, %s155
      %p162 = scmp.eq.s32.totalorder %s35, 1
      %p163 = por %p161, %p162
      %p164 = scmp.ne.s32.totalorder %s155, %s156
      %p165 = scmp.eq.s32.totalorder %s35, 0
      %p166 = por %p164, %p165
      %p167 = scmp.ne.s32.totalorder %s155, %s156
      %p168 = scmp.eq.s32.totalorder %s36, 1
      %p169 = por %p167, %p168
      %p171 = scmp.ne.s32.totalorder %s156, %s170
      %p172 = scmp.eq.s32.totalorder %s36, 0
      %p173 = por %p171, %p172
      %s175 = sadd.s32 %s174, 1
      %p178 = scmp.eq.s32.totalorder %s30, 1
      %p179 = scmp.ne.s32.totalorder %s174, %s176
      %p180 = scmp.eq.s32.totalorder %s30, 0
      %p181 = por %p179, %p180
      %p182 = scmp.ne.s32.totalorder %s174, %s176
      %p183 = scmp.eq.s32.totalorder %s35, 1
      %p184 = por %p182, %p183
      %p185 = scmp.ne.s32.totalorder %s176, %s177
      %p186 = scmp.eq.s32.totalorder %s35, 0
      %p187 = por %p185, %p186
      %p188 = scmp.ne.s32.totalorder %s176, %s177
      %p189 = scmp.eq.s32.totalorder %s36, 1
      %p190 = por %p188, %p189
      %p192 = scmp.ne.s32.totalorder %s177, %s191
      %p193 = scmp.eq.s32.totalorder %s36, 0
      %p194 = por %p192, %p193
      %s196 = sadd.s32 %s195, 1
      %p199 = scmp.eq.s32.totalorder %s30, 1
      %p200 = scmp.ne.s32.totalorder %s195, %s197
      %p201 = scmp.eq.s32.totalorder %s30, 0
      %p202 = por %p200, %p201
      %p203 = scmp.ne.s32.totalorder %s195, %s197
      %p204 = scmp.eq.s32.totalorder %s35, 1
      %p205 = por %p203, %p204
      %p206 = scmp.ne.s32.totalorder %s197, %s198
      %p207 = scmp.eq.s32.totalorder %s35, 0
      %p208 = por %p206, %p207
      %p209 = scmp.ne.s32.totalorder %s197, %s198
      %p210 = scmp.eq.s32.totalorder %s36, 1
      %p211 = por %p209, %p210
      %p213 = scmp.ne.s32.totalorder %s198, %s212
      %p214 = scmp.eq.s32.totalorder %s36, 0
      %p215 = por %p213, %p214
      %s217 = sadd.s32 %s216, 1
      %p220 = scmp.eq.s32.totalorder %s30, 1
      %p221 = scmp.ne.s32.totalorder %s216, %s218
      %p222 = scmp.eq.s32.totalorder %s30, 0
      %p223 = por %p221, %p222
      %p224 = scmp.ne.s32.totalorder %s216, %s218
      %p225 = scmp.eq.s32.totalorder %s35, 1
      %p226 = por %p224, %p225
      %p227 = scmp.ne.s32.totalorder %s218, %s219
      %p228 = scmp.eq.s32.totalorder %s35, 0
      %p229 = por %p227, %p228
      %p230 = scmp.ne.s32.totalorder %s218, %s219
      %p231 = scmp.eq.s32.totalorder %s36, 1
      %p232 = por %p230, %p231
      %p234 = scmp.ne.s32.totalorder %s219, %s233
      %p235 = scmp.eq.s32.totalorder %s36, 0
      %p236 = por %p234, %p235
      %s238 = sadd.s32 %s237, 1
      %p241 = scmp.eq.s32.totalorder %s30, 1
      %p242 = scmp.ne.s32.totalorder %s237, %s239
      %p243 = scmp.eq.s32.totalorder %s30, 0
      %p244 = por %p242, %p243
      %p245 = scmp.ne.s32.totalorder %s237, %s239
      %p246 = scmp.eq.s32.totalorder %s35, 1
      %p247 = por %p245, %p246
      %p248 = scmp.ne.s32.totalorder %s239, %s240
      %p249 = scmp.eq.s32.totalorder %s35, 0
      %p250 = por %p248, %p249
      %p251 = scmp.ne.s32.totalorder %s239, %s240
      %p252 = scmp.eq.s32.totalorder %s36, 1
      %p253 = por %p251, %p252
      %p255 = scmp.ne.s32.totalorder %s240, %s254
      %p256 = scmp.eq.s32.totalorder %s36, 0
      %p257 = por %p255, %p256
      %s259 = sadd.s32 %s258, 1
      %p262 = scmp.eq.s32.totalorder %s30, 1
      %p263 = scmp.ne.s32.totalorder %s258, %s260
      %p264 = scmp.eq.s32.totalorder %s30, 0
      %p265 = por %p263, %p264
      %p266 = scmp.ne.s32.totalorder %s258, %s260
      %p267 = scmp.eq.s32.totalorder %s35, 1
      %p268 = por %p266, %p267
      %p269 = scmp.ne.s32.totalorder %s260, %s261
      %p270 = scmp.eq.s32.totalorder %s35, 0
      %p271 = por %p269, %p270
      %p272 = scmp.ne.s32.totalorder %s260, %s261
      %p273 = scmp.eq.s32.totalorder %s36, 1
      %p274 = por %p272, %p273
      %p276 = scmp.ne.s32.totalorder %s261, %s275
      %p277 = scmp.eq.s32.totalorder %s36, 0
      %p278 = por %p276, %p277
      %s280 = sadd.s32 %s279, 1
      %p283 = scmp.eq.s32.totalorder %s30, 1
      %p284 = scmp.ne.s32.totalorder %s279, %s281
      %p285 = scmp.eq.s32.totalorder %s30, 0
      %p286 = por %p284, %p285
      %p287 = scmp.ne.s32.totalorder %s279, %s281
      %p288 = scmp.eq.s32.totalorder %s35, 1
      %p289 = por %p287, %p288
      %p290 = scmp.ne.s32.totalorder %s281, %s282
      %p291 = scmp.eq.s32.totalorder %s35, 0
      %p292 = por %p290, %p291
      %p293 = scmp.ne.s32.totalorder %s281, %s282
      %p294 = scmp.eq.s32.totalorder %s36, 1
      %p295 = por %p293, %p294
      %p297 = scmp.ne.s32.totalorder %s282, %s296
      %p298 = scmp.eq.s32.totalorder %s36, 0
      %p299 = por %p297, %p298
      %s301 = sadd.s32 %s300, 1
      %p304 = scmp.eq.s32.totalorder %s30, 1
      %p305 = scmp.ne.s32.totalorder %s300, %s302
      %p306 = scmp.eq.s32.totalorder %s30, 0
      %p307 = por %p305, %p306
      %p308 = scmp.ne.s32.totalorder %s300, %s302
      %p309 = scmp.eq.s32.totalorder %s35, 1
      %p310 = por %p308, %p309
      %p311 = scmp.ne.s32.totalorder %s302, %s303
      %p312 = scmp.eq.s32.totalorder %s35, 0
      %p313 = por %p311, %p312
      %p314 = scmp.ne.s32.totalorder %s302, %s303
      %p315 = scmp.eq.s32.totalorder %s36, 1
      %p316 = por %p314, %p315
      %p318 = scmp.ne.s32.totalorder %s303, %s317
      %p319 = scmp.eq.s32.totalorder %s36, 0
      %p320 = por %p318, %p319
      %s322 = sadd.s32 %s321, 1
      %p325 = scmp.eq.s32.totalorder %s30, 1
      %p326 = scmp.ne.s32.totalorder %s321, %s323
      %p327 = scmp.eq.s32.totalorder %s30, 0
      %p328 = por %p326, %p327
      %p329 = scmp.ne.s32.totalorder %s321, %s323
      %p330 = scmp.eq.s32.totalorder %s35, 1
      %p331 = por %p329, %p330
      %p332 = scmp.ne.s32.totalorder %s323, %s324
      %p333 = scmp.eq.s32.totalorder %s35, 0
      %p334 = por %p332, %p333
      %p335 = scmp.ne.s32.totalorder %s323, %s324
      %p336 = scmp.eq.s32.totalorder %s36, 1
      %p337 = por %p335, %p336
      %p339 = scmp.ne.s32.totalorder %s324, %s338
      %p340 = scmp.eq.s32.totalorder %s36, 0
      %p341 = por %p339, %p340
      %s343 = sadd.s32 %s342, 1
      %p346 = scmp.eq.s32.totalorder %s30, 1
      %p347 = scmp.ne.s32.totalorder %s342, %s344
      %p348 = scmp.eq.s32.totalorder %s30, 0
      %p349 = por %p347, %p348
      %p350 = scmp.ne.s32.totalorder %s342, %s344
      %p351 = scmp.eq.s32.totalorder %s35, 1
      %p352 = por %p350, %p351
      %p353 = scmp.ne.s32.totalorder %s344, %s345
      %p354 = scmp.eq.s32.totalorder %s35, 0
      %p355 = por %p353, %p354
      %p356 = scmp.ne.s32.totalorder %s344, %s345
      %p357 = scmp.eq.s32.totalorder %s36, 1
      %p358 = por %p356, %p357
      %p360 = scmp.ne.s32.totalorder %s345, %s359
      %p361 = scmp.eq.s32.totalorder %s36, 0
      %p362 = por %p360, %p361
      %s364 = sadd.s32 %s363, 1
      %p367 = scmp.eq.s32.totalorder %s30, 1
      %p368 = scmp.ne.s32.totalorder %s363, %s365
      %p369 = scmp.eq.s32.totalorder %s30, 0
      %p370 = por %p368, %p369
      %p371 = scmp.ne.s32.totalorder %s363, %s365
      %p372 = scmp.eq.s32.totalorder %s35, 1
      %p373 = por %p371, %p372
      %p374 = scmp.ne.s32.totalorder %s365, %s366
      %p375 = scmp.eq.s32.totalorder %s35, 0
      %p376 = por %p374, %p375
      %p377 = scmp.ne.s32.totalorder %s365, %s366
      %p378 = scmp.eq.s32.totalorder %s36, 1
      %p379 = por %p377, %p378
      %p381 = scmp.ne.s32.totalorder %s366, %s380
      %p382 = scmp.eq.s32.totalorder %s36, 0
      %p383 = por %p381, %p382
      %s384 = ssub.s32 %s30, %s37
      %p385 = scmp.eq.s32.totalorder %s384, 0
      %s387 = sadd.s32 %s386, 1
      %s388 = scalar_select %p385, %s386, %s387
      %p391 = pneg %p385
      %p392 = scmp.eq.s32.totalorder %s30, 1
      %p393 = por %p391, %p392
      %p394 = scmp.ne.s32.totalorder %s386, %s389
      %p395 = scmp.eq.s32.totalorder %s30, 0
      %p396 = por %p394, %p395
      %p397 = scmp.ne.s32.totalorder %s386, %s389
      %p398 = scmp.eq.s32.totalorder %s35, 1
      %p399 = por %p397, %p398
      %p400 = scmp.ne.s32.totalorder %s389, %s390
      %p401 = scmp.eq.s32.totalorder %s35, 0
      %p402 = por %p400, %p401
      %p403 = scmp.ne.s32.totalorder %s389, %s390
      %p404 = scmp.eq.s32.totalorder %s36, 1
      %p405 = por %p403, %p404
      %p407 = scmp.ne.s32.totalorder %s390, %s406
      %p408 = scmp.eq.s32.totalorder %s36, 0
      %p409 = por %p407, %p408
      %s410 = ssub.s32 %s30, %s37
      %p411 = scmp.eq.s32.totalorder %s410, 0
      %s413 = sadd.s32 %s412, 1
      %s414 = scalar_select %p411, %s412, %s413
      %p417 = pneg %p411
      %p418 = scmp.eq.s32.totalorder %s30, 1
      %p419 = por %p417, %p418
      %p420 = scmp.ne.s32.totalorder %s412, %s415
      %p421 = scmp.eq.s32.totalorder %s30, 0
      %p422 = por %p420, %p421
      %p423 = scmp.ne.s32.totalorder %s412, %s415
      %p424 = scmp.eq.s32.totalorder %s35, 1
      %p425 = por %p423, %p424
      %p426 = scmp.ne.s32.totalorder %s415, %s416
      %p427 = scmp.eq.s32.totalorder %s35, 0
      %p428 = por %p426, %p427
      %p429 = scmp.ne.s32.totalorder %s415, %s416
      %p430 = scmp.eq.s32.totalorder %s36, 1
      %p431 = por %p429, %p430
      %p433 = scmp.ne.s32.totalorder %s416, %s432
      %p434 = scmp.eq.s32.totalorder %s36, 0
      %p435 = por %p433, %p434
      %s436 = ssub.s32 %s30, %s37
      %p437 = scmp.eq.s32.totalorder %s436, 0
      %s439 = sadd.s32 %s438, 1
      %s440 = scalar_select %p437, %s438, %s439
      %p443 = pneg %p437
      %p444 = scmp.eq.s32.totalorder %s30, 1
      %p445 = por %p443, %p444
      %p446 = scmp.ne.s32.totalorder %s438, %s441
      %p447 = scmp.eq.s32.totalorder %s30, 0
      %p448 = por %p446, %p447
      %p449 = scmp.ne.s32.totalorder %s438, %s441
      %p450 = scmp.eq.s32.totalorder %s35, 1
      %p451 = por %p449, %p450
      %p452 = scmp.ne.s32.totalorder %s441, %s442
      %p453 = scmp.eq.s32.totalorder %s35, 0
      %p454 = por %p452, %p453
      %p455 = scmp.ne.s32.totalorder %s441, %s442
      %p456 = scmp.eq.s32.totalorder %s36, 1
      %p457 = por %p455, %p456
      %p459 = scmp.ne.s32.totalorder %s442, %s458
      %p460 = scmp.eq.s32.totalorder %s36, 0
      %p461 = por %p459, %p460
      %s462 = ssub.s32 %s30, %s37
      %p463 = scmp.eq.s32.totalorder %s462, 0
      %s465 = sadd.s32 %s464, 1
      %s466 = scalar_select %p463, %s464, %s465
      %p469 = pneg %p463
      %p470 = scmp.eq.s32.totalorder %s30, 1
      %p471 = por %p469, %p470
      %p472 = scmp.ne.s32.totalorder %s464, %s467
      %p473 = scmp.eq.s32.totalorder %s30, 0
      %p474 = por %p472, %p473
      %p475 = scmp.ne.s32.totalorder %s464, %s467
      %p476 = scmp.eq.s32.totalorder %s35, 1
      %p477 = por %p475, %p476
      %p478 = scmp.ne.s32.totalorder %s467, %s468
      %p479 = scmp.eq.s32.totalorder %s35, 0
      %p480 = por %p478, %p479
      %p481 = scmp.ne.s32.totalorder %s467, %s468
      %p482 = scmp.eq.s32.totalorder %s36, 1
      %p483 = por %p481, %p482
      %p485 = scmp.ne.s32.totalorder %s468, %s484
      %p486 = scmp.eq.s32.totalorder %s36, 0
      %p487 = por %p485, %p486
      %p488 = scmp.le.s32.totalorder 1, %s30
      %p489 = scmp.lt.s32.totalorder %s30, 3
      %p490 = pnand %p488, %p489
      %p491 = pneg %p490
      // Predicated region
      $region9: #{vae_forward.1} parent=5 // pred_check
        _
      $region10: #{vae_forward.1} parent=5 // pred_check_branch
        %493 = sbr.rel (%p490) target = $region12
      $region11: #{vae_forward.1} parent=5 // pred_region
        %s494 = ssub.s32 %s30, 1
        // Predicated region
        $region13: #{vae_forward.1} parent=11 // pred_check
          %p495 = pneg %p103
        $region14: #{vae_forward.1} parent=11 // pred_check_branch
          %497 = sbr.rel (%p495) target = $region16
        $region15: #{vae_forward.1} parent=11 // pred_region
          %s499 = ssub.s32 1024, 1024
          %500 = vsyncadd [#allocation3], %s499
          %s501 = sshll.u32 [#allocation2], 4
          %s502 = int_to_ptr.vmem [resolvable:$true] %s501
          %507 = dma.hbm_to_vmem [thread:$0]  %s2, 1024, %s502, [#allocation3], 64, 64, 4
        $region16: #{vae_forward.1} parent=11 // pred_fallthru
          _
        // Predicated region
        $region17: #{vae_forward.1} parent=11 // pred_check
          %p508 = pneg %p124
        $region18: #{vae_forward.1} parent=11 // pred_check_branch
          %510 = sbr.rel (%p508) target = $region20
        $region19: #{vae_forward.1} parent=11 // pred_region
          _
        $region20: #{vae_forward.1} parent=11 // pred_fallthru
          _
        // Predicated region
        $region21: #{vae_forward.1} parent=11 // pred_check
          %p511 = pneg %p145
        $region22: #{vae_forward.1} parent=11 // pred_check_branch
          %513 = sbr.rel (%p511) target = $region24
        $region23: #{vae_forward.1} parent=11 // pred_region
          %s515 = ssub.s32 1024, 1024
          %516 = vsyncadd [#allocation5], %s515
          %s517 = sshll.u32 [#allocation4], 4
          %s518 = int_to_ptr.vmem [resolvable:$true] %s517
          %523 = dma.hbm_to_vmem [thread:$0]  %s4, 1024, %s518, [#allocation5], 64, 64, 4
        $region24: #{vae_forward.1} parent=11 // pred_fallthru
          _
        // Predicated region
        $region25: #{vae_forward.1} parent=11 // pred_check
          %p524 = pneg %p166
        $region26: #{vae_forward.1} parent=11 // pred_check_branch
          %526 = sbr.rel (%p524) target = $region28
        $region27: #{vae_forward.1} parent=11 // pred_region
          _
        $region28: #{vae_forward.1} parent=11 // pred_fallthru
          _
        // Predicated region
        $region29: #{vae_forward.1} parent=11 // pred_check
          %p527 = pneg %p187
        $region30: #{vae_forward.1} parent=11 // pred_check_branch
          %529 = sbr.rel (%p527) target = $region32
        $region31: #{vae_forward.1} parent=11 // pred_region
          _
        $region32: #{vae_forward.1} parent=11 // pred_fallthru
          _
        // Predicated region
        $region33: #{vae_forward.1} parent=11 // pred_check
          %p530 = pneg %p208
        $region34: #{vae_forward.1} parent=11 // pred_check_branch
          %532 = sbr.rel (%p530) target = $region36
        $region35: #{vae_forward.1} parent=11 // pred_region
          _
        $region36: #{vae_forward.1} parent=11 // pred_fallthru
          _
        // Predicated region
        $region37: #{vae_forward.1} parent=11 // pred_check
          %p533 = pneg %p229
        $region38: #{vae_forward.1} parent=11 // pred_check_branch
          %535 = sbr.rel (%p533) target = $region40
        $region39: #{vae_forward.1} parent=11 // pred_region
          %s537 = ssub.s32 2048, 2048
          %538 = vsyncadd [#allocation5], %s537
          %s539 = sshll.u32 [#allocation6], 4
          %s540 = int_to_ptr.vmem [resolvable:$true] %s539
          %545 = dma.hbm_to_vmem [thread:$0]  %s8, 2048, %s540, [#allocation5], 128, 128, 8
        $region40: #{vae_forward.1} parent=11 // pred_fallthru
          _
        // Predicated region
        $region41: #{vae_forward.1} parent=11 // pred_check
          %p546 = pneg %p250
        $region42: #{vae_forward.1} parent=11 // pred_check_branch
          %548 = sbr.rel (%p546) target = $region44
        $region43: #{vae_forward.1} parent=11 // pred_region
          _
        $region44: #{vae_forward.1} parent=11 // pred_fallthru
          _
        // Predicated region
        $region45: #{vae_forward.1} parent=11 // pred_check
          %p549 = pneg %p271
        $region46: #{vae_forward.1} parent=11 // pred_check_branch
          %551 = sbr.rel (%p549) target = $region48
        $region47: #{vae_forward.1} parent=11 // pred_region
          %s553 = ssub.s32 1024, 1024
          %554 = vsyncadd [#allocation8], %s553
          %s555 = sshll.u32 [#allocation7], 4
          %s556 = int_to_ptr.vmem [resolvable:$true] %s555
          %561 = dma.hbm_to_vmem [thread:$0]  %s10, 1024, %s556, [#allocation8], 64, 64, 4
        $region48: #{vae_forward.1} parent=11 // pred_fallthru
          _
        // Predicated region
        $region49: #{vae_forward.1} parent=11 // pred_check
          %p562 = pneg %p292
        $region50: #{vae_forward.1} parent=11 // pred_check_branch
          %564 = sbr.rel (%p562) target = $region52
        $region51: #{vae_forward.1} parent=11 // pred_region
          _
        $region52: #{vae_forward.1} parent=11 // pred_fallthru
          _
        // Predicated region
        $region53: #{vae_forward.1} parent=11 // pred_check
          %p565 = pneg %p313
        $region54: #{vae_forward.1} parent=11 // pred_check_branch
          %567 = sbr.rel (%p565) target = $region56
        $region55: #{vae_forward.1} parent=11 // pred_region
          %s569 = ssub.s32 1024, 1024
          %570 = vsyncadd [#allocation8], %s569
          %s571 = sshll.u32 [#allocation9], 4
          %s572 = int_to_ptr.vmem [resolvable:$true] %s571
          %577 = dma.hbm_to_vmem [thread:$0]  %s12, 1024, %s572, [#allocation8], 64, 64, 4
        $region56: #{vae_forward.1} parent=11 // pred_fallthru
          _
        // Predicated region
        $region57: #{vae_forward.1} parent=11 // pred_check
          %p578 = pneg %p334
        $region58: #{vae_forward.1} parent=11 // pred_check_branch
          %580 = sbr.rel (%p578) target = $region60
        $region59: #{vae_forward.1} parent=11 // pred_region
          _
        $region60: #{vae_forward.1} parent=11 // pred_fallthru
          _
        // Predicated region
        $region61: #{vae_forward.1} parent=11 // pred_check
          %p581 = pneg %p355
        $region62: #{vae_forward.1} parent=11 // pred_check_branch
          %583 = sbr.rel (%p581) target = $region64
        $region63: #{vae_forward.1} parent=11 // pred_region
          %s585 = ssub.s32 1024, 1024
          %586 = vsyncadd [#allocation11], %s585
          %s587 = sshll.u32 [#allocation10], 4
          %s588 = int_to_ptr.vmem [resolvable:$true] %s587
          %593 = dma.hbm_to_vmem [thread:$0]  %s14, 1024, %s588, [#allocation11], 64, 64, 4
        $region64: #{vae_forward.1} parent=11 // pred_fallthru
          _
        // Predicated region
        $region65: #{vae_forward.1} parent=11 // pred_check
          %p594 = pneg %p376
        $region66: #{vae_forward.1} parent=11 // pred_check_branch
          %596 = sbr.rel (%p594) target = $region68
        $region67: #{vae_forward.1} parent=11 // pred_region
          _
        $region68: #{vae_forward.1} parent=11 // pred_fallthru
          _
      $region12: #{vae_forward.1} parent=5 // pred_fallthru
        _
      %p597 = scmp.lt.s32.totalorder %s30, 2
      // Predicated region
      $region69: #{vae_forward.1} parent=5 // pred_check
        %p598 = pneg %p597
      $region70: #{vae_forward.1} parent=5 // pred_check_branch
        %600 = sbr.rel (%p598) target = $region72
      $region71: #{vae_forward.1} parent=5 // pred_region
        // Predicated region
        $region73: #{vae_forward.1} parent=71 // pred_check
          %p601 = pneg %p50
        $region74: #{vae_forward.1} parent=71 // pred_check_branch
          %603 = sbr.rel (%p601) target = $region76
        $region75: #{vae_forward.1} parent=71 // pred_region
          %s604 = smul.u32 2, %s30
          %p605 = scmp.lt.s32.totalorder %s604, 3
          %s606 = scalar_select %p605, %s604, 3
          %s607 = smul.addr %s606, 4
          %s608 = scalar_lea.vmem %s0, %s607
          %s609 = smul.u32 2, %s30
        $region76: #{vae_forward.1} parent=71 // pred_fallthru
          _
        // Predicated region
        $region77: #{vae_forward.1} parent=71 // pred_check
          %p610 = pneg %p76
        $region78: #{vae_forward.1} parent=71 // pred_check_branch
          %612 = sbr.rel (%p610) target = $region80
        $region79: #{vae_forward.1} parent=71 // pred_region
          %s613 = smul.u32 2, %s30
          %p614 = scmp.lt.s32.totalorder %s613, 3
          %s615 = scalar_select %p614, %s613, 3
          %s616 = smul.addr %s615, 8
          %s617 = scalar_lea.vmem %s1, %s616
          %s618 = smul.u32 2, %s30
        $region80: #{vae_forward.1} parent=71 // pred_fallthru
          _
      $region72: #{vae_forward.1} parent=5 // pred_fallthru
        _
      %p619 = scmp.le.s32.totalorder 1, %s30
      %p620 = scmp.lt.s32.totalorder %s30, 3
      %p621 = pnand %p619, %p620
      %p622 = pneg %p621
      // Predicated region
      $region81: #{vae_forward.1} parent=5 // pred_check
        _
      $region82: #{vae_forward.1} parent=5 // pred_check_branch
        %624 = sbr.rel (%p621) target = $region84
      $region83: #{vae_forward.1} parent=5 // pred_region
        %s625 = ssub.s32 %s30, 1
        // Predicated region
        $region85: #{vae_forward.1} parent=83 // pred_check
          %p626 = pneg %p103
        $region86: #{vae_forward.1} parent=83 // pred_check_branch
          %628 = sbr.rel (%p626) target = $region88
        $region87: #{vae_forward.1} parent=83 // pred_region
          %629 = dma.done [#allocation3], 1024
        $region88: #{vae_forward.1} parent=83 // pred_fallthru
          _
        // Predicated region
        $region89: #{vae_forward.1} parent=83 // pred_check
          %p630 = pneg %p145
        $region90: #{vae_forward.1} parent=83 // pred_check_branch
          %632 = sbr.rel (%p630) target = $region92
        $region91: #{vae_forward.1} parent=83 // pred_region
          %633 = dma.done [#allocation5], 1024
        $region92: #{vae_forward.1} parent=83 // pred_fallthru
          _
        // Predicated region
        $region93: #{vae_forward.1} parent=83 // pred_check
          %p634 = pneg %p229
        $region94: #{vae_forward.1} parent=83 // pred_check_branch
          %636 = sbr.rel (%p634) target = $region96
        $region95: #{vae_forward.1} parent=83 // pred_region
          %637 = dma.done [#allocation5], 2048
        $region96: #{vae_forward.1} parent=83 // pred_fallthru
          _
        // Predicated region
        $region97: #{vae_forward.1} parent=83 // pred_check
          %p638 = pneg %p271
        $region98: #{vae_forward.1} parent=83 // pred_check_branch
          %640 = sbr.rel (%p638) target = $region100
        $region99: #{vae_forward.1} parent=83 // pred_region
          %641 = dma.done [#allocation8], 1024
        $region100: #{vae_forward.1} parent=83 // pred_fallthru
          _
        // Predicated region
        $region101: #{vae_forward.1} parent=83 // pred_check
          %p642 = pneg %p313
        $region102: #{vae_forward.1} parent=83 // pred_check_branch
          %644 = sbr.rel (%p642) target = $region104
        $region103: #{vae_forward.1} parent=83 // pred_region
          %645 = dma.done [#allocation8], 1024
        $region104: #{vae_forward.1} parent=83 // pred_fallthru
          _
        // Predicated region
        $region105: #{vae_forward.1} parent=83 // pred_check
          %p646 = pneg %p355
        $region106: #{vae_forward.1} parent=83 // pred_check_branch
          %648 = sbr.rel (%p646) target = $region108
        $region107: #{vae_forward.1} parent=83 // pred_region
          %649 = dma.done [#allocation11], 1024
        $region108: #{vae_forward.1} parent=83 // pred_fallthru
          _
        %s650 = smul.u32 2, %s35
        %p651 = scmp.lt.s32.totalorder %s650, 3
        %s652 = scalar_select %p651, %s650, 3
        %s653 = smul.addr %s652, 4
        %s654 = scalar_lea.vmem %s0, %s653
        %p655 = pneg %p56
        %p656 = pneg %p53
        %s657 = smul.u32 2, %s35
        %p658 = scmp.lt.s32.totalorder %s657, 3
        %s659 = scalar_select %p658, %s657, 3
        %s660 = smul.addr %s659, 8
        %s661 = scalar_lea.vmem %s1, %s660
        %p662 = pneg %p82
        %p663 = pneg %p79
        %p664 = pneg %p103
        %p665 = pneg %p100
        %p666 = pneg %p124
        %p667 = pneg %p121
        %p668 = pneg %p145
        %p669 = pneg %p142
        %p670 = pneg %p166
        %p671 = pneg %p163
        %p672 = pneg %p187
        %p673 = pneg %p184
        %p674 = pneg %p208
        %p675 = pneg %p205
        %p676 = pneg %p229
        %p677 = pneg %p226
        %p678 = pneg %p250
        %p679 = pneg %p247
        %p680 = pneg %p271
        %p681 = pneg %p268
        %p682 = pneg %p292
        %p683 = pneg %p289
        %p684 = pneg %p313
        %p685 = pneg %p310
        %p686 = pneg %p334
        %p687 = pneg %p331
        %p688 = pneg %p355
        %p689 = pneg %p352
        %p690 = pneg %p376
        %p691 = pneg %p373
        %p692 = pneg %p402
        %p693 = pneg %p399
        %s694 = smul.u32 2, %s35
        %p695 = scmp.lt.s32.totalorder %s694, 3
        %s696 = scalar_select %p695, %s694, 3
        %s697 = smul.addr %s696, 8
        %s698 = scalar_lea.vmem %s16, %s697
        %p699 = pneg %p428
        %p700 = pneg %p425
        %s701 = smul.u32 2, %s35
        %p702 = scmp.lt.s32.totalorder %s701, 3
        %s703 = scalar_select %p702, %s701, 3
        %s704 = smul.addr %s703, 8
        %s705 = scalar_lea.vmem %s17, %s704
        %p706 = pneg %p454
        %p707 = pneg %p451
        %s708 = smul.u32 2, %s35
        %p709 = scmp.lt.s32.totalorder %s708, 3
        %s710 = scalar_select %p709, %s708, 3
        %s711 = smul.addr %s710, 8
        %s712 = scalar_lea.vmem %s18, %s711
        %p713 = pneg %p480
        %p714 = pneg %p477
        %s715 = smul.u32 2, %s35
        %p716 = scmp.lt.s32.totalorder %s715, 3
        %s717 = scalar_select %p716, %s715, 3
        %s718 = smul.addr %s717, 8
        %s719 = scalar_lea.vmem %s19, %s718
        %s720 = smul.u32 2, %s35
        %p721 = scmp.lt.s32.totalorder %s720, 3
        %s722 = scalar_select %p721, %s720, 3
        %s723 = smul.addr %s722, 4
        %s724 = scalar_lea.vmem %s0, %s723
        %s725 = smul.u32 2, %s35
        %s726 = smul.u32 2, %s35
        %p727 = scmp.lt.s32.totalorder %s726, 3
        %s728 = scalar_select %p727, %s726, 3
        %s729 = smul.addr %s728, 8
        %s730 = scalar_lea.vmem %s1, %s729
        %s731 = smul.u32 2, %s35
        %s732 = smul.u32 2, %s35
        %p733 = scmp.lt.s32.totalorder %s732, 3
        %s734 = scalar_select %p733, %s732, 3
        %s735 = smul.addr %s734, 8
        %s736 = scalar_lea.vmem %s16, %s735
        %s737 = smul.u32 2, %s35
        %s738 = smul.u32 2, %s35
        %p739 = scmp.lt.s32.totalorder %s738, 3
        %s740 = scalar_select %p739, %s738, 3
        %s741 = smul.addr %s740, 8
        %s742 = scalar_lea.vmem %s17, %s741
        %s743 = smul.u32 2, %s35
        %s744 = smul.u32 2, %s35
        %p745 = scmp.lt.s32.totalorder %s744, 3
        %s746 = scalar_select %p745, %s744, 3
        %s747 = smul.addr %s746, 8
        %s748 = scalar_lea.vmem %s18, %s747
        %s749 = smul.u32 2, %s35
        %s750 = smul.u32 2, %s35
        %p751 = scmp.lt.s32.totalorder %s750, 3
        %s752 = scalar_select %p751, %s750, 3
        %s753 = smul.addr %s752, 8
        %s754 = scalar_lea.vmem %s19, %s753
        %s755 = smul.u32 2, %s35
        %v757 = vld [vmem:[%s724] sm:$0xf]
        %v758 = vld [vmem:[%s724 + $0x4] sm:$0xf]
        %v759 = vld [vmem:[#allocation2] sm:$0xf]
        %v760 = vld [vmem:[#allocation2 + $0x4] sm:$0xf]
        %v761 = vld [vmem:[#allocation2 + $0x8] sm:$0xf]
        %v762 = vld [vmem:[#allocation2 + $0xc] sm:$0xf]
        %v763 = vld [vmem:[#allocation2 + $0x10] sm:$0xf]
        %v764 = vld [vmem:[#allocation2 + $0x14] sm:$0xf]
        %v765 = vld [vmem:[#allocation2 + $0x18] sm:$0xf]
        %v766 = vld [vmem:[#allocation2 + $0x1c] sm:$0xf]
        %v767 = vld [vmem:[#allocation2 + $0x20] sm:$0xf]
        %v768 = vld [vmem:[#allocation2 + $0x24] sm:$0xf]
        %v769 = vld [vmem:[#allocation2 + $0x28] sm:$0xf]
        %v770 = vld [vmem:[#allocation2 + $0x2c] sm:$0xf]
        %v771 = vld [vmem:[#allocation2 + $0x30] sm:$0xf]
        %v772 = vld [vmem:[#allocation2 + $0x34] sm:$0xf]
        %v773 = vld [vmem:[#allocation2 + $0x38] sm:$0xf]
        %v774 = vld [vmem:[#allocation2 + $0x3c] sm:$0xf]
        %v775 = vld [vmem:[%s3] sm:$0x1]
        %v777 = vlaneseq
        %v778 = vshrl.u32 %v777, 7
        %v779 = vsub.s32 0, %v778
        %v780 = vrot.slane %v775, %v779
        %v784 = vunpack.c.l.b16 %v757
        %v785 = vunpack.c.l.b16 %v758
        %v786 = vpack.c.b16 %v785, %v784
        %v804 = vunpack.c.l.b16 %v759
        %v805 = vunpack.c.l.b16 %v760
        %v806 = vunpack.c.l.b16 %v761
        %v807 = vunpack.c.l.b16 %v762
        %v808 = vunpack.c.l.b16 %v763
        %v809 = vunpack.c.l.b16 %v764
        %v810 = vunpack.c.l.b16 %v765
        %v811 = vunpack.c.l.b16 %v766
        %v812 = vunpack.c.l.b16 %v767
        %v813 = vunpack.c.l.b16 %v768
        %v814 = vunpack.c.l.b16 %v769
        %v815 = vunpack.c.l.b16 %v770
        %v816 = vunpack.c.l.b16 %v771
        %v817 = vunpack.c.l.b16 %v772
        %v818 = vunpack.c.l.b16 %v773
        %v819 = vunpack.c.l.b16 %v774
        %v820 = vpack.c.b16 %v805, %v804
        %v821 = vpack.c.b16 %v807, %v806
        %v822 = vpack.c.b16 %v809, %v808
        %v823 = vpack.c.b16 %v811, %v810
        %v824 = vpack.c.b16 %v813, %v812
        %v825 = vpack.c.b16 %v815, %v814
        %v826 = vpack.c.b16 %v817, %v816
        %v827 = vpack.c.b16 %v819, %v818
        %836 = vmatprep.subr.bf16.mxu0 0
        %837 = vmatpush1.bf16.msra.mxu0 %v820
        %838 = vmatprep.subr.bf16.mxu0 0
        %839 = vmatpush1.bf16.msra.mxu0 %v821
        %840 = vmatprep.subr.bf16.mxu0 0
        %841 = vmatpush1.bf16.msra.mxu0 %v822
        %842 = vmatprep.subr.bf16.mxu0 0
        %843 = vmatpush1.bf16.msra.mxu0 %v823
        %844 = vmatprep.subr.bf16.mxu0 0
        %845 = vmatpush1.bf16.msra.mxu0 %v824
        %846 = vmatprep.subr.bf16.mxu0 0
        %847 = vmatpush1.bf16.msra.mxu0 %v825
        %848 = vmatprep.subr.bf16.mxu0 0
        %849 = vmatpush1.bf16.msra.mxu0 %v826
        %850 = vmatprep.subr.bf16.mxu0 0
        %851 = vmatpush1.bf16.msra.mxu0 %v827
        %852 = vmatprep.subr.bf16.mxu0 0
        %853 = vmatpush1.bf16.msra.mxu0 0
        %854 = vmatprep.subr.bf16.mxu0 0
        %855 = vmatpush1.bf16.msra.mxu0 0
        %856 = vmatprep.subr.bf16.mxu0 0
        %857 = vmatpush1.bf16.msra.mxu0 0
        %858 = vmatprep.subr.bf16.mxu0 0
        %859 = vmatpush1.bf16.msra.mxu0 0
        %860 = vmatprep.subr.bf16.mxu0 0
        %861 = vmatpush1.bf16.msra.mxu0 0
        %862 = vmatprep.subr.bf16.mxu0 0
        %863 = vmatpush1.bf16.msra.mxu0 0
        %864 = vmatprep.subr.bf16.mxu0 0
        %865 = vmatpush1.bf16.msra.mxu0 0
        %866 = vmatprep.subr.bf16.mxu0 0
        %867 = vmatpush1.bf16.msra.mxu0 0
        %868 = vmatprep.mubr.bf16.mxu0 0
        %869 = vmatmul.mubr.bf16.gmra.mrb[0].mxu0 %v786
        %v870 = vpop.f32.mrb[0].mxu0
        %v871 = vadd.f32 %v780, %v870
        %v872 = vpop.f32.mrb[0].mxu0
        %v873 = vpop.f32.mrb[0].mxu0
        %v874 = vadd.f32 %v780, %v873
        %v875 = vpop.f32.mrb[0].mxu0
        %876 = vdwg.mxu0
        %v877 = vmax.f32 %v871, 0.0
        %v878 = vmax.f32 %v874, 0.0
        %v879 = vpack.c.bf16 %v878, %v877
        %v880 = vld [vmem:[#allocation4] sm:$0xf]
        %v881 = vld [vmem:[#allocation4 + $0x4] sm:$0xf]
        %v882 = vld [vmem:[#allocation4 + $0x8] sm:$0xf]
        %v883 = vld [vmem:[#allocation4 + $0xc] sm:$0xf]
        %v884 = vld [vmem:[#allocation4 + $0x10] sm:$0xf]
        %v885 = vld [vmem:[#allocation4 + $0x14] sm:$0xf]
        %v886 = vld [vmem:[#allocation4 + $0x18] sm:$0xf]
        %v887 = vld [vmem:[#allocation4 + $0x1c] sm:$0xf]
        %v888 = vld [vmem:[#allocation4 + $0x20] sm:$0xf]
        %v889 = vld [vmem:[#allocation4 + $0x24] sm:$0xf]
        %v890 = vld [vmem:[#allocation4 + $0x28] sm:$0xf]
        %v891 = vld [vmem:[#allocation4 + $0x2c] sm:$0xf]
        %v892 = vld [vmem:[#allocation4 + $0x30] sm:$0xf]
        %v893 = vld [vmem:[#allocation4 + $0x34] sm:$0xf]
        %v894 = vld [vmem:[#allocation4 + $0x38] sm:$0xf]
        %v895 = vld [vmem:[#allocation4 + $0x3c] sm:$0xf]
        %v896 = vld [vmem:[%s5] sm:$0x1]
        %v898 = vlaneseq
        %v899 = vshrl.u32 %v898, 7
        %v900 = vsub.s32 0, %v899
        %v901 = vrot.slane %v896, %v900
        %v919 = vunpack.c.l.b16 %v880
        %v920 = vunpack.c.l.b16 %v881
        %v921 = vunpack.c.l.b16 %v882
        %v922 = vunpack.c.l.b16 %v883
        %v923 = vunpack.c.l.b16 %v884
        %v924 = vunpack.c.l.b16 %v885
        %v925 = vunpack.c.l.b16 %v886
        %v926 = vunpack.c.l.b16 %v887
        %v927 = vunpack.c.l.b16 %v888
        %v928 = vunpack.c.l.b16 %v889
        %v929 = vunpack.c.l.b16 %v890
        %v930 = vunpack.c.l.b16 %v891
        %v931 = vunpack.c.l.b16 %v892
        %v932 = vunpack.c.l.b16 %v893
        %v933 = vunpack.c.l.b16 %v894
        %v934 = vunpack.c.l.b16 %v895
        %v935 = vpack.c.b16 %v920, %v919
        %v936 = vpack.c.b16 %v922, %v921
        %v937 = vpack.c.b16 %v924, %v923
        %v938 = vpack.c.b16 %v926, %v925
        %v939 = vpack.c.b16 %v928, %v927
        %v940 = vpack.c.b16 %v930, %v929
        %v941 = vpack.c.b16 %v932, %v931
        %v942 = vpack.c.b16 %v934, %v933
        %951 = vmatprep.subr.bf16.mxu0 0
        %952 = vmatpush1.bf16.msra.mxu0 %v935
        %953 = vmatprep.subr.bf16.mxu0 0
        %954 = vmatpush1.bf16.msra.mxu0 %v936
        %955 = vmatprep.subr.bf16.mxu0 0
        %956 = vmatpush1.bf16.msra.mxu0 %v937
        %957 = vmatprep.subr.bf16.mxu0 0
        %958 = vmatpush1.bf16.msra.mxu0 %v938
        %959 = vmatprep.subr.bf16.mxu0 0
        %960 = vmatpush1.bf16.msra.mxu0 %v939
        %961 = vmatprep.subr.bf16.mxu0 0
        %962 = vmatpush1.bf16.msra.mxu0 %v940
        %963 = vmatprep.subr.bf16.mxu0 0
        %964 = vmatpush1.bf16.msra.mxu0 %v941
        %965 = vmatprep.subr.bf16.mxu0 0
        %966 = vmatpush1.bf16.msra.mxu0 %v942
        %967 = vmatprep.subr.bf16.mxu0 0
        %968 = vmatpush1.bf16.msra.mxu0 0
        %969 = vmatprep.subr.bf16.mxu0 0
        %970 = vmatpush1.bf16.msra.mxu0 0
        %971 = vmatprep.subr.bf16.mxu0 0
        %972 = vmatpush1.bf16.msra.mxu0 0
        %973 = vmatprep.subr.bf16.mxu0 0
        %974 = vmatpush1.bf16.msra.mxu0 0
        %975 = vmatprep.subr.bf16.mxu0 0
        %976 = vmatpush1.bf16.msra.mxu0 0
        %977 = vmatprep.subr.bf16.mxu0 0
        %978 = vmatpush1.bf16.msra.mxu0 0
        %979 = vmatprep.subr.bf16.mxu0 0
        %980 = vmatpush1.bf16.msra.mxu0 0
        %981 = vmatprep.subr.bf16.mxu0 0
        %982 = vmatpush1.bf16.msra.mxu0 0
        %983 = vmatprep.mubr.bf16.mxu0 0
        %984 = vmatmul.mubr.bf16.gmra.mrb[0].mxu0 %v879
        %v985 = vpop.f32.mrb[0].mxu0
        %v986 = vadd.f32 %v901, %v985
        %v987 = vpop.f32.mrb[0].mxu0
        %v988 = vpop.f32.mrb[0].mxu0
        %v989 = vadd.f32 %v901, %v988
        %v990 = vpop.f32.mrb[0].mxu0
        %991 = vdwg.mxu0
        %v992 = vmax.f32 %v986, 0.0
        %v993 = vmax.f32 %v989, 0.0
        %v994 = vpack.c.bf16 %v993, %v992
        %v995 = vld [vmem:[%s6] sm:$0xff]
        %v996 = vld [vmem:[%s6 + $0x8] sm:$0xff]
        %v997 = vld [vmem:[%s6 + $0x10] sm:$0xff]
        %v998 = vld [vmem:[%s6 + $0x18] sm:$0xff]
        %v999 = vld [vmem:[%s6 + $0x20] sm:$0xff]
        %v1000 = vld [vmem:[%s6 + $0x28] sm:$0xff]
        %v1001 = vld [vmem:[%s6 + $0x30] sm:$0xff]
        %v1002 = vld [vmem:[%s6 + $0x38] sm:$0xff]
        %v1003 = vld [vmem:[%s6 + $0x40] sm:$0xff]
        %v1004 = vld [vmem:[%s6 + $0x48] sm:$0xff]
        %v1005 = vld [vmem:[%s6 + $0x50] sm:$0xff]
        %v1006 = vld [vmem:[%s6 + $0x58] sm:$0xff]
        %v1007 = vld [vmem:[%s6 + $0x60] sm:$0xff]
        %v1008 = vld [vmem:[%s6 + $0x68] sm:$0xff]
        %v1009 = vld [vmem:[%s6 + $0x70] sm:$0xff]
        %v1010 = vld [vmem:[%s6 + $0x78] sm:$0xff]
        %v1011 = vld [vmem:[%s7] sm:$0x3]
        %v1013 = vlaneseq
        %v1014 = vshrl.u32 %v1013, 7
        %v1015 = vsub.s32 0, %v1014
        %v1016 = vrot.slane %v1011, %v1015
        %v1017 = vlaneseq
        %v1018 = vshrl.u32 %v1017, 7
        %v1019 = vsub.s32 1, %v1018
        %v1020 = vrot.slane %v1011, %v1019
        %v1039 = vunpack.c.l.b16 %v995
        %v1040 = vunpack.c.h.b16 %v995
        %v1041 = vunpack.c.l.b16 %v996
        %v1042 = vunpack.c.h.b16 %v996
        %v1043 = vunpack.c.l.b16 %v997
        %v1044 = vunpack.c.h.b16 %v997
        %v1045 = vunpack.c.l.b16 %v998
        %v1046 = vunpack.c.h.b16 %v998
        %v1047 = vunpack.c.l.b16 %v999
        %v1048 = vunpack.c.h.b16 %v999
        %v1049 = vunpack.c.l.b16 %v1000
        %v1050 = vunpack.c.h.b16 %v1000
        %v1051 = vunpack.c.l.b16 %v1001
        %v1052 = vunpack.c.h.b16 %v1001
        %v1053 = vunpack.c.l.b16 %v1002
        %v1054 = vunpack.c.h.b16 %v1002
        %v1055 = vunpack.c.l.b16 %v1003
        %v1056 = vunpack.c.h.b16 %v1003
        %v1057 = vunpack.c.l.b16 %v1004
        %v1058 = vunpack.c.h.b16 %v1004
        %v1059 = vunpack.c.l.b16 %v1005
        %v1060 = vunpack.c.h.b16 %v1005
        %v1061 = vunpack.c.l.b16 %v1006
        %v1062 = vunpack.c.h.b16 %v1006
        %v1063 = vunpack.c.l.b16 %v1007
        %v1064 = vunpack.c.h.b16 %v1007
        %v1065 = vunpack.c.l.b16 %v1008
        %v1066 = vunpack.c.h.b16 %v1008
        %v1067 = vunpack.c.l.b16 %v1009
        %v1068 = vunpack.c.h.b16 %v1009
        %v1069 = vunpack.c.l.b16 %v1010
        %v1070 = vunpack.c.h.b16 %v1010
        %v1071 = vpack.c.b16 %v1041, %v1039
        %v1072 = vpack.c.b16 %v1042, %v1040
        %v1073 = vpack.c.b16 %v1045, %v1043
        %v1074 = vpack.c.b16 %v1046, %v1044
        %v1075 = vpack.c.b16 %v1049, %v1047
        %v1076 = vpack.c.b16 %v1050, %v1048
        %v1077 = vpack.c.b16 %v1053, %v1051
        %v1078 = vpack.c.b16 %v1054, %v1052
        %v1079 = vpack.c.b16 %v1057, %v1055
        %v1080 = vpack.c.b16 %v1058, %v1056
        %v1081 = vpack.c.b16 %v1061, %v1059
        %v1082 = vpack.c.b16 %v1062, %v1060
        %v1083 = vpack.c.b16 %v1065, %v1063
        %v1084 = vpack.c.b16 %v1066, %v1064
        %v1085 = vpack.c.b16 %v1069, %v1067
        %v1086 = vpack.c.b16 %v1070, %v1068
        %1103 = vmatprep.subr.bf16.mxu0 %v1072
        %1104 = vmatpush1.bf16.msra.mxu0 %v1071
        %1105 = vmatprep.subr.bf16.mxu0 %v1074
        %1106 = vmatpush1.bf16.msra.mxu0 %v1073
        %1107 = vmatprep.subr.bf16.mxu0 %v1076
        %1108 = vmatpush1.bf16.msra.mxu0 %v1075
        %1109 = vmatprep.subr.bf16.mxu0 %v1078
        %1110 = vmatpush1.bf16.msra.mxu0 %v1077
        %1111 = vmatprep.subr.bf16.mxu0 %v1080
        %1112 = vmatpush1.bf16.msra.mxu0 %v1079
        %1113 = vmatprep.subr.bf16.mxu0 %v1082
        %1114 = vmatpush1.bf16.msra.mxu0 %v1081
        %1115 = vmatprep.subr.bf16.mxu0 %v1084
        %1116 = vmatpush1.bf16.msra.mxu0 %v1083
        %1117 = vmatprep.subr.bf16.mxu0 %v1086
        %1118 = vmatpush1.bf16.msra.mxu0 %v1085
        %1119 = vmatprep.subr.bf16.mxu0 0
        %1120 = vmatpush1.bf16.msra.mxu0 0
        %1121 = vmatprep.subr.bf16.mxu0 0
        %1122 = vmatpush1.bf16.msra.mxu0 0
        %1123 = vmatprep.subr.bf16.mxu0 0
        %1124 = vmatpush1.bf16.msra.mxu0 0
        %1125 = vmatprep.subr.bf16.mxu0 0
        %1126 = vmatpush1.bf16.msra.mxu0 0
        %1127 = vmatprep.subr.bf16.mxu0 0
        %1128 = vmatpush1.bf16.msra.mxu0 0
        %1129 = vmatprep.subr.bf16.mxu0 0
        %1130 = vmatpush1.bf16.msra.mxu0 0
        %1131 = vmatprep.subr.bf16.mxu0 0
        %1132 = vmatpush1.bf16.msra.mxu0 0
        %1133 = vmatprep.subr.bf16.mxu0 0
        %1134 = vmatpush1.bf16.msra.mxu0 0
        %1135 = vmatprep.mubr.bf16.mxu0 0
        %1136 = vmatmul.mubr.bf16.gmra.mrb[0].mxu0 %v994
        %v1137 = vpop.f32.mrb[0].mxu0
        %v1138 = vadd.f32 %v1016, %v1137
        %v1139 = vpop.f32.mrb[0].mxu0
        %v1140 = vadd.f32 %v1020, %v1139
        %v1141 = vpop.f32.mrb[0].mxu0
        %v1142 = vadd.f32 %v1016, %v1141
        %v1143 = vpop.f32.mrb[0].mxu0
        %v1144 = vadd.f32 %v1020, %v1143
        %1145 = vdwg.mxu0
        %v1146 = vld [vmem:[%s730] sm:$0xff]
        %v1147 = vld [vmem:[%s730 + $0x8] sm:$0xff]
        %v1148 = vmul.f32 %v1140, %v1146
        %v1149 = vmul.f32 %v1144, %v1147
        %v1150 = vadd.f32 %v1138, %v1148
        %v1151 = vadd.f32 %v1142, %v1149
        %v1152 = vpack.c.bf16 %v1151, %v1150
        %v1153 = vld [vmem:[#allocation6] sm:$0xff]
        %v1154 = vld [vmem:[#allocation6 + $0x8] sm:$0xff]
        %v1155 = vld [vmem:[#allocation6 + $0x10] sm:$0xff]
        %v1156 = vld [vmem:[#allocation6 + $0x18] sm:$0xff]
        %v1157 = vld [vmem:[#allocation6 + $0x20] sm:$0xff]
        %v1158 = vld [vmem:[#allocation6 + $0x28] sm:$0xff]
        %v1159 = vld [vmem:[#allocation6 + $0x30] sm:$0xff]
        %v1160 = vld [vmem:[#allocation6 + $0x38] sm:$0xff]
        %v1161 = vld [vmem:[#allocation6 + $0x40] sm:$0xff]
        %v1162 = vld [vmem:[#allocation6 + $0x48] sm:$0xff]
        %v1163 = vld [vmem:[#allocation6 + $0x50] sm:$0xff]
        %v1164 = vld [vmem:[#allocation6 + $0x58] sm:$0xff]
        %v1165 = vld [vmem:[#allocation6 + $0x60] sm:$0xff]
        %v1166 = vld [vmem:[#allocation6 + $0x68] sm:$0xff]
        %v1167 = vld [vmem:[#allocation6 + $0x70] sm:$0xff]
        %v1168 = vld [vmem:[#allocation6 + $0x78] sm:$0xff]
        %v1169 = vld [vmem:[%s9] sm:$0x3]
        %v1171 = vlaneseq
        %v1172 = vshrl.u32 %v1171, 7
        %v1173 = vsub.s32 0, %v1172
        %v1174 = vrot.slane %v1169, %v1173
        %v1175 = vlaneseq
        %v1176 = vshrl.u32 %v1175, 7
        %v1177 = vsub.s32 1, %v1176
        %v1178 = vrot.slane %v1169, %v1177
        %v1197 = vunpack.c.l.b16 %v1153
        %v1198 = vunpack.c.h.b16 %v1153
        %v1199 = vunpack.c.l.b16 %v1154
        %v1200 = vunpack.c.h.b16 %v1154
        %v1201 = vunpack.c.l.b16 %v1155
        %v1202 = vunpack.c.h.b16 %v1155
        %v1203 = vunpack.c.l.b16 %v1156
        %v1204 = vunpack.c.h.b16 %v1156
        %v1205 = vunpack.c.l.b16 %v1157
        %v1206 = vunpack.c.h.b16 %v1157
        %v1207 = vunpack.c.l.b16 %v1158
        %v1208 = vunpack.c.h.b16 %v1158
        %v1209 = vunpack.c.l.b16 %v1159
        %v1210 = vunpack.c.h.b16 %v1159
        %v1211 = vunpack.c.l.b16 %v1160
        %v1212 = vunpack.c.h.b16 %v1160
        %v1213 = vunpack.c.l.b16 %v1161
        %v1214 = vunpack.c.h.b16 %v1161
        %v1215 = vunpack.c.l.b16 %v1162
        %v1216 = vunpack.c.h.b16 %v1162
        %v1217 = vunpack.c.l.b16 %v1163
        %v1218 = vunpack.c.h.b16 %v1163
        %v1219 = vunpack.c.l.b16 %v1164
        %v1220 = vunpack.c.h.b16 %v1164
        %v1221 = vunpack.c.l.b16 %v1165
        %v1222 = vunpack.c.h.b16 %v1165
        %v1223 = vunpack.c.l.b16 %v1166
        %v1224 = vunpack.c.h.b16 %v1166
        %v1225 = vunpack.c.l.b16 %v1167
        %v1226 = vunpack.c.h.b16 %v1167
        %v1227 = vunpack.c.l.b16 %v1168
        %v1228 = vunpack.c.h.b16 %v1168
        %v1229 = vpack.c.b16 %v1199, %v1197
        %v1230 = vpack.c.b16 %v1200, %v1198
        %v1231 = vpack.c.b16 %v1203, %v1201
        %v1232 = vpack.c.b16 %v1204, %v1202
        %v1233 = vpack.c.b16 %v1207, %v1205
        %v1234 = vpack.c.b16 %v1208, %v1206
        %v1235 = vpack.c.b16 %v1211, %v1209
        %v1236 = vpack.c.b16 %v1212, %v1210
        %v1237 = vpack.c.b16 %v1215, %v1213
        %v1238 = vpack.c.b16 %v1216, %v1214
        %v1239 = vpack.c.b16 %v1219, %v1217
        %v1240 = vpack.c.b16 %v1220, %v1218
        %v1241 = vpack.c.b16 %v1223, %v1221
        %v1242 = vpack.c.b16 %v1224, %v1222
        %v1243 = vpack.c.b16 %v1227, %v1225
        %v1244 = vpack.c.b16 %v1228, %v1226
        %1261 = vmatprep.subr.bf16.mxu0 %v1230
        %1262 = vmatpush1.bf16.msra.mxu0 %v1229
        %1263 = vmatprep.subr.bf16.mxu0 %v1232
        %1264 = vmatpush1.bf16.msra.mxu0 %v1231
        %1265 = vmatprep.subr.bf16.mxu0 %v1234
        %1266 = vmatpush1.bf16.msra.mxu0 %v1233
        %1267 = vmatprep.subr.bf16.mxu0 %v1236
        %1268 = vmatpush1.bf16.msra.mxu0 %v1235
        %1269 = vmatprep.subr.bf16.mxu0 %v1238
        %1270 = vmatpush1.bf16.msra.mxu0 %v1237
        %1271 = vmatprep.subr.bf16.mxu0 %v1240
        %1272 = vmatpush1.bf16.msra.mxu0 %v1239
        %1273 = vmatprep.subr.bf16.mxu0 %v1242
        %1274 = vmatpush1.bf16.msra.mxu0 %v1241
        %1275 = vmatprep.subr.bf16.mxu0 %v1244
        %1276 = vmatpush1.bf16.msra.mxu0 %v1243
        %1277 = vmatprep.subr.bf16.mxu0 0
        %1278 = vmatpush1.bf16.msra.mxu0 0
        %1279 = vmatprep.subr.bf16.mxu0 0
        %1280 = vmatpush1.bf16.msra.mxu0 0
        %1281 = vmatprep.subr.bf16.mxu0 0
        %1282 = vmatpush1.bf16.msra.mxu0 0
        %1283 = vmatprep.subr.bf16.mxu0 0
        %1284 = vmatpush1.bf16.msra.mxu0 0
        %1285 = vmatprep.subr.bf16.mxu0 0
        %1286 = vmatpush1.bf16.msra.mxu0 0
        %1287 = vmatprep.subr.bf16.mxu0 0
        %1288 = vmatpush1.bf16.msra.mxu0 0
        %1289 = vmatprep.subr.bf16.mxu0 0
        %1290 = vmatpush1.bf16.msra.mxu0 0
        %1291 = vmatprep.subr.bf16.mxu0 0
        %1292 = vmatpush1.bf16.msra.mxu0 0
        %1293 = vmatprep.mubr.bf16.mxu0 0
        %1294 = vmatmul.mubr.bf16.gmra.mrb[0].mxu0 %v1152
        %v1295 = vpop.f32.mrb[0].mxu0
        %v1296 = vadd.f32 %v1174, %v1295
        %v1297 = vpop.f32.mrb[0].mxu0
        %v1298 = vadd.f32 %v1178, %v1297
        %v1299 = vpop.f32.mrb[0].mxu0
        %v1300 = vadd.f32 %v1174, %v1299
        %v1301 = vpop.f32.mrb[0].mxu0
        %v1302 = vadd.f32 %v1178, %v1301
        %1303 = vdwg.mxu0
        %v1304 = vmax.f32 %v1296, 0.0
        %v1305 = vmax.f32 %v1298, 0.0
        %v1306 = vmax.f32 %v1300, 0.0
        %v1307 = vmax.f32 %v1302, 0.0
        %v1308 = vpack.c.bf16 %v1306, %v1304
        %v1309 = vpack.c.bf16 %v1307, %v1305
        %v1310 = vld [vmem:[#allocation7] sm:$0xf]
        %v1311 = vld [vmem:[#allocation7 + $0x4] sm:$0xf]
        %v1312 = vld [vmem:[#allocation7 + $0x8] sm:$0xf]
        %v1313 = vld [vmem:[#allocation7 + $0xc] sm:$0xf]
        %v1314 = vld [vmem:[#allocation7 + $0x10] sm:$0xf]
        %v1315 = vld [vmem:[#allocation7 + $0x14] sm:$0xf]
        %v1316 = vld [vmem:[#allocation7 + $0x18] sm:$0xf]
        %v1317 = vld [vmem:[#allocation7 + $0x1c] sm:$0xf]
        %v1318 = vld [vmem:[#allocation7 + $0x20] sm:$0xf]
        %v1319 = vld [vmem:[#allocation7 + $0x24] sm:$0xf]
        %v1320 = vld [vmem:[#allocation7 + $0x28] sm:$0xf]
        %v1321 = vld [vmem:[#allocation7 + $0x2c] sm:$0xf]
        %v1322 = vld [vmem:[#allocation7 + $0x30] sm:$0xf]
        %v1323 = vld [vmem:[#allocation7 + $0x34] sm:$0xf]
        %v1324 = vld [vmem:[#allocation7 + $0x38] sm:$0xf]
        %v1325 = vld [vmem:[#allocation7 + $0x3c] sm:$0xf]
        %v1326 = vld [vmem:[%s11] sm:$0x1]
        %v1328 = vlaneseq
        %v1329 = vshrl.u32 %v1328, 7
        %v1330 = vsub.s32 0, %v1329
        %v1331 = vrot.slane %v1326, %v1330
        %v1349 = vunpack.c.l.b16 %v1310
        %v1350 = vunpack.c.l.b16 %v1311
        %v1351 = vunpack.c.l.b16 %v1312
        %v1352 = vunpack.c.l.b16 %v1313
        %v1353 = vunpack.c.l.b16 %v1314
        %v1354 = vunpack.c.l.b16 %v1315
        %v1355 = vunpack.c.l.b16 %v1316
        %v1356 = vunpack.c.l.b16 %v1317
        %v1357 = vunpack.c.l.b16 %v1318
        %v1358 = vunpack.c.l.b16 %v1319
        %v1359 = vunpack.c.l.b16 %v1320
        %v1360 = vunpack.c.l.b16 %v1321
        %v1361 = vunpack.c.l.b16 %v1322
        %v1362 = vunpack.c.l.b16 %v1323
        %v1363 = vunpack.c.l.b16 %v1324
        %v1364 = vunpack.c.l.b16 %v1325
        %v1365 = vpack.c.b16 %v1350, %v1349
        %v1366 = vpack.c.b16 %v1352, %v1351
        %v1367 = vpack.c.b16 %v1354, %v1353
        %v1368 = vpack.c.b16 %v1356, %v1355
        %v1369 = vpack.c.b16 %v1358, %v1357
        %v1370 = vpack.c.b16 %v1360, %v1359
        %v1371 = vpack.c.b16 %v1362, %v1361
        %v1372 = vpack.c.b16 %v1364, %v1363
        %1381 = vmatprep.subr.bf16.mxu0 0
        %1382 = vmatpush1.bf16.msra.mxu0 %v1365
        %1383 = vmatprep.subr.bf16.mxu0 0
        %1384 = vmatpush1.bf16.msra.mxu0 %v1366
        %1385 = vmatprep.subr.bf16.mxu0 0
        %1386 = vmatpush1.bf16.msra.mxu0 %v1367
        %1387 = vmatprep.subr.bf16.mxu0 0
        %1388 = vmatpush1.bf16.msra.mxu0 %v1368
        %1389 = vmatprep.subr.bf16.mxu0 0
        %1390 = vmatpush1.bf16.msra.mxu0 %v1369
        %1391 = vmatprep.subr.bf16.mxu0 0
        %1392 = vmatpush1.bf16.msra.mxu0 %v1370
        %1393 = vmatprep.subr.bf16.mxu0 0
        %1394 = vmatpush1.bf16.msra.mxu0 %v1371
        %1395 = vmatprep.subr.bf16.mxu0 0
        %1396 = vmatpush1.bf16.msra.mxu0 %v1372
        %1397 = vmatprep.subr.bf16.mxu0 0
        %1398 = vmatpush1.bf16.msra.mxu0 0
        %1399 = vmatprep.subr.bf16.mxu0 0
        %1400 = vmatpush1.bf16.msra.mxu0 0
        %1401 = vmatprep.subr.bf16.mxu0 0
        %1402 = vmatpush1.bf16.msra.mxu0 0
        %1403 = vmatprep.subr.bf16.mxu0 0
        %1404 = vmatpush1.bf16.msra.mxu0 0
        %1405 = vmatprep.subr.bf16.mxu0 0
        %1406 = vmatpush1.bf16.msra.mxu0 0
        %1407 = vmatprep.subr.bf16.mxu0 0
        %1408 = vmatpush1.bf16.msra.mxu0 0
        %1409 = vmatprep.subr.bf16.mxu0 0
        %1410 = vmatpush1.bf16.msra.mxu0 0
        %1411 = vmatprep.subr.bf16.mxu0 0
        %1412 = vmatpush1.bf16.msra.mxu0 0
        %1413 = vmatprep.mubr.bf16.mxu0 0
        %1414 = vmatmul.mubr.bf16.gmra.mrb[0].mxu0 %v1308
        %v1415 = vpop.f32.mrb[0].mxu0
        %v1416 = vadd.f32 %v1331, %v1415
        %v1417 = vpop.f32.mrb[0].mxu0
        %v1418 = vpop.f32.mrb[0].mxu0
        %v1419 = vadd.f32 %v1331, %v1418
        %v1420 = vpop.f32.mrb[0].mxu0
        %1421 = vdwg.mxu0
        %v1422 = vtanh.pop %v1416
        %v1423 = vtanh.pop %v1419
        %v1424 = vld [vmem:[#allocation9] sm:$0xf]
        %v1425 = vld [vmem:[#allocation9 + $0x4] sm:$0xf]
        %v1426 = vld [vmem:[#allocation9 + $0x8] sm:$0xf]
        %v1427 = vld [vmem:[#allocation9 + $0xc] sm:$0xf]
        %v1428 = vld [vmem:[#allocation9 + $0x10] sm:$0xf]
        %v1429 = vld [vmem:[#allocation9 + $0x14] sm:$0xf]
        %v1430 = vld [vmem:[#allocation9 + $0x18] sm:$0xf]
        %v1431 = vld [vmem:[#allocation9 + $0x1c] sm:$0xf]
        %v1432 = vld [vmem:[#allocation9 + $0x20] sm:$0xf]
        %v1433 = vld [vmem:[#allocation9 + $0x24] sm:$0xf]
        %v1434 = vld [vmem:[#allocation9 + $0x28] sm:$0xf]
        %v1435 = vld [vmem:[#allocation9 + $0x2c] sm:$0xf]
        %v1436 = vld [vmem:[#allocation9 + $0x30] sm:$0xf]
        %v1437 = vld [vmem:[#allocation9 + $0x34] sm:$0xf]
        %v1438 = vld [vmem:[#allocation9 + $0x38] sm:$0xf]
        %v1439 = vld [vmem:[#allocation9 + $0x3c] sm:$0xf]
        %v1440 = vld [vmem:[%s13] sm:$0x1]
        %v1442 = vlaneseq
        %v1443 = vshrl.u32 %v1442, 7
        %v1444 = vsub.s32 0, %v1443
        %v1445 = vrot.slane %v1440, %v1444
        %v1463 = vunpack.c.l.b16 %v1424
        %v1464 = vunpack.c.l.b16 %v1425
        %v1465 = vunpack.c.l.b16 %v1426
        %v1466 = vunpack.c.l.b16 %v1427
        %v1467 = vunpack.c.l.b16 %v1428
        %v1468 = vunpack.c.l.b16 %v1429
        %v1469 = vunpack.c.l.b16 %v1430
        %v1470 = vunpack.c.l.b16 %v1431
        %v1471 = vunpack.c.l.b16 %v1432
        %v1472 = vunpack.c.l.b16 %v1433
        %v1473 = vunpack.c.l.b16 %v1434
        %v1474 = vunpack.c.l.b16 %v1435
        %v1475 = vunpack.c.l.b16 %v1436
        %v1476 = vunpack.c.l.b16 %v1437
        %v1477 = vunpack.c.l.b16 %v1438
        %v1478 = vunpack.c.l.b16 %v1439
        %v1479 = vpack.c.b16 %v1464, %v1463
        %v1480 = vpack.c.b16 %v1466, %v1465
        %v1481 = vpack.c.b16 %v1468, %v1467
        %v1482 = vpack.c.b16 %v1470, %v1469
        %v1483 = vpack.c.b16 %v1472, %v1471
        %v1484 = vpack.c.b16 %v1474, %v1473
        %v1485 = vpack.c.b16 %v1476, %v1475
        %v1486 = vpack.c.b16 %v1478, %v1477
        %1495 = vmatprep.subr.bf16.mxu0 0
        %1496 = vmatpush1.bf16.msra.mxu0 %v1479
        %1497 = vmatprep.subr.bf16.mxu0 0
        %1498 = vmatpush1.bf16.msra.mxu0 %v1480
        %1499 = vmatprep.subr.bf16.mxu0 0
        %1500 = vmatpush1.bf16.msra.mxu0 %v1481
        %1501 = vmatprep.subr.bf16.mxu0 0
        %1502 = vmatpush1.bf16.msra.mxu0 %v1482
        %1503 = vmatprep.subr.bf16.mxu0 0
        %1504 = vmatpush1.bf16.msra.mxu0 %v1483
        %1505 = vmatprep.subr.bf16.mxu0 0
        %1506 = vmatpush1.bf16.msra.mxu0 %v1484
        %1507 = vmatprep.subr.bf16.mxu0 0
        %1508 = vmatpush1.bf16.msra.mxu0 %v1485
        %1509 = vmatprep.subr.bf16.mxu0 0
        %1510 = vmatpush1.bf16.msra.mxu0 %v1486
        %1511 = vmatprep.subr.bf16.mxu0 0
        %1512 = vmatpush1.bf16.msra.mxu0 0
        %1513 = vmatprep.subr.bf16.mxu0 0
        %1514 = vmatpush1.bf16.msra.mxu0 0
        %1515 = vmatprep.subr.bf16.mxu0 0
        %1516 = vmatpush1.bf16.msra.mxu0 0
        %1517 = vmatprep.subr.bf16.mxu0 0
        %1518 = vmatpush1.bf16.msra.mxu0 0
        %1519 = vmatprep.subr.bf16.mxu0 0
        %1520 = vmatpush1.bf16.msra.mxu0 0
        %1521 = vmatprep.subr.bf16.mxu0 0
        %1522 = vmatpush1.bf16.msra.mxu0 0
        %1523 = vmatprep.subr.bf16.mxu0 0
        %1524 = vmatpush1.bf16.msra.mxu0 0
        %1525 = vmatprep.subr.bf16.mxu0 0
        %1526 = vmatpush1.bf16.msra.mxu0 0
        %1527 = vmatprep.mubr.bf16.mxu0 0
        %1528 = vmatmul.mubr.bf16.gmra.mrb[0].mxu0 %v1309
        %v1529 = vpop.f32.mrb[0].mxu0
        %v1530 = vadd.f32 %v1445, %v1529
        %v1531 = vpop.f32.mrb[0].mxu0
        %v1532 = vpop.f32.mrb[0].mxu0
        %v1533 = vadd.f32 %v1445, %v1532
        %v1534 = vpop.f32.mrb[0].mxu0
        %1535 = vdwg.mxu0
        %v1536 = vmax.f32 %v1530, 0.0
        %v1537 = vmax.f32 %v1533, 0.0
        %v1538 = vpack.c.bf16 %v1537, %v1536
        %v1539 = vld [vmem:[#allocation10] sm:$0xf]
        %v1540 = vld [vmem:[#allocation10 + $0x4] sm:$0xf]
        %v1541 = vld [vmem:[#allocation10 + $0x8] sm:$0xf]
        %v1542 = vld [vmem:[#allocation10 + $0xc] sm:$0xf]
        %v1543 = vld [vmem:[#allocation10 + $0x10] sm:$0xf]
        %v1544 = vld [vmem:[#allocation10 + $0x14] sm:$0xf]
        %v1545 = vld [vmem:[#allocation10 + $0x18] sm:$0xf]
        %v1546 = vld [vmem:[#allocation10 + $0x1c] sm:$0xf]
        %v1547 = vld [vmem:[#allocation10 + $0x20] sm:$0xf]
        %v1548 = vld [vmem:[#allocation10 + $0x24] sm:$0xf]
        %v1549 = vld [vmem:[#allocation10 + $0x28] sm:$0xf]
        %v1550 = vld [vmem:[#allocation10 + $0x2c] sm:$0xf]
        %v1551 = vld [vmem:[#allocation10 + $0x30] sm:$0xf]
        %v1552 = vld [vmem:[#allocation10 + $0x34] sm:$0xf]
        %v1553 = vld [vmem:[#allocation10 + $0x38] sm:$0xf]
        %v1554 = vld [vmem:[#allocation10 + $0x3c] sm:$0xf]
        %v1555 = vld [vmem:[%s15] sm:$0x1]
        %v1557 = vlaneseq
        %v1558 = vshrl.u32 %v1557, 7
        %v1559 = vsub.s32 0, %v1558
        %v1560 = vrot.slane %v1555, %v1559
        %v1578 = vunpack.c.l.b16 %v1539
        %v1579 = vunpack.c.l.b16 %v1540
        %v1580 = vunpack.c.l.b16 %v1541
        %v1581 = vunpack.c.l.b16 %v1542
        %v1582 = vunpack.c.l.b16 %v1543
        %v1583 = vunpack.c.l.b16 %v1544
        %v1584 = vunpack.c.l.b16 %v1545
        %v1585 = vunpack.c.l.b16 %v1546
        %v1586 = vunpack.c.l.b16 %v1547
        %v1587 = vunpack.c.l.b16 %v1548
        %v1588 = vunpack.c.l.b16 %v1549
        %v1589 = vunpack.c.l.b16 %v1550
        %v1590 = vunpack.c.l.b16 %v1551
        %v1591 = vunpack.c.l.b16 %v1552
        %v1592 = vunpack.c.l.b16 %v1553
        %v1593 = vunpack.c.l.b16 %v1554
        %v1594 = vpack.c.b16 %v1579, %v1578
        %v1595 = vpack.c.b16 %v1581, %v1580
        %v1596 = vpack.c.b16 %v1583, %v1582
        %v1597 = vpack.c.b16 %v1585, %v1584
        %v1598 = vpack.c.b16 %v1587, %v1586
        %v1599 = vpack.c.b16 %v1589, %v1588
        %v1600 = vpack.c.b16 %v1591, %v1590
        %v1601 = vpack.c.b16 %v1593, %v1592
        %1610 = vmatprep.subr.bf16.mxu0 0
        %1611 = vmatpush1.bf16.msra.mxu0 %v1594
        %1612 = vmatprep.subr.bf16.mxu0 0
        %1613 = vmatpush1.bf16.msra.mxu0 %v1595
        %1614 = vmatprep.subr.bf16.mxu0 0
        %1615 = vmatpush1.bf16.msra.mxu0 %v1596
        %1616 = vmatprep.subr.bf16.mxu0 0
        %1617 = vmatpush1.bf16.msra.mxu0 %v1597
        %1618 = vmatprep.subr.bf16.mxu0 0
        %1619 = vmatpush1.bf16.msra.mxu0 %v1598
        %1620 = vmatprep.subr.bf16.mxu0 0
        %1621 = vmatpush1.bf16.msra.mxu0 %v1599
        %1622 = vmatprep.subr.bf16.mxu0 0
        %1623 = vmatpush1.bf16.msra.mxu0 %v1600
        %1624 = vmatprep.subr.bf16.mxu0 0
        %1625 = vmatpush1.bf16.msra.mxu0 %v1601
        %1626 = vmatprep.subr.bf16.mxu0 0
        %1627 = vmatpush1.bf16.msra.mxu0 0
        %1628 = vmatprep.subr.bf16.mxu0 0
        %1629 = vmatpush1.bf16.msra.mxu0 0
        %1630 = vmatprep.subr.bf16.mxu0 0
        %1631 = vmatpush1.bf16.msra.mxu0 0
        %1632 = vmatprep.subr.bf16.mxu0 0
        %1633 = vmatpush1.bf16.msra.mxu0 0
        %1634 = vmatprep.subr.bf16.mxu0 0
        %1635 = vmatpush1.bf16.msra.mxu0 0
        %1636 = vmatprep.subr.bf16.mxu0 0
        %1637 = vmatpush1.bf16.msra.mxu0 0
        %1638 = vmatprep.subr.bf16.mxu0 0
        %1639 = vmatpush1.bf16.msra.mxu0 0
        %1640 = vmatprep.subr.bf16.mxu0 0
        %1641 = vmatpush1.bf16.msra.mxu0 0
        %1642 = vmatprep.mubr.bf16.mxu0 0
        %1643 = vmatmul.mubr.bf16.gmra.mrb[0].mxu0 %v1538
        %v1644 = vpop.f32.mrb[0].mxu0
        %v1645 = vadd.f32 %v1560, %v1644
        %v1646 = vpop.f32.mrb[0].mxu0
        %v1647 = vpop.f32.mrb[0].mxu0
        %v1648 = vadd.f32 %v1560, %v1647
        %v1649 = vpop.f32.mrb[0].mxu0
        %1650 = vdwg.mxu0
        %1651 = vst [vmem:[%s736] sm:$0xff] %v1422
        %1652 = vst [vmem:[%s736 + $0x8] sm:$0xff] %v1423
        %1653 = vst [vmem:[%s742] sm:$0xff] %v1138
        %1654 = vst [vmem:[%s742 + $0x8] sm:$0xff] %v1142
        %1655 = vst [vmem:[%s748] sm:$0xff] %v1140
        %1656 = vst [vmem:[%s748 + $0x8] sm:$0xff] %v1144
        %1657 = vst [vmem:[%s754] sm:$0xff] %v1645
        %1658 = vst [vmem:[%s754 + $0x8] sm:$0xff] %v1648
        %s1659 = smul.u32 2, %s35
        %p1660 = scmp.lt.s32.totalorder %s1659, 3
        %s1661 = scalar_select %p1660, %s1659, 3
        %s1662 = smul.addr %s1661, 8
        %s1663 = scalar_lea.vmem %s16, %s1662
        %s1664 = smul.u32 2, %s35
        %p1665 = scmp.lt.s32.totalorder %s1664, 3
        %s1666 = scalar_select %p1665, %s1664, 3
        %s1667 = smul.addr %s1666, 8
        %s1668 = scalar_lea.vmem %s17, %s1667
        %s1669 = smul.u32 2, %s35
        %p1670 = scmp.lt.s32.totalorder %s1669, 3
        %s1671 = scalar_select %p1670, %s1669, 3
        %s1672 = smul.addr %s1671, 8
        %s1673 = scalar_lea.vmem %s18, %s1672
        %s1674 = smul.u32 2, %s35
        %p1675 = scmp.lt.s32.totalorder %s1674, 3
        %s1676 = scalar_select %p1675, %s1674, 3
        %s1677 = smul.addr %s1676, 8
        %s1678 = scalar_lea.vmem %s19, %s1677
        // Predicated region
        $region109: #{vae_forward.1} parent=83 // pred_check
          %p1679 = pneg %p399
        $region110: #{vae_forward.1} parent=83 // pred_check_branch
          %1681 = sbr.rel (%p1679) target = $region112
        $region111: #{vae_forward.1} parent=83 // pred_region
          %s1682 = smul.u32 2, %s35
        $region112: #{vae_forward.1} parent=83 // pred_fallthru
          _
        // Predicated region
        $region113: #{vae_forward.1} parent=83 // pred_check
          %p1683 = pneg %p425
        $region114: #{vae_forward.1} parent=83 // pred_check_branch
          %1685 = sbr.rel (%p1683) target = $region116
        $region115: #{vae_forward.1} parent=83 // pred_region
          %s1686 = smul.u32 2, %s35
        $region116: #{vae_forward.1} parent=83 // pred_fallthru
          _
        // Predicated region
        $region117: #{vae_forward.1} parent=83 // pred_check
          %p1687 = pneg %p451
        $region118: #{vae_forward.1} parent=83 // pred_check_branch
          %1689 = sbr.rel (%p1687) target = $region120
        $region119: #{vae_forward.1} parent=83 // pred_region
          %s1690 = smul.u32 2, %s35
        $region120: #{vae_forward.1} parent=83 // pred_fallthru
          _
        // Predicated region
        $region121: #{vae_forward.1} parent=83 // pred_check
          %p1691 = pneg %p477
        $region122: #{vae_forward.1} parent=83 // pred_check_branch
          %1693 = sbr.rel (%p1691) target = $region124
        $region123: #{vae_forward.1} parent=83 // pred_region
          %s1694 = smul.u32 2, %s35
        $region124: #{vae_forward.1} parent=83 // pred_fallthru
          _
      $region84: #{vae_forward.1} parent=5 // pred_fallthru
        _
      %p1695 = scmp.le.s32.totalorder 2, %s30
      // Predicated region
      $region125: #{vae_forward.1} parent=5 // pred_check
        %p1696 = pneg %p1695
      $region126: #{vae_forward.1} parent=5 // pred_check_branch
        %1698 = sbr.rel (%p1696) target = $region128
      $region127: #{vae_forward.1} parent=5 // pred_region
        %s1699 = ssub.s32 %s30, 2
        // Predicated region
        $region129: #{vae_forward.1} parent=127 // pred_check
          %p1700 = pneg %p405
        $region130: #{vae_forward.1} parent=127 // pred_check_branch
          %1702 = sbr.rel (%p1700) target = $region132
        $region131: #{vae_forward.1} parent=127 // pred_region
          %s1703 = smul.u32 2, %s36
          %p1704 = scmp.lt.s32.totalorder %s1703, 3
          %s1705 = scalar_select %p1704, %s1703, 3
          %s1706 = smul.addr %s1705, 8
          %s1707 = scalar_lea.vmem %s16, %s1706
        $region132: #{vae_forward.1} parent=127 // pred_fallthru
          _
        // Predicated region
        $region133: #{vae_forward.1} parent=127 // pred_check
          %p1708 = pneg %p431
        $region134: #{vae_forward.1} parent=127 // pred_check_branch
          %1710 = sbr.rel (%p1708) target = $region136
        $region135: #{vae_forward.1} parent=127 // pred_region
          %s1711 = smul.u32 2, %s36
          %p1712 = scmp.lt.s32.totalorder %s1711, 3
          %s1713 = scalar_select %p1712, %s1711, 3
          %s1714 = smul.addr %s1713, 8
          %s1715 = scalar_lea.vmem %s17, %s1714
        $region136: #{vae_forward.1} parent=127 // pred_fallthru
          _
        // Predicated region
        $region137: #{vae_forward.1} parent=127 // pred_check
          %p1716 = pneg %p457
        $region138: #{vae_forward.1} parent=127 // pred_check_branch
          %1718 = sbr.rel (%p1716) target = $region140
        $region139: #{vae_forward.1} parent=127 // pred_region
          %s1719 = smul.u32 2, %s36
          %p1720 = scmp.lt.s32.totalorder %s1719, 3
          %s1721 = scalar_select %p1720, %s1719, 3
          %s1722 = smul.addr %s1721, 8
          %s1723 = scalar_lea.vmem %s18, %s1722
        $region140: #{vae_forward.1} parent=127 // pred_fallthru
          _
        // Predicated region
        $region141: #{vae_forward.1} parent=127 // pred_check
          %p1724 = pneg %p483
        $region142: #{vae_forward.1} parent=127 // pred_check_branch
          %1726 = sbr.rel (%p1724) target = $region144
        $region143: #{vae_forward.1} parent=127 // pred_region
          %s1727 = smul.u32 2, %s36
          %p1728 = scmp.lt.s32.totalorder %s1727, 3
          %s1729 = scalar_select %p1728, %s1727, 3
          %s1730 = smul.addr %s1729, 8
          %s1731 = scalar_lea.vmem %s19, %s1730
        $region144: #{vae_forward.1} parent=127 // pred_fallthru
          _
      $region128: #{vae_forward.1} parent=5 // pred_fallthru
        _
    $region6: #{vae_forward.1} parent=1 // loop_footer
      %s34 = sadd.s32 1, %s30
    $region7: #{vae_forward.1} parent=1 // loop_footer_branch
      %29 = sbr.rel target = $region3
    $region8: #{vae_forward.1} parent=1 // loop_exit
      _
    %1732 = vsyncpa [#allocation3], 1
    %s1733 = scalar_lea.sflag [#allocation3], 1
    %1734 = vsyncpa %s1733, 1
    %1735 = vsyncpa [#allocation5], 1
    %1736 = vsyncpa [#allocation8], 1
    %1737 = vsyncpa [#allocation11], 1

// kernel: vae_forward.1
$region0: #{vae_forward.1}
  #allocation0 [shape = 'u32[]', space=smem, size = 0x4, offset = 0x4, fixed_abs, tag = 'smem constant byte address 0x4 - core index']
  #allocation1 [shape = 'u32[144,128]{1,0:T(1,128)}', space=vmem, size = 0x12000, scoped, tag = 'internal scratch']
  %s0 = inlined_call_operand.vmem [shape: bf16[32,128], index: 0, kind: input, shape index: {}]
  %s1 = inlined_call_operand.vmem [shape: f32[32,128], index: 1, kind: input, shape index: {}]
  %s2 = inlined_call_operand.hbm [shape: bf16[128,128], index: 2, kind: input, shape index: {}]
  %s3 = inlined_call_operand.vmem [shape: f32[1,128], index: 3, kind: input, shape index: {}]
  %s4 = inlined_call_operand.hbm [shape: bf16[128,128], index: 4, kind: input, shape index: {}]
  %s5 = inlined_call_operand.vmem [shape: f32[1,128], index: 5, kind: input, shape index: {}]
  %s6 = inlined_call_operand.vmem [shape: bf16[128,256], index: 6, kind: input, shape index: {}]
  %s7 = inlined_call_operand.vmem [shape: f32[1,256], index: 7, kind: input, shape index: {}]
  %s8 = inlined_call_operand.hbm [shape: bf16[128,256], index: 8, kind: input, shape index: {}]
  %s9 = inlined_call_operand.vmem [shape: f32[1,256], index: 9, kind: input, shape index: {}]
  %s10 = inlined_call_operand.hbm [shape: bf16[128,128], index: 10, kind: input, shape index: {}]
  %s11 = inlined_call_operand.vmem [shape: f32[1,128], index: 11, kind: input, shape index: {}]
  %s12 = inlined_call_operand.hbm [shape: bf16[128,128], index: 12, kind: input, shape index: {}]
  %s13 = inlined_call_operand.vmem [shape: f32[1,128], index: 13, kind: input, shape index: {}]
  %s14 = inlined_call_operand.hbm [shape: bf16[128,128], index: 14, kind: input, shape index: {}]
  %s15 = inlined_call_operand.vmem [shape: f32[1,128], index: 15, kind: input, shape index: {}]
  %s16 = inlined_call_operand.vmem [shape: f32[32,128], index: 16, kind: output, shape index: {0}]
  %s17 = inlined_call_operand.vmem [shape: f32[32,128], index: 17, kind: output, shape index: {1}]
  %s18 = inlined_call_operand.vmem [shape: f32[32,128], index: 18, kind: output, shape index: {2}]
  %s19 = inlined_call_operand.vmem [shape: f32[32,128], index: 19, kind: output, shape index: {3}]
  %20 = xla_tuple %s16, %s17, %s18, %s19
  %s21 = sld [smem:[#allocation0]]
  $region145: #{vae_forward.1} parent=0
    _
  %s23 = ssub.s32 1, %s21
  %s24 = scalar_select 0, %s23, %s21
  $region1: #{vae_forward.1} parent=0
    #allocation2 [shape = 'u8[32768]{0}', space=vmem, size = 0x8000, scoped, tag = 'input window, operand 2, single buffered']
    #allocation3 [shape = 's32[2]{0}', space=sflag, size = 0x8, scoped, tag = 'scoped memory for vae_forward.1']
    #allocation4 [shape = 'u8[32768]{0}', space=vmem, size = 0x8000, scoped, tag = 'input window, operand 4, single buffered']
    #allocation5 [shape = 's32[1]{0}', space=sflag, size = 0x4, scoped, tag = 'scoped memory for vae_forward.1']
    #allocation6 [shape = 'u8[65536]{0}', space=vmem, size = 0x10000, scoped, tag = 'input window, operand 8, single buffered']
    #allocation7 [shape = 'u8[32768]{0}', space=vmem, size = 0x8000, scoped, tag = 'input window, operand 10, single buffered']
    #allocation8 [shape = 's32[1]{0}', space=sflag, size = 0x4, scoped, tag = 'scoped memory for vae_forward.1']
    #allocation9 [shape = 'u8[32768]{0}', space=vmem, size = 0x8000, scoped, tag = 'input window, operand 12, single buffered']
    #allocation10 [shape = 'u8[32768]{0}', space=vmem, size = 0x8000, scoped, tag = 'input window, operand 14, single buffered']
    #allocation11 [shape = 's32[1]{0}', space=sflag, size = 0x4, scoped, tag = 'scoped memory for vae_forward.1']
    %25 = vsyncpa [#allocation3], 0
    %26 = vsyncpa [#allocation5], 0
    %27 = vsyncpa [#allocation8], 0
    %28 = vsyncpa [#allocation11], 0
    loop: start=0, step=1, limit=4
    $region2: #{vae_forward.1} parent=1 // loop_pre_header
      _
    $region3: #{vae_forward.1} parent=1 // loop_header
      %s30 = sphi 0, %s34
      %p31 = scmp.ge.s32.totalorder %s30, 4
      %s40 = sphi 0, %s42
      %s43 = sphi 0, %s40
      %s44 = sphi 0, %s43
      %s60 = sphi 0, %s44
      %s66 = sphi 0, %s68
      %s69 = sphi 0, %s66
      %s70 = sphi 0, %s69
      %s86 = sphi 0, %s70
      %s90 = sphi 0, %s90
      %s92 = sphi 0, %s90
      %s93 = sphi 0, %s92
      %s107 = sphi 0, %s93
      %s111 = sphi 0, %s111
      %s113 = sphi 0, %s111
      %s114 = sphi 0, %s113
      %s128 = sphi 0, %s114
      %s132 = sphi 0, %s132
      %s134 = sphi 0, %s132
      %s135 = sphi 0, %s134
      %s149 = sphi 0, %s135
      %s153 = sphi 0, %s153
      %s155 = sphi 0, %s153
      %s156 = sphi 0, %s155
      %s170 = sphi 0, %s156
      %s174 = sphi 0, %s174
      %s176 = sphi 0, %s174
      %s177 = sphi 0, %s176
      %s191 = sphi 0, %s177
      %s195 = sphi 0, %s195
      %s197 = sphi 0, %s195
      %s198 = sphi 0, %s197
      %s212 = sphi 0, %s198
      %s216 = sphi 0, %s216
      %s218 = sphi 0, %s216
      %s219 = sphi 0, %s218
      %s233 = sphi 0, %s219
      %s237 = sphi 0, %s237
      %s239 = sphi 0, %s237
      %s240 = sphi 0, %s239
      %s254 = sphi 0, %s240
      %s258 = sphi 0, %s258
      %s260 = sphi 0, %s258
      %s261 = sphi 0, %s260
      %s275 = sphi 0, %s261
      %s279 = sphi 0, %s279
      %s281 = sphi 0, %s279
      %s282 = sphi 0, %s281
      %s296 = sphi 0, %s282
      %s300 = sphi 0, %s300
      %s302 = sphi 0, %s300
      %s303 = sphi 0, %s302
      %s317 = sphi 0, %s303
      %s321 = sphi 0, %s321
      %s323 = sphi 0, %s321
      %s324 = sphi 0, %s323
      %s338 = sphi 0, %s324
      %s342 = sphi 0, %s342
      %s344 = sphi 0, %s342
      %s345 = sphi 0, %s344
      %s359 = sphi 0, %s345
      %s363 = sphi 0, %s363
      %s365 = sphi 0, %s363
      %s366 = sphi 0, %s365
      %s380 = sphi 0, %s366
      %s386 = sphi 0, %s388
      %s389 = sphi 0, %s386
      %s390 = sphi 0, %s389
      %s406 = sphi 0, %s390
      %s412 = sphi 0, %s414
      %s415 = sphi 0, %s412
      %s416 = sphi 0, %s415
      %s432 = sphi 0, %s416
      %s438 = sphi 0, %s440
      %s441 = sphi 0, %s438
      %s442 = sphi 0, %s441
      %s458 = sphi 0, %s442
      %s464 = sphi 0, %s466
      %s467 = sphi 0, %s464
      %s468 = sphi 0, %s467
      %s484 = sphi 0, %s468
    $region4: #{vae_forward.1} parent=1 // loop_header_branch
      %33 = sbr.rel (%p31) target = $region8
    $region5: #{vae_forward.1} parent=1 // loop_body
      %s35 = ssub.s32 %s30, 1
      %s36 = ssub.s32 %s30, 2
      %s37 = sadd.s32 %s30, 1
      %s38 = ssub.s32 %s30, %s37
      %p39 = scmp.eq.s32.totalorder %s38, 0
      %s41 = sadd.s32 %s40, 1
      %s42 = scalar_select %p39, %s40, %s41
      %p45 = pneg %p39
      %p46 = scmp.eq.s32.totalorder %s30, 1
      %p47 = por %p45, %p46
      %p48 = scmp.ne.s32.totalorder %s40, %s43
      %p49 = scmp.eq.s32.totalorder %s30, 0
      %p50 = por %p48, %p49
      %p51 = scmp.ne.s32.totalorder %s40, %s43
      %p52 = scmp.eq.s32.totalorder %s35, 1
      %p53 = por %p51, %p52
      %p54 = scmp.ne.s32.totalorder %s43, %s44
      %p55 = scmp.eq.s32.totalorder %s35, 0
      %p56 = por %p54, %p55
      %p57 = scmp.ne.s32.totalorder %s43, %s44
      %p58 = scmp.eq.s32.totalorder %s36, 1
      %p59 = por %p57, %p58
      %p61 = scmp.ne.s32.totalorder %s44, %s60
      %p62 = scmp.eq.s32.totalorder %s36, 0
      %p63 = por %p61, %p62
      %s64 = ssub.s32 %s30, %s37
      %p65 = scmp.eq.s32.totalorder %s64, 0
      %s67 = sadd.s32 %s66, 1
      %s68 = scalar_select %p65, %s66, %s67
      %p71 = pneg %p65
      %p72 = scmp.eq.s32.totalorder %s30, 1
      %p73 = por %p71, %p72
      %p74 = scmp.ne.s32.totalorder %s66, %s69
      %p75 = scmp.eq.s32.totalorder %s30, 0
      %p76 = por %p74, %p75
      %p77 = scmp.ne.s32.totalorder %s66, %s69
      %p78 = scmp.eq.s32.totalorder %s35, 1
      %p79 = por %p77, %p78
      %p80 = scmp.ne.s32.totalorder %s69, %s70
      %p81 = scmp.eq.s32.totalorder %s35, 0
      %p82 = por %p80, %p81
      %p83 = scmp.ne.s32.totalorder %s69, %s70
      %p84 = scmp.eq.s32.totalorder %s36, 1
      %p85 = por %p83, %p84
      %p87 = scmp.ne.s32.totalorder %s70, %s86
      %p88 = scmp.eq.s32.totalorder %s36, 0
      %p89 = por %p87, %p88
      %s91 = sadd.s32 %s90, 1
      %p94 = scmp.eq.s32.totalorder %s30, 1
      %p95 = scmp.ne.s32.totalorder %s90, %s92
      %p96 = scmp.eq.s32.totalorder %s30, 0
      %p97 = por %p95, %p96
      %p98 = scmp.ne.s32.totalorder %s90, %s92
      %p99 = scmp.eq.s32.totalorder %s35, 1
      %p100 = por %p98, %p99
      %p101 = scmp.ne.s32.totalorder %s92, %s93
      %p102 = scmp.eq.s32.totalorder %s35, 0
      %p103 = por %p101, %p102
      %p104 = scmp.ne.s32.totalorder %s92, %s93
      %p105 = scmp.eq.s32.totalorder %s36, 1
      %p106 = por %p104, %p105
      %p108 = scmp.ne.s32.totalorder %s93, %s107
      %p109 = scmp.eq.s32.totalorder %s36, 0
      %p110 = por %p108, %p109
      %s112 = sadd.s32 %s111, 1
      %p115 = scmp.eq.s32.totalorder %s30, 1
      %p116 = scmp.ne.s32.totalorder %s111, %s113
      %p117 = scmp.eq.s32.totalorder %s30, 0
      %p118 = por %p116, %p117
      %p119 = scmp.ne.s32.totalorder %s111, %s113
      %p120 = scmp.eq.s32.totalorder %s35, 1
      %p121 = por %p119, %p120
      %p122 = scmp.ne.s32.totalorder %s113, %s114
      %p123 = scmp.eq.s32.totalorder %s35, 0
      %p124 = por %p122, %p123
      %p125 = scmp.ne.s32.totalorder %s113, %s114
      %p126 = scmp.eq.s32.totalorder %s36, 1
      %p127 = por %p125, %p126
      %p129 = scmp.ne.s32.totalorder %s114, %s128
      %p130 = scmp.eq.s32.totalorder %s36, 0
      %p131 = por %p129, %p130
      %s133 = sadd.s32 %s132, 1
      %p136 = scmp.eq.s32.totalorder %s30, 1
      %p137 = scmp.ne.s32.totalorder %s132, %s134
      %p138 = scmp.eq.s32.totalorder %s30, 0
      %p139 = por %p137, %p138
      %p140 = scmp.ne.s32.totalorder %s132, %s134
      %p141 = scmp.eq.s32.totalorder %s35, 1
      %p142 = por %p140, %p141
      %p143 = scmp.ne.s32.totalorder %s134, %s135
      %p144 = scmp.eq.s32.totalorder %s35, 0
      %p145 = por %p143, %p144
      %p146 = scmp.ne.s32.totalorder %s134, %s135
      %p147 = scmp.eq.s32.totalorder %s36, 1
      %p148 = por %p146, %p147
      %p150 = scmp.ne.s32.totalorder %s135, %s149
      %p151 = scmp.eq.s32.totalorder %s36, 0
      %p152 = por %p150, %p151
      %s154 = sadd.s32 %s153, 1
      %p157 = scmp.eq.s32.totalorder %s30, 1
      %p158 = scmp.ne.s32.totalorder %s153, %s155
      %p159 = scmp.eq.s32.totalorder %s30, 0
      %p160 = por %p158, %p159
      %p161 = scmp.ne.s32.totalorder %s153, %s155
      %p162 = scmp.eq.s32.totalorder %s35, 1
      %p163 = por %p161, %p162
      %p164 = scmp.ne.s32.totalorder %s155, %s156
      %p165 = scmp.eq.s32.totalorder %s35, 0
      %p166 = por %p164, %p165
      %p167 = scmp.ne.s32.totalorder %s155, %s156
      %p168 = scmp.eq.s32.totalorder %s36, 1
      %p169 = por %p167, %p168
      %p171 = scmp.ne.s32.totalorder %s156, %s170
      %p172 = scmp.eq.s32.totalorder %s36, 0
      %p173 = por %p171, %p172
      %s175 = sadd.s32 %s174, 1
      %p178 = scmp.eq.s32.totalorder %s30, 1
      %p179 = scmp.ne.s32.totalorder %s174, %s176
      %p180 = scmp.eq.s32.totalorder %s30, 0
      %p181 = por %p179, %p180
      %p182 = scmp.ne.s32.totalorder %s174, %s176
      %p183 = scmp.eq.s32.totalorder %s35, 1
      %p184 = por %p182, %p183
      %p185 = scmp.ne.s32.totalorder %s176, %s177
      %p186 = scmp.eq.s32.totalorder %s35, 0
      %p187 = por %p185, %p186
      %p188 = scmp.ne.s32.totalorder %s176, %s177
      %p189 = scmp.eq.s32.totalorder %s36, 1
      %p190 = por %p188, %p189
      %p192 = scmp.ne.s32.totalorder %s177, %s191
      %p193 = scmp.eq.s32.totalorder %s36, 0
      %p194 = por %p192, %p193
      %s196 = sadd.s32 %s195, 1
      %p199 = scmp.eq.s32.totalorder %s30, 1
      %p200 = scmp.ne.s32.totalorder %s195, %s197
      %p201 = scmp.eq.s32.totalorder %s30, 0
      %p202 = por %p200, %p201
      %p203 = scmp.ne.s32.totalorder %s195, %s197
      %p204 = scmp.eq.s32.totalorder %s35, 1
      %p205 = por %p203, %p204
      %p206 = scmp.ne.s32.totalorder %s197, %s198
      %p207 = scmp.eq.s32.totalorder %s35, 0
      %p208 = por %p206, %p207
      %p209 = scmp.ne.s32.totalorder %s197, %s198
      %p210 = scmp.eq.s32.totalorder %s36, 1
      %p211 = por %p209, %p210
      %p213 = scmp.ne.s32.totalorder %s198, %s212
      %p214 = scmp.eq.s32.totalorder %s36, 0
      %p215 = por %p213, %p214
      %s217 = sadd.s32 %s216, 1
      %p220 = scmp.eq.s32.totalorder %s30, 1
      %p221 = scmp.ne.s32.totalorder %s216, %s218
      %p222 = scmp.eq.s32.totalorder %s30, 0
      %p223 = por %p221, %p222
      %p224 = scmp.ne.s32.totalorder %s216, %s218
      %p225 = scmp.eq.s32.totalorder %s35, 1
      %p226 = por %p224, %p225
      %p227 = scmp.ne.s32.totalorder %s218, %s219
      %p228 = scmp.eq.s32.totalorder %s35, 0
      %p229 = por %p227, %p228
      %p230 = scmp.ne.s32.totalorder %s218, %s219
      %p231 = scmp.eq.s32.totalorder %s36, 1
      %p232 = por %p230, %p231
      %p234 = scmp.ne.s32.totalorder %s219, %s233
      %p235 = scmp.eq.s32.totalorder %s36, 0
      %p236 = por %p234, %p235
      %s238 = sadd.s32 %s237, 1
      %p241 = scmp.eq.s32.totalorder %s30, 1
      %p242 = scmp.ne.s32.totalorder %s237, %s239
      %p243 = scmp.eq.s32.totalorder %s30, 0
      %p244 = por %p242, %p243
      %p245 = scmp.ne.s32.totalorder %s237, %s239
      %p246 = scmp.eq.s32.totalorder %s35, 1
      %p247 = por %p245, %p246
      %p248 = scmp.ne.s32.totalorder %s239, %s240
      %p249 = scmp.eq.s32.totalorder %s35, 0
      %p250 = por %p248, %p249
      %p251 = scmp.ne.s32.totalorder %s239, %s240
      %p252 = scmp.eq.s32.totalorder %s36, 1
      %p253 = por %p251, %p252
      %p255 = scmp.ne.s32.totalorder %s240, %s254
      %p256 = scmp.eq.s32.totalorder %s36, 0
      %p257 = por %p255, %p256
      %s259 = sadd.s32 %s258, 1
      %p262 = scmp.eq.s32.totalorder %s30, 1
      %p263 = scmp.ne.s32.totalorder %s258, %s260
      %p264 = scmp.eq.s32.totalorder %s30, 0
      %p265 = por %p263, %p264
      %p266 = scmp.ne.s32.totalorder %s258, %s260
      %p267 = scmp.eq.s32.totalorder %s35, 1
      %p268 = por %p266, %p267
      %p269 = scmp.ne.s32.totalorder %s260, %s261
      %p270 = scmp.eq.s32.totalorder %s35, 0
      %p271 = por %p269, %p270
      %p272 = scmp.ne.s32.totalorder %s260, %s261
      %p273 = scmp.eq.s32.totalorder %s36, 1
      %p274 = por %p272, %p273
      %p276 = scmp.ne.s32.totalorder %s261, %s275
      %p277 = scmp.eq.s32.totalorder %s36, 0
      %p278 = por %p276, %p277
      %s280 = sadd.s32 %s279, 1
      %p283 = scmp.eq.s32.totalorder %s30, 1
      %p284 = scmp.ne.s32.totalorder %s279, %s281
      %p285 = scmp.eq.s32.totalorder %s30, 0
      %p286 = por %p284, %p285
      %p287 = scmp.ne.s32.totalorder %s279, %s281
      %p288 = scmp.eq.s32.totalorder %s35, 1
      %p289 = por %p287, %p288
      %p290 = scmp.ne.s32.totalorder %s281, %s282
      %p291 = scmp.eq.s32.totalorder %s35, 0
      %p292 = por %p290, %p291
      %p293 = scmp.ne.s32.totalorder %s281, %s282
      %p294 = scmp.eq.s32.totalorder %s36, 1
      %p295 = por %p293, %p294
      %p297 = scmp.ne.s32.totalorder %s282, %s296
      %p298 = scmp.eq.s32.totalorder %s36, 0
      %p299 = por %p297, %p298
      %s301 = sadd.s32 %s300, 1
      %p304 = scmp.eq.s32.totalorder %s30, 1
      %p305 = scmp.ne.s32.totalorder %s300, %s302
      %p306 = scmp.eq.s32.totalorder %s30, 0
      %p307 = por %p305, %p306
      %p308 = scmp.ne.s32.totalorder %s300, %s302
      %p309 = scmp.eq.s32.totalorder %s35, 1
      %p310 = por %p308, %p309
      %p311 = scmp.ne.s32.totalorder %s302, %s303
      %p312 = scmp.eq.s32.totalorder %s35, 0
      %p313 = por %p311, %p312
      %p314 = scmp.ne.s32.totalorder %s302, %s303
      %p315 = scmp.eq.s32.totalorder %s36, 1
      %p316 = por %p314, %p315
      %p318 = scmp.ne.s32.totalorder %s303, %s317
      %p319 = scmp.eq.s32.totalorder %s36, 0
      %p320 = por %p318, %p319
      %s322 = sadd.s32 %s321, 1
      %p325 = scmp.eq.s32.totalorder %s30, 1
      %p326 = scmp.ne.s32.totalorder %s321, %s323
      %p327 = scmp.eq.s32.totalorder %s30, 0
      %p328 = por %p326, %p327
      %p329 = scmp.ne.s32.totalorder %s321, %s323
      %p330 = scmp.eq.s32.totalorder %s35, 1
      %p331 = por %p329, %p330
      %p332 = scmp.ne.s32.totalorder %s323, %s324
      %p333 = scmp.eq.s32.totalorder %s35, 0
      %p334 = por %p332, %p333
      %p335 = scmp.ne.s32.totalorder %s323, %s324
      %p336 = scmp.eq.s32.totalorder %s36, 1
      %p337 = por %p335, %p336
      %p339 = scmp.ne.s32.totalorder %s324, %s338
      %p340 = scmp.eq.s32.totalorder %s36, 0
      %p341 = por %p339, %p340
      %s343 = sadd.s32 %s342, 1
      %p346 = scmp.eq.s32.totalorder %s30, 1
      %p347 = scmp.ne.s32.totalorder %s342, %s344
      %p348 = scmp.eq.s32.totalorder %s30, 0
      %p349 = por %p347, %p348
      %p350 = scmp.ne.s32.totalorder %s342, %s344
      %p351 = scmp.eq.s32.totalorder %s35, 1
      %p352 = por %p350, %p351
      %p353 = scmp.ne.s32.totalorder %s344, %s345
      %p354 = scmp.eq.s32.totalorder %s35, 0
      %p355 = por %p353, %p354
      %p356 = scmp.ne.s32.totalorder %s344, %s345
      %p357 = scmp.eq.s32.totalorder %s36, 1
      %p358 = por %p356, %p357
      %p360 = scmp.ne.s32.totalorder %s345, %s359
      %p361 = scmp.eq.s32.totalorder %s36, 0
      %p362 = por %p360, %p361
      %s364 = sadd.s32 %s363, 1
      %p367 = scmp.eq.s32.totalorder %s30, 1
      %p368 = scmp.ne.s32.totalorder %s363, %s365
      %p369 = scmp.eq.s32.totalorder %s30, 0
      %p370 = por %p368, %p369
      %p371 = scmp.ne.s32.totalorder %s363, %s365
      %p372 = scmp.eq.s32.totalorder %s35, 1
      %p373 = por %p371, %p372
      %p374 = scmp.ne.s32.totalorder %s365, %s366
      %p375 = scmp.eq.s32.totalorder %s35, 0
      %p376 = por %p374, %p375
      %p377 = scmp.ne.s32.totalorder %s365, %s366
      %p378 = scmp.eq.s32.totalorder %s36, 1
      %p379 = por %p377, %p378
      %p381 = scmp.ne.s32.totalorder %s366, %s380
      %p382 = scmp.eq.s32.totalorder %s36, 0
      %p383 = por %p381, %p382
      %s384 = ssub.s32 %s30, %s37
      %p385 = scmp.eq.s32.totalorder %s384, 0
      %s387 = sadd.s32 %s386, 1
      %s388 = scalar_select %p385, %s386, %s387
      %p391 = pneg %p385
      %p392 = scmp.eq.s32.totalorder %s30, 1
      %p393 = por %p391, %p392
      %p394 = scmp.ne.s32.totalorder %s386, %s389
      %p395 = scmp.eq.s32.totalorder %s30, 0
      %p396 = por %p394, %p395
      %p397 = scmp.ne.s32.totalorder %s386, %s389
      %p398 = scmp.eq.s32.totalorder %s35, 1
      %p399 = por %p397, %p398
      %p400 = scmp.ne.s32.totalorder %s389, %s390
      %p401 = scmp.eq.s32.totalorder %s35, 0
      %p402 = por %p400, %p401
      %p403 = scmp.ne.s32.totalorder %s389, %s390
      %p404 = scmp.eq.s32.totalorder %s36, 1
      %p405 = por %p403, %p404
      %p407 = scmp.ne.s32.totalorder %s390, %s406
      %p408 = scmp.eq.s32.totalorder %s36, 0
      %p409 = por %p407, %p408
      %s410 = ssub.s32 %s30, %s37
      %p411 = scmp.eq.s32.totalorder %s410, 0
      %s413 = sadd.s32 %s412, 1
      %s414 = scalar_select %p411, %s412, %s413
      %p417 = pneg %p411
      %p418 = scmp.eq.s32.totalorder %s30, 1
      %p419 = por %p417, %p418
      %p420 = scmp.ne.s32.totalorder %s412, %s415
      %p421 = scmp.eq.s32.totalorder %s30, 0
      %p422 = por %p420, %p421
      %p423 = scmp.ne.s32.totalorder %s412, %s415
      %p424 = scmp.eq.s32.totalorder %s35, 1
      %p425 = por %p423, %p424
      %p426 = scmp.ne.s32.totalorder %s415, %s416
      %p427 = scmp.eq.s32.totalorder %s35, 0
      %p428 = por %p426, %p427
      %p429 = scmp.ne.s32.totalorder %s415, %s416
      %p430 = scmp.eq.s32.totalorder %s36, 1
      %p431 = por %p429, %p430
      %p433 = scmp.ne.s32.totalorder %s416, %s432
      %p434 = scmp.eq.s32.totalorder %s36, 0
      %p435 = por %p433, %p434
      %s436 = ssub.s32 %s30, %s37
      %p437 = scmp.eq.s32.totalorder %s436, 0
      %s439 = sadd.s32 %s438, 1
      %s440 = scalar_select %p437, %s438, %s439
      %p443 = pneg %p437
      %p444 = scmp.eq.s32.totalorder %s30, 1
      %p445 = por %p443, %p444
      %p446 = scmp.ne.s32.totalorder %s438, %s441
      %p447 = scmp.eq.s32.totalorder %s30, 0
      %p448 = por %p446, %p447
      %p449 = scmp.ne.s32.totalorder %s438, %s441
      %p450 = scmp.eq.s32.totalorder %s35, 1
      %p451 = por %p449, %p450
      %p452 = scmp.ne.s32.totalorder %s441, %s442
      %p453 = scmp.eq.s32.totalorder %s35, 0
      %p454 = por %p452, %p453
      %p455 = scmp.ne.s32.totalorder %s441, %s442
      %p456 = scmp.eq.s32.totalorder %s36, 1
      %p457 = por %p455, %p456
      %p459 = scmp.ne.s32.totalorder %s442, %s458
      %p460 = scmp.eq.s32.totalorder %s36, 0
      %p461 = por %p459, %p460
      %s462 = ssub.s32 %s30, %s37
      %p463 = scmp.eq.s32.totalorder %s462, 0
      %s465 = sadd.s32 %s464, 1
      %s466 = scalar_select %p463, %s464, %s465
      %p469 = pneg %p463
      %p470 = scmp.eq.s32.totalorder %s30, 1
      %p471 = por %p469, %p470
      %p472 = scmp.ne.s32.totalorder %s464, %s467
      %p473 = scmp.eq.s32.totalorder %s30, 0
      %p474 = por %p472, %p473
      %p475 = scmp.ne.s32.totalorder %s464, %s467
      %p476 = scmp.eq.s32.totalorder %s35, 1
      %p477 = por %p475, %p476
      %p478 = scmp.ne.s32.totalorder %s467, %s468
      %p479 = scmp.eq.s32.totalorder %s35, 0
      %p480 = por %p478, %p479
      %p481 = scmp.ne.s32.totalorder %s467, %s468
      %p482 = scmp.eq.s32.totalorder %s36, 1
      %p483 = por %p481, %p482
      %p485 = scmp.ne.s32.totalorder %s468, %s484
      %p486 = scmp.eq.s32.totalorder %s36, 0
      %p487 = por %p485, %p486
      %p488 = scmp.le.s32.totalorder 1, %s30
      %p489 = scmp.lt.s32.totalorder %s30, 3
      %p490 = pnand %p488, %p489
      %p491 = pneg %p490
      // Predicated region
      $region9: #{vae_forward.1} parent=5 // pred_check
        _
      $region10: #{vae_forward.1} parent=5 // pred_check_branch
        %493 = sbr.rel (%p490) target = $region12
      $region11: #{vae_forward.1} parent=5 // pred_region
        %s494 = ssub.s32 %s30, 1
        // Predicated region
        $region13: #{vae_forward.1} parent=11 // pred_check
          %p495 = pneg %p103
        $region14: #{vae_forward.1} parent=11 // pred_check_branch
          %497 = sbr.rel (%p495) target = $region16
        $region15: #{vae_forward.1} parent=11 // pred_region
          %s499 = ssub.s32 1024, 1024
          %500 = vsyncadd [#allocation3], %s499
          %s501 = sshll.u32 [#allocation2], 4
          %s502 = int_to_ptr.vmem [resolvable:$true] %s501
          %507 = dma.hbm_to_vmem [thread:$0]  %s2, 1024, %s502, [#allocation3], 64, 64, 4
        $region16: #{vae_forward.1} parent=11 // pred_fallthru
          _
        // Predicated region
        $region17: #{vae_forward.1} parent=11 // pred_check
          %p508 = pneg %p124
        $region18: #{vae_forward.1} parent=11 // pred_check_branch
          %510 = sbr.rel (%p508) target = $region20
        $region19: #{vae_forward.1} parent=11 // pred_region
          _
        $region20: #{vae_forward.1} parent=11 // pred_fallthru
          _
        // Predicated region
        $region21: #{vae_forward.1} parent=11 // pred_check
          %p511 = pneg %p145
        $region22: #{vae_forward.1} parent=11 // pred_check_branch
          %513 = sbr.rel (%p511) target = $region24
        $region23: #{vae_forward.1} parent=11 // pred_region
          %s515 = ssub.s32 1024, 1024
          %516 = vsyncadd [#allocation5], %s515
          %s517 = sshll.u32 [#allocation4], 4
          %s518 = int_to_ptr.vmem [resolvable:$true] %s517
          %523 = dma.hbm_to_vmem [thread:$0]  %s4, 1024, %s518, [#allocation5], 64, 64, 4
        $region24: #{vae_forward.1} parent=11 // pred_fallthru
          _
        // Predicated region
        $region25: #{vae_forward.1} parent=11 // pred_check
          %p524 = pneg %p166
        $region26: #{vae_forward.1} parent=11 // pred_check_branch
          %526 = sbr.rel (%p524) target = $region28
        $region27: #{vae_forward.1} parent=11 // pred_region
          _
        $region28: #{vae_forward.1} parent=11 // pred_fallthru
          _
        // Predicated region
        $region29: #{vae_forward.1} parent=11 // pred_check
          %p527 = pneg %p187
        $region30: #{vae_forward.1} parent=11 // pred_check_branch
          %529 = sbr.rel (%p527) target = $region32
        $region31: #{vae_forward.1} parent=11 // pred_region
          _
        $region32: #{vae_forward.1} parent=11 // pred_fallthru
          _
        // Predicated region
        $region33: #{vae_forward.1} parent=11 // pred_check
          %p530 = pneg %p208
        $region34: #{vae_forward.1} parent=11 // pred_check_branch
          %532 = sbr.rel (%p530) target = $region36
        $region35: #{vae_forward.1} parent=11 // pred_region
          _
        $region36: #{vae_forward.1} parent=11 // pred_fallthru
          _
        // Predicated region
        $region37: #{vae_forward.1} parent=11 // pred_check
          %p533 = pneg %p229
        $region38: #{vae_forward.1} parent=11 // pred_check_branch
          %535 = sbr.rel (%p533) target = $region40
        $region39: #{vae_forward.1} parent=11 // pred_region
          %s537 = ssub.s32 2048, 2048
          %538 = vsyncadd [#allocation5], %s537
          %s539 = sshll.u32 [#allocation6], 4
          %s540 = int_to_ptr.vmem [resolvable:$true] %s539
          %545 = dma.hbm_to_vmem [thread:$0]  %s8, 2048, %s540, [#allocation5], 128, 128, 8
        $region40: #{vae_forward.1} parent=11 // pred_fallthru
          _
        // Predicated region
        $region41: #{vae_forward.1} parent=11 // pred_check
          %p546 = pneg %p250
        $region42: #{vae_forward.1} parent=11 // pred_check_branch
          %548 = sbr.rel (%p546) target = $region44
        $region43: #{vae_forward.1} parent=11 // pred_region
          _
        $region44: #{vae_forward.1} parent=11 // pred_fallthru
          _
        // Predicated region
        $region45: #{vae_forward.1} parent=11 // pred_check
          %p549 = pneg %p271
        $region46: #{vae_forward.1} parent=11 // pred_check_branch
          %551 = sbr.rel (%p549) target = $region48
        $region47: #{vae_forward.1} parent=11 // pred_region
          %s553 = ssub.s32 1024, 1024
          %554 = vsyncadd [#allocation8], %s553
          %s555 = sshll.u32 [#allocation7], 4
          %s556 = int_to_ptr.vmem [resolvable:$true] %s555
          %561 = dma.hbm_to_vmem [thread:$0]  %s10, 1024, %s556, [#allocation8], 64, 64, 4
        $region48: #{vae_forward.1} parent=11 // pred_fallthru
          _
        // Predicated region
        $region49: #{vae_forward.1} parent=11 // pred_check
          %p562 = pneg %p292
        $region50: #{vae_forward.1} parent=11 // pred_check_branch
          %564 = sbr.rel (%p562) target = $region52
        $region51: #{vae_forward.1} parent=11 // pred_region
          _
        $region52: #{vae_forward.1} parent=11 // pred_fallthru
          _
        // Predicated region
        $region53: #{vae_forward.1} parent=11 // pred_check
          %p565 = pneg %p313
        $region54: #{vae_forward.1} parent=11 // pred_check_branch
          %567 = sbr.rel (%p565) target = $region56
        $region55: #{vae_forward.1} parent=11 // pred_region
          %s569 = ssub.s32 1024, 1024
          %570 = vsyncadd [#allocation8], %s569
          %s571 = sshll.u32 [#allocation9], 4
          %s572 = int_to_ptr.vmem [resolvable:$true] %s571
          %577 = dma.hbm_to_vmem [thread:$0]  %s12, 1024, %s572, [#allocation8], 64, 64, 4
        $region56: #{vae_forward.1} parent=11 // pred_fallthru
          _
        // Predicated region
        $region57: #{vae_forward.1} parent=11 // pred_check
          %p578 = pneg %p334
        $region58: #{vae_forward.1} parent=11 // pred_check_branch
          %580 = sbr.rel (%p578) target = $region60
        $region59: #{vae_forward.1} parent=11 // pred_region
          _
        $region60: #{vae_forward.1} parent=11 // pred_fallthru
          _
        // Predicated region
        $region61: #{vae_forward.1} parent=11 // pred_check
          %p581 = pneg %p355
        $region62: #{vae_forward.1} parent=11 // pred_check_branch
          %583 = sbr.rel (%p581) target = $region64
        $region63: #{vae_forward.1} parent=11 // pred_region
          %s585 = ssub.s32 1024, 1024
          %586 = vsyncadd [#allocation11], %s585
          %s587 = sshll.u32 [#allocation10], 4
          %s588 = int_to_ptr.vmem [resolvable:$true] %s587
          %593 = dma.hbm_to_vmem [thread:$0]  %s14, 1024, %s588, [#allocation11], 64, 64, 4
        $region64: #{vae_forward.1} parent=11 // pred_fallthru
          _
        // Predicated region
        $region65: #{vae_forward.1} parent=11 // pred_check
          %p594 = pneg %p376
        $region66: #{vae_forward.1} parent=11 // pred_check_branch
          %596 = sbr.rel (%p594) target = $region68
        $region67: #{vae_forward.1} parent=11 // pred_region
          _
        $region68: #{vae_forward.1} parent=11 // pred_fallthru
          _
      $region12: #{vae_forward.1} parent=5 // pred_fallthru
        _
      %p597 = scmp.lt.s32.totalorder %s30, 2
      // Predicated region
      $region69: #{vae_forward.1} parent=5 // pred_check
        %p598 = pneg %p597
      $region70: #{vae_forward.1} parent=5 // pred_check_branch
        %600 = sbr.rel (%p598) target = $region72
      $region71: #{vae_forward.1} parent=5 // pred_region
        // Predicated region
        $region73: #{vae_forward.1} parent=71 // pred_check
          %p601 = pneg %p50
        $region74: #{vae_forward.1} parent=71 // pred_check_branch
          %603 = sbr.rel (%p601) target = $region76
        $region75: #{vae_forward.1} parent=71 // pred_region
          %s604 = smul.u32 2, %s30
          %p605 = scmp.lt.s32.totalorder %s604, 3
          %s606 = scalar_select %p605, %s604, 3
          %s607 = smul.addr %s606, 4
          %s608 = scalar_lea.vmem %s0, %s607
          %s609 = smul.u32 2, %s30
        $region76: #{vae_forward.1} parent=71 // pred_fallthru
          _
        // Predicated region
        $region77: #{vae_forward.1} parent=71 // pred_check
          %p610 = pneg %p76
        $region78: #{vae_forward.1} parent=71 // pred_check_branch
          %612 = sbr.rel (%p610) target = $region80
        $region79: #{vae_forward.1} parent=71 // pred_region
          %s613 = smul.u32 2, %s30
          %p614 = scmp.lt.s32.totalorder %s613, 3
          %s615 = scalar_select %p614, %s613, 3
          %s616 = smul.addr %s615, 8
          %s617 = scalar_lea.vmem %s1, %s616
          %s618 = smul.u32 2, %s30
        $region80: #{vae_forward.1} parent=71 // pred_fallthru
          _
      $region72: #{vae_forward.1} parent=5 // pred_fallthru
        _
      %p619 = scmp.le.s32.totalorder 1, %s30
      %p620 = scmp.lt.s32.totalorder %s30, 3
      %p621 = pnand %p619, %p620
      %p622 = pneg %p621
      // Predicated region
      $region81: #{vae_forward.1} parent=5 // pred_check
        _
      $region82: #{vae_forward.1} parent=5 // pred_check_branch
        %624 = sbr.rel (%p621) target = $region84
      $region83: #{vae_forward.1} parent=5 // pred_region
        %s625 = ssub.s32 %s30, 1
        // Predicated region
        $region85: #{vae_forward.1} parent=83 // pred_check
          %p626 = pneg %p103
        $region86: #{vae_forward.1} parent=83 // pred_check_branch
          %628 = sbr.rel (%p626) target = $region88
        $region87: #{vae_forward.1} parent=83 // pred_region
          %629 = dma.done [#allocation3], 1024
        $region88: #{vae_forward.1} parent=83 // pred_fallthru
          _
        // Predicated region
        $region89: #{vae_forward.1} parent=83 // pred_check
          %p630 = pneg %p145
        $region90: #{vae_forward.1} parent=83 // pred_check_branch
          %632 = sbr.rel (%p630) target = $region92
        $region91: #{vae_forward.1} parent=83 // pred_region
          %633 = dma.done [#allocation5], 1024
        $region92: #{vae_forward.1} parent=83 // pred_fallthru
          _
        // Predicated region
        $region93: #{vae_forward.1} parent=83 // pred_check
          %p634 = pneg %p229
        $region94: #{vae_forward.1} parent=83 // pred_check_branch
          %636 = sbr.rel (%p634) target = $region96
        $region95: #{vae_forward.1} parent=83 // pred_region
          %637 = dma.done [#allocation5], 2048
        $region96: #{vae_forward.1} parent=83 // pred_fallthru
          _
        // Predicated region
        $region97: #{vae_forward.1} parent=83 // pred_check
          %p638 = pneg %p271
        $region98: #{vae_forward.1} parent=83 // pred_check_branch
          %640 = sbr.rel (%p638) target = $region100
        $region99: #{vae_forward.1} parent=83 // pred_region
          %641 = dma.done [#allocation8], 1024
        $region100: #{vae_forward.1} parent=83 // pred_fallthru
          _
        // Predicated region
        $region101: #{vae_forward.1} parent=83 // pred_check
          %p642 = pneg %p313
        $region102: #{vae_forward.1} parent=83 // pred_check_branch
          %644 = sbr.rel (%p642) target = $region104
        $region103: #{vae_forward.1} parent=83 // pred_region
          %645 = dma.done [#allocation8], 1024
        $region104: #{vae_forward.1} parent=83 // pred_fallthru
          _
        // Predicated region
        $region105: #{vae_forward.1} parent=83 // pred_check
          %p646 = pneg %p355
        $region106: #{vae_forward.1} parent=83 // pred_check_branch
          %648 = sbr.rel (%p646) target = $region108
        $region107: #{vae_forward.1} parent=83 // pred_region
          %649 = dma.done [#allocation11], 1024
        $region108: #{vae_forward.1} parent=83 // pred_fallthru
          _
        %s650 = smul.u32 2, %s35
        %p651 = scmp.lt.s32.totalorder %s650, 3
        %s652 = scalar_select %p651, %s650, 3
        %s653 = smul.addr %s652, 4
        %s654 = scalar_lea.vmem %s0, %s653
        %p655 = pneg %p56
        %p656 = pneg %p53
        %s657 = smul.u32 2, %s35
        %p658 = scmp.lt.s32.totalorder %s657, 3
        %s659 = scalar_select %p658, %s657, 3
        %s660 = smul.addr %s659, 8
        %s661 = scalar_lea.vmem %s1, %s660
        %p662 = pneg %p82
        %p663 = pneg %p79
        %p664 = pneg %p103
        %p665 = pneg %p100
        %p666 = pneg %p124
        %p667 = pneg %p121
        %p668 = pneg %p145
        %p669 = pneg %p142
        %p670 = pneg %p166
        %p671 = pneg %p163
        %p672 = pneg %p187
        %p673 = pneg %p184
        %p674 = pneg %p208
        %p675 = pneg %p205
        %p676 = pneg %p229
        %p677 = pneg %p226
        %p678 = pneg %p250
        %p679 = pneg %p247
        %p680 = pneg %p271
        %p681 = pneg %p268
        %p682 = pneg %p292
        %p683 = pneg %p289
        %p684 = pneg %p313
        %p685 = pneg %p310
        %p686 = pneg %p334
        %p687 = pneg %p331
        %p688 = pneg %p355
        %p689 = pneg %p352
        %p690 = pneg %p376
        %p691 = pneg %p373
        %p692 = pneg %p402
        %p693 = pneg %p399
        %s694 = smul.u32 2, %s35
        %p695 = scmp.lt.s32.totalorder %s694, 3
        %s696 = scalar_select %p695, %s694, 3
        %s697 = smul.addr %s696, 8
        %s698 = scalar_lea.vmem %s16, %s697
        %p699 = pneg %p428
        %p700 = pneg %p425
        %s701 = smul.u32 2, %s35
        %p702 = scmp.lt.s32.totalorder %s701, 3
        %s703 = scalar_select %p702, %s701, 3
        %s704 = smul.addr %s703, 8
        %s705 = scalar_lea.vmem %s17, %s704
        %p706 = pneg %p454
        %p707 = pneg %p451
        %s708 = smul.u32 2, %s35
        %p709 = scmp.lt.s32.totalorder %s708, 3
        %s710 = scalar_select %p709, %s708, 3
        %s711 = smul.addr %s710, 8
        %s712 = scalar_lea.vmem %s18, %s711
        %p713 = pneg %p480
        %p714 = pneg %p477
        %s715 = smul.u32 2, %s35
        %p716 = scmp.lt.s32.totalorder %s715, 3
        %s717 = scalar_select %p716, %s715, 3
        %s718 = smul.addr %s717, 8
        %s719 = scalar_lea.vmem %s19, %s718
        %s720 = smul.u32 2, %s35
        %p721 = scmp.lt.s32.totalorder %s720, 3
        %s722 = scalar_select %p721, %s720, 3
        %s723 = smul.addr %s722, 4
        %s724 = scalar_lea.vmem %s0, %s723
        %s725 = smul.u32 2, %s35
        %s726 = smul.u32 2, %s35
        %p727 = scmp.lt.s32.totalorder %s726, 3
        %s728 = scalar_select %p727, %s726, 3
        %s729 = smul.addr %s728, 8
        %s730 = scalar_lea.vmem %s1, %s729
        %s731 = smul.u32 2, %s35
        %s732 = smul.u32 2, %s35
        %p733 = scmp.lt.s32.totalorder %s732, 3
        %s734 = scalar_select %p733, %s732, 3
        %s735 = smul.addr %s734, 8
        %s736 = scalar_lea.vmem %s16, %s735
        %s737 = smul.u32 2, %s35
        %s738 = smul.u32 2, %s35
        %p739 = scmp.lt.s32.totalorder %s738, 3
        %s740 = scalar_select %p739, %s738, 3
        %s741 = smul.addr %s740, 8
        %s742 = scalar_lea.vmem %s17, %s741
        %s743 = smul.u32 2, %s35
        %s744 = smul.u32 2, %s35
        %p745 = scmp.lt.s32.totalorder %s744, 3
        %s746 = scalar_select %p745, %s744, 3
        %s747 = smul.addr %s746, 8
        %s748 = scalar_lea.vmem %s18, %s747
        %s749 = smul.u32 2, %s35
        %s750 = smul.u32 2, %s35
        %p751 = scmp.lt.s32.totalorder %s750, 3
        %s752 = scalar_select %p751, %s750, 3
        %s753 = smul.addr %s752, 8
        %s754 = scalar_lea.vmem %s19, %s753
        %s755 = smul.u32 2, %s35
        %v757 = vld [vmem:[%s724] sm:$0xf]
        %v758 = vld [vmem:[%s724 + $0x4] sm:$0xf]
        %v759 = vld [vmem:[#allocation2] sm:$0xf]
        %v760 = vld [vmem:[#allocation2 + $0x4] sm:$0xf]
        %v761 = vld [vmem:[#allocation2 + $0x8] sm:$0xf]
        %v762 = vld [vmem:[#allocation2 + $0xc] sm:$0xf]
        %v763 = vld [vmem:[#allocation2 + $0x10] sm:$0xf]
        %v764 = vld [vmem:[#allocation2 + $0x14] sm:$0xf]
        %v765 = vld [vmem:[#allocation2 + $0x18] sm:$0xf]
        %v766 = vld [vmem:[#allocation2 + $0x1c] sm:$0xf]
        %v767 = vld [vmem:[#allocation2 + $0x20] sm:$0xf]
        %v768 = vld [vmem:[#allocation2 + $0x24] sm:$0xf]
        %v769 = vld [vmem:[#allocation2 + $0x28] sm:$0xf]
        %v770 = vld [vmem:[#allocation2 + $0x2c] sm:$0xf]
        %v771 = vld [vmem:[#allocation2 + $0x30] sm:$0xf]
        %v772 = vld [vmem:[#allocation2 + $0x34] sm:$0xf]
        %v773 = vld [vmem:[#allocation2 + $0x38] sm:$0xf]
        %v774 = vld [vmem:[#allocation2 + $0x3c] sm:$0xf]
        %v775 = vld [vmem:[%s3] sm:$0x1]
        %v777 = vlaneseq
        %v778 = vshrl.u32 %v777, 7
        %v779 = vsub.s32 0, %v778
        %v780 = vrot.slane %v775, %v779
        %v784 = vunpack.c.l.b16 %v757
        %v785 = vunpack.c.l.b16 %v758
        %v786 = vpack.c.b16 %v785, %v784
        %v804 = vunpack.c.l.b16 %v759
        %v805 = vunpack.c.l.b16 %v760
        %v806 = vunpack.c.l.b16 %v761
        %v807 = vunpack.c.l.b16 %v762
        %v808 = vunpack.c.l.b16 %v763
        %v809 = vunpack.c.l.b16 %v764
        %v810 = vunpack.c.l.b16 %v765
        %v811 = vunpack.c.l.b16 %v766
        %v812 = vunpack.c.l.b16 %v767
        %v813 = vunpack.c.l.b16 %v768
        %v814 = vunpack.c.l.b16 %v769
        %v815 = vunpack.c.l.b16 %v770
        %v816 = vunpack.c.l.b16 %v771
        %v817 = vunpack.c.l.b16 %v772
        %v818 = vunpack.c.l.b16 %v773
        %v819 = vunpack.c.l.b16 %v774
        %v820 = vpack.c.b16 %v805, %v804
        %v821 = vpack.c.b16 %v807, %v806
        %v822 = vpack.c.b16 %v809, %v808
        %v823 = vpack.c.b16 %v811, %v810
        %v824 = vpack.c.b16 %v813, %v812
        %v825 = vpack.c.b16 %v815, %v814
        %v826 = vpack.c.b16 %v817, %v816
        %v827 = vpack.c.b16 %v819, %v818
        %836 = vmatprep.subr.bf16.mxu0 0
        %837 = vmatpush1.bf16.msra.mxu0 %v820
        %838 = vmatprep.subr.bf16.mxu0 0
        %839 = vmatpush1.bf16.msra.mxu0 %v821
        %840 = vmatprep.subr.bf16.mxu0 0
        %841 = vmatpush1.bf16.msra.mxu0 %v822
        %842 = vmatprep.subr.bf16.mxu0 0
        %843 = vmatpush1.bf16.msra.mxu0 %v823
        %844 = vmatprep.subr.bf16.mxu0 0
        %845 = vmatpush1.bf16.msra.mxu0 %v824
        %846 = vmatprep.subr.bf16.mxu0 0
        %847 = vmatpush1.bf16.msra.mxu0 %v825
        %848 = vmatprep.subr.bf16.mxu0 0
        %849 = vmatpush1.bf16.msra.mxu0 %v826
        %850 = vmatprep.subr.bf16.mxu0 0
        %851 = vmatpush1.bf16.msra.mxu0 %v827
        %852 = vmatprep.subr.bf16.mxu0 0
        %853 = vmatpush1.bf16.msra.mxu0 0
        %854 = vmatprep.subr.bf16.mxu0 0
        %855 = vmatpush1.bf16.msra.mxu0 0
        %856 = vmatprep.subr.bf16.mxu0 0
        %857 = vmatpush1.bf16.msra.mxu0 0
        %858 = vmatprep.subr.bf16.mxu0 0
        %859 = vmatpush1.bf16.msra.mxu0 0
        %860 = vmatprep.subr.bf16.mxu0 0
        %861 = vmatpush1.bf16.msra.mxu0 0
        %862 = vmatprep.subr.bf16.mxu0 0
        %863 = vmatpush1.bf16.msra.mxu0 0
        %864 = vmatprep.subr.bf16.mxu0 0
        %865 = vmatpush1.bf16.msra.mxu0 0
        %866 = vmatprep.subr.bf16.mxu0 0
        %867 = vmatpush1.bf16.msra.mxu0 0
        %868 = vmatprep.mubr.bf16.mxu0 0
        %869 = vmatmul.mubr.bf16.gmra.mrb[0].mxu0 %v786
        %v870 = vpop.f32.mrb[0].mxu0
        %v871 = vadd.f32 %v780, %v870
        %v872 = vpop.f32.mrb[0].mxu0
        %v873 = vpop.f32.mrb[0].mxu0
        %v874 = vadd.f32 %v780, %v873
        %v875 = vpop.f32.mrb[0].mxu0
        %876 = vdwg.mxu0
        %v877 = vmax.f32 %v871, 0.0
        %v878 = vmax.f32 %v874, 0.0
        %v879 = vpack.c.bf16 %v878, %v877
        %v880 = vld [vmem:[#allocation4] sm:$0xf]
        %v881 = vld [vmem:[#allocation4 + $0x4] sm:$0xf]
        %v882 = vld [vmem:[#allocation4 + $0x8] sm:$0xf]
        %v883 = vld [vmem:[#allocation4 + $0xc] sm:$0xf]
        %v884 = vld [vmem:[#allocation4 + $0x10] sm:$0xf]
        %v885 = vld [vmem:[#allocation4 + $0x14] sm:$0xf]
        %v886 = vld [vmem:[#allocation4 + $0x18] sm:$0xf]
        %v887 = vld [vmem:[#allocation4 + $0x1c] sm:$0xf]
        %v888 = vld [vmem:[#allocation4 + $0x20] sm:$0xf]
        %v889 = vld [vmem:[#allocation4 + $0x24] sm:$0xf]
        %v890 = vld [vmem:[#allocation4 + $0x28] sm:$0xf]
        %v891 = vld [vmem:[#allocation4 + $0x2c] sm:$0xf]
        %v892 = vld [vmem:[#allocation4 + $0x30] sm:$0xf]
        %v893 = vld [vmem:[#allocation4 + $0x34] sm:$0xf]
        %v894 = vld [vmem:[#allocation4 + $0x38] sm:$0xf]
        %v895 = vld [vmem:[#allocation4 + $0x3c] sm:$0xf]
        %v896 = vld [vmem:[%s5] sm:$0x1]
        %v898 = vlaneseq
        %v899 = vshrl.u32 %v898, 7
        %v900 = vsub.s32 0, %v899
        %v901 = vrot.slane %v896, %v900
        %v919 = vunpack.c.l.b16 %v880
        %v920 = vunpack.c.l.b16 %v881
        %v921 = vunpack.c.l.b16 %v882
        %v922 = vunpack.c.l.b16 %v883
        %v923 = vunpack.c.l.b16 %v884
        %v924 = vunpack.c.l.b16 %v885
        %v925 = vunpack.c.l.b16 %v886
        %v926 = vunpack.c.l.b16 %v887
        %v927 = vunpack.c.l.b16 %v888
        %v928 = vunpack.c.l.b16 %v889
        %v929 = vunpack.c.l.b16 %v890
        %v930 = vunpack.c.l.b16 %v891
        %v931 = vunpack.c.l.b16 %v892
        %v932 = vunpack.c.l.b16 %v893
        %v933 = vunpack.c.l.b16 %v894
        %v934 = vunpack.c.l.b16 %v895
        %v935 = vpack.c.b16 %v920, %v919
        %v936 = vpack.c.b16 %v922, %v921
        %v937 = vpack.c.b16 %v924, %v923
        %v938 = vpack.c.b16 %v926, %v925
        %v939 = vpack.c.b16 %v928, %v927
        %v940 = vpack.c.b16 %v930, %v929
        %v941 = vpack.c.b16 %v932, %v931
        %v942 = vpack.c.b16 %v934, %v933
        %951 = vmatprep.subr.bf16.mxu0 0
        %952 = vmatpush1.bf16.msra.mxu0 %v935
        %953 = vmatprep.subr.bf16.mxu0 0
        %954 = vmatpush1.bf16.msra.mxu0 %v936
        %955 = vmatprep.subr.bf16.mxu0 0
        %956 = vmatpush1.bf16.msra.mxu0 %v937
        %957 = vmatprep.subr.bf16.mxu0 0
        %958 = vmatpush1.bf16.msra.mxu0 %v938
        %959 = vmatprep.subr.bf16.mxu0 0
        %960 = vmatpush1.bf16.msra.mxu0 %v939
        %961 = vmatprep.subr.bf16.mxu0 0
        %962 = vmatpush1.bf16.msra.mxu0 %v940
        %963 = vmatprep.subr.bf16.mxu0 0
        %964 = vmatpush1.bf16.msra.mxu0 %v941
        %965 = vmatprep.subr.bf16.mxu0 0
        %966 = vmatpush1.bf16.msra.mxu0 %v942
        %967 = vmatprep.subr.bf16.mxu0 0
        %968 = vmatpush1.bf16.msra.mxu0 0
        %969 = vmatprep.subr.bf16.mxu0 0
        %970 = vmatpush1.bf16.msra.mxu0 0
        %971 = vmatprep.subr.bf16.mxu0 0
        %972 = vmatpush1.bf16.msra.mxu0 0
        %973 = vmatprep.subr.bf16.mxu0 0
        %974 = vmatpush1.bf16.msra.mxu0 0
        %975 = vmatprep.subr.bf16.mxu0 0
        %976 = vmatpush1.bf16.msra.mxu0 0
        %977 = vmatprep.subr.bf16.mxu0 0
        %978 = vmatpush1.bf16.msra.mxu0 0
        %979 = vmatprep.subr.bf16.mxu0 0
        %980 = vmatpush1.bf16.msra.mxu0 0
        %981 = vmatprep.subr.bf16.mxu0 0
        %982 = vmatpush1.bf16.msra.mxu0 0
        %983 = vmatprep.mubr.bf16.mxu0 0
        %984 = vmatmul.mubr.bf16.gmra.mrb[0].mxu0 %v879
        %v985 = vpop.f32.mrb[0].mxu0
        %v986 = vadd.f32 %v901, %v985
        %v987 = vpop.f32.mrb[0].mxu0
        %v988 = vpop.f32.mrb[0].mxu0
        %v989 = vadd.f32 %v901, %v988
        %v990 = vpop.f32.mrb[0].mxu0
        %991 = vdwg.mxu0
        %v992 = vmax.f32 %v986, 0.0
        %v993 = vmax.f32 %v989, 0.0
        %v994 = vpack.c.bf16 %v993, %v992
        %v995 = vld [vmem:[%s6] sm:$0xff]
        %v996 = vld [vmem:[%s6 + $0x8] sm:$0xff]
        %v997 = vld [vmem:[%s6 + $0x10] sm:$0xff]
        %v998 = vld [vmem:[%s6 + $0x18] sm:$0xff]
        %v999 = vld [vmem:[%s6 + $0x20] sm:$0xff]
        %v1000 = vld [vmem:[%s6 + $0x28] sm:$0xff]
        %v1001 = vld [vmem:[%s6 + $0x30] sm:$0xff]
        %v1002 = vld [vmem:[%s6 + $0x38] sm:$0xff]
        %v1003 = vld [vmem:[%s6 + $0x40] sm:$0xff]
        %v1004 = vld [vmem:[%s6 + $0x48] sm:$0xff]
        %v1005 = vld [vmem:[%s6 + $0x50] sm:$0xff]
        %v1006 = vld [vmem:[%s6 + $0x58] sm:$0xff]
        %v1007 = vld [vmem:[%s6 + $0x60] sm:$0xff]
        %v1008 = vld [vmem:[%s6 + $0x68] sm:$0xff]
        %v1009 = vld [vmem:[%s6 + $0x70] sm:$0xff]
        %v1010 = vld [vmem:[%s6 + $0x78] sm:$0xff]
        %v1011 = vld [vmem:[%s7] sm:$0x3]
        %v1013 = vlaneseq
        %v1014 = vshrl.u32 %v1013, 7
        %v1015 = vsub.s32 0, %v1014
        %v1016 = vrot.slane %v1011, %v1015
        %v1017 = vlaneseq
        %v1018 = vshrl.u32 %v1017, 7
        %v1019 = vsub.s32 1, %v1018
        %v1020 = vrot.slane %v1011, %v1019
        %v1039 = vunpack.c.l.b16 %v995
        %v1040 = vunpack.c.h.b16 %v995
        %v1041 = vunpack.c.l.b16 %v996
        %v1042 = vunpack.c.h.b16 %v996
        %v1043 = vunpack.c.l.b16 %v997
        %v1044 = vunpack.c.h.b16 %v997
        %v1045 = vunpack.c.l.b16 %v998
        %v1046 = vunpack.c.h.b16 %v998
        %v1047 = vunpack.c.l.b16 %v999
        %v1048 = vunpack.c.h.b16 %v999
        %v1049 = vunpack.c.l.b16 %v1000
        %v1050 = vunpack.c.h.b16 %v1000
        %v1051 = vunpack.c.l.b16 %v1001
        %v1052 = vunpack.c.h.b16 %v1001
        %v1053 = vunpack.c.l.b16 %v1002
        %v1054 = vunpack.c.h.b16 %v1002
        %v1055 = vunpack.c.l.b16 %v1003
        %v1056 = vunpack.c.h.b16 %v1003
        %v1057 = vunpack.c.l.b16 %v1004
        %v1058 = vunpack.c.h.b16 %v1004
        %v1059 = vunpack.c.l.b16 %v1005
        %v1060 = vunpack.c.h.b16 %v1005
        %v1061 = vunpack.c.l.b16 %v1006
        %v1062 = vunpack.c.h.b16 %v1006
        %v1063 = vunpack.c.l.b16 %v1007
        %v1064 = vunpack.c.h.b16 %v1007
        %v1065 = vunpack.c.l.b16 %v1008
        %v1066 = vunpack.c.h.b16 %v1008
        %v1067 = vunpack.c.l.b16 %v1009
        %v1068 = vunpack.c.h.b16 %v1009
        %v1069 = vunpack.c.l.b16 %v1010
        %v1070 = vunpack.c.h.b16 %v1010
        %v1071 = vpack.c.b16 %v1041, %v1039
        %v1072 = vpack.c.b16 %v1042, %v1040
        %v1073 = vpack.c.b16 %v1045, %v1043
        %v1074 = vpack.c.b16 %v1046, %v1044
        %v1075 = vpack.c.b16 %v1049, %v1047
        %v1076 = vpack.c.b16 %v1050, %v1048
        %v1077 = vpack.c.b16 %v1053, %v1051
        %v1078 = vpack.c.b16 %v1054, %v1052
        %v1079 = vpack.c.b16 %v1057, %v1055
        %v1080 = vpack.c.b16 %v1058, %v1056
        %v1081 = vpack.c.b16 %v1061, %v1059
        %v1082 = vpack.c.b16 %v1062, %v1060
        %v1083 = vpack.c.b16 %v1065, %v1063
        %v1084 = vpack.c.b16 %v1066, %v1064
        %v1085 = vpack.c.b16 %v1069, %v1067
        %v1086 = vpack.c.b16 %v1070, %v1068
        %1103 = vmatprep.subr.bf16.mxu0 %v1072
        %1104 = vmatpush1.bf16.msra.mxu0 %v1071
        %1105 = vmatprep.subr.bf16.mxu0 %v1074
        %1106 = vmatpush1.bf16.msra.mxu0 %v1073
        %1107 = vmatprep.subr.bf16.mxu0 %v1076
        %1108 = vmatpush1.bf16.msra.mxu0 %v1075
        %1109 = vmatprep.subr.bf16.mxu0 %v1078
        %1110 = vmatpush1.bf16.msra.mxu0 %v1077
        %1111 = vmatprep.subr.bf16.mxu0 %v1080
        %1112 = vmatpush1.bf16.msra.mxu0 %v1079
        %1113 = vmatprep.subr.bf16.mxu0 %v1082
        %1114 = vmatpush1.bf16.msra.mxu0 %v1081
        %1115 = vmatprep.subr.bf16.mxu0 %v1084
        %1116 = vmatpush1.bf16.msra.mxu0 %v1083
        %1117 = vmatprep.subr.bf16.mxu0 %v1086
        %1118 = vmatpush1.bf16.msra.mxu0 %v1085
        %1119 = vmatprep.subr.bf16.mxu0 0
        %1120 = vmatpush1.bf16.msra.mxu0 0
        %1121 = vmatprep.subr.bf16.mxu0 0
        %1122 = vmatpush1.bf16.msra.mxu0 0
        %1123 = vmatprep.subr.bf16.mxu0 0
        %1124 = vmatpush1.bf16.msra.mxu0 0
        %1125 = vmatprep.subr.bf16.mxu0 0
        %1126 = vmatpush1.bf16.msra.mxu0 0
        %1127 = vmatprep.subr.bf16.mxu0 0
        %1128 = vmatpush1.bf16.msra.mxu0 0
        %1129 = vmatprep.subr.bf16.mxu0 0
        %1130 = vmatpush1.bf16.msra.mxu0 0
        %1131 = vmatprep.subr.bf16.mxu0 0
        %1132 = vmatpush1.bf16.msra.mxu0 0
        %1133 = vmatprep.subr.bf16.mxu0 0
        %1134 = vmatpush1.bf16.msra.mxu0 0
        %1135 = vmatprep.mubr.bf16.mxu0 0
        %1136 = vmatmul.mubr.bf16.gmra.mrb[0].mxu0 %v994
        %v1137 = vpop.f32.mrb[0].mxu0
        %v1138 = vadd.f32 %v1016, %v1137
        %v1139 = vpop.f32.mrb[0].mxu0
        %v1140 = vadd.f32 %v1020, %v1139
        %v1141 = vpop.f32.mrb[0].mxu0
        %v1142 = vadd.f32 %v1016, %v1141
        %v1143 = vpop.f32.mrb[0].mxu0
        %v1144 = vadd.f32 %v1020, %v1143
        %1145 = vdwg.mxu0
        %v1146 = vld [vmem:[%s730] sm:$0xff]
        %v1147 = vld [vmem:[%s730 + $0x8] sm:$0xff]
        %v1148 = vmul.f32 %v1140, %v1146
        %v1149 = vmul.f32 %v1144, %v1147
        %v1150 = vadd.f32 %v1138, %v1148
        %v1151 = vadd.f32 %v1142, %v1149
        %v1152 = vpack.c.bf16 %v1151, %v1150
        %v1153 = vld [vmem:[#allocation6] sm:$0xff]
        %v1154 = vld [vmem:[#allocation6 + $0x8] sm:$0xff]
        %v1155 = vld [vmem:[#allocation6 + $0x10] sm:$0xff]
        %v1156 = vld [vmem:[#allocation6 + $0x18] sm:$0xff]
        %v1157 = vld [vmem:[#allocation6 + $0x20] sm:$0xff]
        %v1158 = vld [vmem:[#allocation6 + $0x28] sm:$0xff]
        %v1159 = vld [vmem:[#allocation6 + $0x30] sm:$0xff]
        %v1160 = vld [vmem:[#allocation6 + $0x38] sm:$0xff]
        %v1161 = vld [vmem:[#allocation6 + $0x40] sm:$0xff]
        %v1162 = vld [vmem:[#allocation6 + $0x48] sm:$0xff]
        %v1163 = vld [vmem:[#allocation6 + $0x50] sm:$0xff]
        %v1164 = vld [vmem:[#allocation6 + $0x58] sm:$0xff]
        %v1165 = vld [vmem:[#allocation6 + $0x60] sm:$0xff]
        %v1166 = vld [vmem:[#allocation6 + $0x68] sm:$0xff]
        %v1167 = vld [vmem:[#allocation6 + $0x70] sm:$0xff]
        %v1168 = vld [vmem:[#allocation6 + $0x78] sm:$0xff]
        %v1169 = vld [vmem:[%s9] sm:$0x3]
        %v1171 = vlaneseq
        %v1172 = vshrl.u32 %v1171, 7
        %v1173 = vsub.s32 0, %v1172
        %v1174 = vrot.slane %v1169, %v1173
        %v1175 = vlaneseq
        %v1176 = vshrl.u32 %v1175, 7
        %v1177 = vsub.s32 1, %v1176
        %v1178 = vrot.slane %v1169, %v1177
        %v1197 = vunpack.c.l.b16 %v1153
        %v1198 = vunpack.c.h.b16 %v1153
        %v1199 = vunpack.c.l.b16 %v1154
        %v1200 = vunpack.c.h.b16 %v1154
        %v1201 = vunpack.c.l.b16 %v1155
        %v1202 = vunpack.c.h.b16 %v1155
        %v1203 = vunpack.c.l.b16 %v1156
        %v1204 = vunpack.c.h.b16 %v1156
        %v1205 = vunpack.c.l.b16 %v1157
        %v1206 = vunpack.c.h.b16 %v1157
        %v1207 = vunpack.c.l.b16 %v1158
        %v1208 = vunpack.c.h.b16 %v1158
        %v1209 = vunpack.c.l.b16 %v1159
        %v1210 = vunpack.c.h.b16 %v1159
        %v1211 = vunpack.c.l.b16 %v1160
        %v1212 = vunpack.c.h.b16 %v1160
        %v1213 = vunpack.c.l.b16 %v1161
        %v1214 = vunpack.c.h.b16 %v1161
        %v1215 = vunpack.c.l.b16 %v1162
        %v1216 = vunpack.c.h.b16 %v1162
        %v1217 = vunpack.c.l.b16 %v1163
        %v1218 = vunpack.c.h.b16 %v1163
        %v1219 = vunpack.c.l.b16 %v1164
        %v1220 = vunpack.c.h.b16 %v1164
        %v1221 = vunpack.c.l.b16 %v1165
        %v1222 = vunpack.c.h.b16 %v1165
        %v1223 = vunpack.c.l.b16 %v1166
        %v1224 = vunpack.c.h.b16 %v1166
        %v1225 = vunpack.c.l.b16 %v1167
        %v1226 = vunpack.c.h.b16 %v1167
        %v1227 = vunpack.c.l.b16 %v1168
        %v1228 = vunpack.c.h.b16 %v1168
        %v1229 = vpack.c.b16 %v1199, %v1197
        %v1230 = vpack.c.b16 %v1200, %v1198
        %v1231 = vpack.c.b16 %v1203, %v1201
        %v1232 = vpack.c.b16 %v1204, %v1202
        %v1233 = vpack.c.b16 %v1207, %v1205
        %v1234 = vpack.c.b16 %v1208, %v1206
        %v1235 = vpack.c.b16 %v1211, %v1209
        %v1236 = vpack.c.b16 %v1212, %v1210
        %v1237 = vpack.c.b16 %v1215, %v1213
        %v1238 = vpack.c.b16 %v1216, %v1214
        %v1239 = vpack.c.b16 %v1219, %v1217
        %v1240 = vpack.c.b16 %v1220, %v1218
        %v1241 = vpack.c.b16 %v1223, %v1221
        %v1242 = vpack.c.b16 %v1224, %v1222
        %v1243 = vpack.c.b16 %v1227, %v1225
        %v1244 = vpack.c.b16 %v1228, %v1226
        %1261 = vmatprep.subr.bf16.mxu0 %v1230
        %1262 = vmatpush1.bf16.msra.mxu0 %v1229
        %1263 = vmatprep.subr.bf16.mxu0 %v1232
        %1264 = vmatpush1.bf16.msra.mxu0 %v1231
        %1265 = vmatprep.subr.bf16.mxu0 %v1234
        %1266 = vmatpush1.bf16.msra.mxu0 %v1233
        %1267 = vmatprep.subr.bf16.mxu0 %v1236
        %1268 = vmatpush1.bf16.msra.mxu0 %v1235
        %1269 = vmatprep.subr.bf16.mxu0 %v1238
        %1270 = vmatpush1.bf16.msra.mxu0 %v1237
        %1271 = vmatprep.subr.bf16.mxu0 %v1240
        %1272 = vmatpush1.bf16.msra.mxu0 %v1239
        %1273 = vmatprep.subr.bf16.mxu0 %v1242
        %1274 = vmatpush1.bf16.msra.mxu0 %v1241
        %1275 = vmatprep.subr.bf16.mxu0 %v1244
        %1276 = vmatpush1.bf16.msra.mxu0 %v1243
        %1277 = vmatprep.subr.bf16.mxu0 0
        %1278 = vmatpush1.bf16.msra.mxu0 0
        %1279 = vmatprep.subr.bf16.mxu0 0
        %1280 = vmatpush1.bf16.msra.mxu0 0
        %1281 = vmatprep.subr.bf16.mxu0 0
        %1282 = vmatpush1.bf16.msra.mxu0 0
        %1283 = vmatprep.subr.bf16.mxu0 0
        %1284 = vmatpush1.bf16.msra.mxu0 0
        %1285 = vmatprep.subr.bf16.mxu0 0
        %1286 = vmatpush1.bf16.msra.mxu0 0
        %1287 = vmatprep.subr.bf16.mxu0 0
        %1288 = vmatpush1.bf16.msra.mxu0 0
        %1289 = vmatprep.subr.bf16.mxu0 0
        %1290 = vmatpush1.bf16.msra.mxu0 0
        %1291 = vmatprep.subr.bf16.mxu0 0
        %1292 = vmatpush1.bf16.msra.mxu0 0
        %1293 = vmatprep.mubr.bf16.mxu0 0
        %1294 = vmatmul.mubr.bf16.gmra.mrb[0].mxu0 %v1152
        %v1295 = vpop.f32.mrb[0].mxu0
        %v1296 = vadd.f32 %v1174, %v1295
        %v1297 = vpop.f32.mrb[0].mxu0
        %v1298 = vadd.f32 %v1178, %v1297
        %v1299 = vpop.f32.mrb[0].mxu0
        %v1300 = vadd.f32 %v1174, %v1299
        %v1301 = vpop.f32.mrb[0].mxu0
        %v1302 = vadd.f32 %v1178, %v1301
        %1303 = vdwg.mxu0
        %v1304 = vmax.f32 %v1296, 0.0
        %v1305 = vmax.f32 %v1298, 0.0
        %v1306 = vmax.f32 %v1300, 0.0
        %v1307 = vmax.f32 %v1302, 0.0
        %v1308 = vpack.c.bf16 %v1306, %v1304
        %v1309 = vpack.c.bf16 %v1307, %v1305
        %v1310 = vld [vmem:[#allocation7] sm:$0xf]
        %v1311 = vld [vmem:[#allocation7 + $0x4] sm:$0xf]
        %v1312 = vld [vmem:[#allocation7 + $0x8] sm:$0xf]
        %v1313 = vld [vmem:[#allocation7 + $0xc] sm:$0xf]
        %v1314 = vld [vmem:[#allocation7 + $0x10] sm:$0xf]
        %v1315 = vld [vmem:[#allocation7 + $0x14] sm:$0xf]
        %v1316 = vld [vmem:[#allocation7 + $0x18] sm:$0xf]
        %v1317 = vld [vmem:[#allocation7 + $0x1c] sm:$0xf]
        %v1318 = vld [vmem:[#allocation7 + $0x20] sm:$0xf]
        %v1319 = vld [vmem:[#allocation7 + $0x24] sm:$0xf]
        %v1320 = vld [vmem:[#allocation7 + $0x28] sm:$0xf]
        %v1321 = vld [vmem:[#allocation7 + $0x2c] sm:$0xf]
        %v1322 = vld [vmem:[#allocation7 + $0x30] sm:$0xf]
        %v1323 = vld [vmem:[#allocation7 + $0x34] sm:$0xf]
        %v1324 = vld [vmem:[#allocation7 + $0x38] sm:$0xf]
        %v1325 = vld [vmem:[#allocation7 + $0x3c] sm:$0xf]
        %v1326 = vld [vmem:[%s11] sm:$0x1]
        %v1328 = vlaneseq
        %v1329 = vshrl.u32 %v1328, 7
        %v1330 = vsub.s32 0, %v1329
        %v1331 = vrot.slane %v1326, %v1330
        %v1349 = vunpack.c.l.b16 %v1310
        %v1350 = vunpack.c.l.b16 %v1311
        %v1351 = vunpack.c.l.b16 %v1312
        %v1352 = vunpack.c.l.b16 %v1313
        %v1353 = vunpack.c.l.b16 %v1314
        %v1354 = vunpack.c.l.b16 %v1315
        %v1355 = vunpack.c.l.b16 %v1316
        %v1356 = vunpack.c.l.b16 %v1317
        %v1357 = vunpack.c.l.b16 %v1318
        %v1358 = vunpack.c.l.b16 %v1319
        %v1359 = vunpack.c.l.b16 %v1320
        %v1360 = vunpack.c.l.b16 %v1321
        %v1361 = vunpack.c.l.b16 %v1322
        %v1362 = vunpack.c.l.b16 %v1323
        %v1363 = vunpack.c.l.b16 %v1324
        %v1364 = vunpack.c.l.b16 %v1325
        %v1365 = vpack.c.b16 %v1350, %v1349
        %v1366 = vpack.c.b16 %v1352, %v1351
        %v1367 = vpack.c.b16 %v1354, %v1353
        %v1368 = vpack.c.b16 %v1356, %v1355
        %v1369 = vpack.c.b16 %v1358, %v1357
        %v1370 = vpack.c.b16 %v1360, %v1359
        %v1371 = vpack.c.b16 %v1362, %v1361
        %v1372 = vpack.c.b16 %v1364, %v1363
        %1381 = vmatprep.subr.bf16.mxu0 0
        %1382 = vmatpush1.bf16.msra.mxu0 %v1365
        %1383 = vmatprep.subr.bf16.mxu0 0
        %1384 = vmatpush1.bf16.msra.mxu0 %v1366
        %1385 = vmatprep.subr.bf16.mxu0 0
        %1386 = vmatpush1.bf16.msra.mxu0 %v1367
        %1387 = vmatprep.subr.bf16.mxu0 0
        %1388 = vmatpush1.bf16.msra.mxu0 %v1368
        %1389 = vmatprep.subr.bf16.mxu0 0
        %1390 = vmatpush1.bf16.msra.mxu0 %v1369
        %1391 = vmatprep.subr.bf16.mxu0 0
        %1392 = vmatpush1.bf16.msra.mxu0 %v1370
        %1393 = vmatprep.subr.bf16.mxu0 0
        %1394 = vmatpush1.bf16.msra.mxu0 %v1371
        %1395 = vmatprep.subr.bf16.mxu0 0
        %1396 = vmatpush1.bf16.msra.mxu0 %v1372
        %1397 = vmatprep.subr.bf16.mxu0 0
        %1398 = vmatpush1.bf16.msra.mxu0 0
        %1399 = vmatprep.subr.bf16.mxu0 0
        %1400 = vmatpush1.bf16.msra.mxu0 0
        %1401 = vmatprep.subr.bf16.mxu0 0
        %1402 = vmatpush1.bf16.msra.mxu0 0
        %1403 = vmatprep.subr.bf16.mxu0 0
        %1404 = vmatpush1.bf16.msra.mxu0 0
        %1405 = vmatprep.subr.bf16.mxu0 0
        %1406 = vmatpush1.bf16.msra.mxu0 0
        %1407 = vmatprep.subr.bf16.mxu0 0
        %1408 = vmatpush1.bf16.msra.mxu0 0
        %1409 = vmatprep.subr.bf16.mxu0 0
        %1410 = vmatpush1.bf16.msra.mxu0 0
        %1411 = vmatprep.subr.bf16.mxu0 0
        %1412 = vmatpush1.bf16.msra.mxu0 0
        %1413 = vmatprep.mubr.bf16.mxu0 0
        %1414 = vmatmul.mubr.bf16.gmra.mrb[0].mxu0 %v1308
        %v1415 = vpop.f32.mrb[0].mxu0
        %v1416 = vadd.f32 %v1331, %v1415
        %v1417 = vpop.f32.mrb[0].mxu0
        %v1418 = vpop.f32.mrb[0].mxu0
        %v1419 = vadd.f32 %v1331, %v1418
        %v1420 = vpop.f32.mrb[0].mxu0
        %1421 = vdwg.mxu0
        %v1422 = vtanh.pop %v1416
        %v1423 = vtanh.pop %v1419
        %v1424 = vld [vmem:[#allocation9] sm:$0xf]
        %v1425 = vld [vmem:[#allocation9 + $0x4] sm:$0xf]
        %v1426 = vld [vmem:[#allocation9 + $0x8] sm:$0xf]
        %v1427 = vld [vmem:[#allocation9 + $0xc] sm:$0xf]
        %v1428 = vld [vmem:[#allocation9 + $0x10] sm:$0xf]
        %v1429 = vld [vmem:[#allocation9 + $0x14] sm:$0xf]
        %v1430 = vld [vmem:[#allocation9 + $0x18] sm:$0xf]
        %v1431 = vld [vmem:[#allocation9 + $0x1c] sm:$0xf]
        %v1432 = vld [vmem:[#allocation9 + $0x20] sm:$0xf]
        %v1433 = vld [vmem:[#allocation9 + $0x24] sm:$0xf]
        %v1434 = vld [vmem:[#allocation9 + $0x28] sm:$0xf]
        %v1435 = vld [vmem:[#allocation9 + $0x2c] sm:$0xf]
        %v1436 = vld [vmem:[#allocation9 + $0x30] sm:$0xf]
        %v1437 = vld [vmem:[#allocation9 + $0x34] sm:$0xf]
        %v1438 = vld [vmem:[#allocation9 + $0x38] sm:$0xf]
        %v1439 = vld [vmem:[#allocation9 + $0x3c] sm:$0xf]
        %v1440 = vld [vmem:[%s13] sm:$0x1]
        %v1442 = vlaneseq
        %v1443 = vshrl.u32 %v1442, 7
        %v1444 = vsub.s32 0, %v1443
        %v1445 = vrot.slane %v1440, %v1444
        %v1463 = vunpack.c.l.b16 %v1424
        %v1464 = vunpack.c.l.b16 %v1425
        %v1465 = vunpack.c.l.b16 %v1426
        %v1466 = vunpack.c.l.b16 %v1427
        %v1467 = vunpack.c.l.b16 %v1428
        %v1468 = vunpack.c.l.b16 %v1429
        %v1469 = vunpack.c.l.b16 %v1430
        %v1470 = vunpack.c.l.b16 %v1431
        %v1471 = vunpack.c.l.b16 %v1432
        %v1472 = vunpack.c.l.b16 %v1433
        %v1473 = vunpack.c.l.b16 %v1434
        %v1474 = vunpack.c.l.b16 %v1435
        %v1475 = vunpack.c.l.b16 %v1436
        %v1476 = vunpack.c.l.b16 %v1437
        %v1477 = vunpack.c.l.b16 %v1438
        %v1478 = vunpack.c.l.b16 %v1439
        %v1479 = vpack.c.b16 %v1464, %v1463
        %v1480 = vpack.c.b16 %v1466, %v1465
        %v1481 = vpack.c.b16 %v1468, %v1467
        %v1482 = vpack.c.b16 %v1470, %v1469
        %v1483 = vpack.c.b16 %v1472, %v1471
        %v1484 = vpack.c.b16 %v1474, %v1473
        %v1485 = vpack.c.b16 %v1476, %v1475
        %v1486 = vpack.c.b16 %v1478, %v1477
        %1495 = vmatprep.subr.bf16.mxu0 0
        %1496 = vmatpush1.bf16.msra.mxu0 %v1479
        %1497 = vmatprep.subr.bf16.mxu0 0
        %1498 = vmatpush1.bf16.msra.mxu0 %v1480
        %1499 = vmatprep.subr.bf16.mxu0 0
        %1500 = vmatpush1.bf16.msra.mxu0 %v1481
        %1501 = vmatprep.subr.bf16.mxu0 0
        %1502 = vmatpush1.bf16.msra.mxu0 %v1482
        %1503 = vmatprep.subr.bf16.mxu0 0
        %1504 = vmatpush1.bf16.msra.mxu0 %v1483
        %1505 = vmatprep.subr.bf16.mxu0 0
        %1506 = vmatpush1.bf16.msra.mxu0 %v1484
        %1507 = vmatprep.subr.bf16.mxu0 0
        %1508 = vmatpush1.bf16.msra.mxu0 %v1485
        %1509 = vmatprep.subr.bf16.mxu0 0
        %1510 = vmatpush1.bf16.msra.mxu0 %v1486
        %1511 = vmatprep.subr.bf16.mxu0 0
        %1512 = vmatpush1.bf16.msra.mxu0 0
        %1513 = vmatprep.subr.bf16.mxu0 0
        %1514 = vmatpush1.bf16.msra.mxu0 0
        %1515 = vmatprep.subr.bf16.mxu0 0
        %1516 = vmatpush1.bf16.msra.mxu0 0
        %1517 = vmatprep.subr.bf16.mxu0 0
        %1518 = vmatpush1.bf16.msra.mxu0 0
        %1519 = vmatprep.subr.bf16.mxu0 0
        %1520 = vmatpush1.bf16.msra.mxu0 0
        %1521 = vmatprep.subr.bf16.mxu0 0
        %1522 = vmatpush1.bf16.msra.mxu0 0
        %1523 = vmatprep.subr.bf16.mxu0 0
        %1524 = vmatpush1.bf16.msra.mxu0 0
        %1525 = vmatprep.subr.bf16.mxu0 0
        %1526 = vmatpush1.bf16.msra.mxu0 0
        %1527 = vmatprep.mubr.bf16.mxu0 0
        %1528 = vmatmul.mubr.bf16.gmra.mrb[0].mxu0 %v1309
        %v1529 = vpop.f32.mrb[0].mxu0
        %v1530 = vadd.f32 %v1445, %v1529
        %v1531 = vpop.f32.mrb[0].mxu0
        %v1532 = vpop.f32.mrb[0].mxu0
        %v1533 = vadd.f32 %v1445, %v1532
        %v1534 = vpop.f32.mrb[0].mxu0
        %1535 = vdwg.mxu0
        %v1536 = vmax.f32 %v1530, 0.0
        %v1537 = vmax.f32 %v1533, 0.0
        %v1538 = vpack.c.bf16 %v1537, %v1536
        %v1539 = vld [vmem:[#allocation10] sm:$0xf]
        %v1540 = vld [vmem:[#allocation10 + $0x4] sm:$0xf]
        %v1541 = vld [vmem:[#allocation10 + $0x8] sm:$0xf]
        %v1542 = vld [vmem:[#allocation10 + $0xc] sm:$0xf]
        %v1543 = vld [vmem:[#allocation10 + $0x10] sm:$0xf]
        %v1544 = vld [vmem:[#allocation10 + $0x14] sm:$0xf]
        %v1545 = vld [vmem:[#allocation10 + $0x18] sm:$0xf]
        %v1546 = vld [vmem:[#allocation10 + $0x1c] sm:$0xf]
        %v1547 = vld [vmem:[#allocation10 + $0x20] sm:$0xf]
        %v1548 = vld [vmem:[#allocation10 + $0x24] sm:$0xf]
        %v1549 = vld [vmem:[#allocation10 + $0x28] sm:$0xf]
        %v1550 = vld [vmem:[#allocation10 + $0x2c] sm:$0xf]
        %v1551 = vld [vmem:[#allocation10 + $0x30] sm:$0xf]
        %v1552 = vld [vmem:[#allocation10 + $0x34] sm:$0xf]
        %v1553 = vld [vmem:[#allocation10 + $0x38] sm:$0xf]
        %v1554 = vld [vmem:[#allocation10 + $0x3c] sm:$0xf]
        %v1555 = vld [vmem:[%s15] sm:$0x1]
        %v1557 = vlaneseq
        %v1558 = vshrl.u32 %v1557, 7
        %v1559 = vsub.s32 0, %v1558
        %v1560 = vrot.slane %v1555, %v1559
        %v1578 = vunpack.c.l.b16 %v1539
        %v1579 = vunpack.c.l.b16 %v1540
        %v1580 = vunpack.c.l.b16 %v1541
        %v1581 = vunpack.c.l.b16 %v1542
        %v1582 = vunpack.c.l.b16 %v1543
        %v1583 = vunpack.c.l.b16 %v1544
        %v1584 = vunpack.c.l.b16 %v1545
        %v1585 = vunpack.c.l.b16 %v1546
        %v1586 = vunpack.c.l.b16 %v1547
        %v1587 = vunpack.c.l.b16 %v1548
        %v1588 = vunpack.c.l.b16 %v1549
        %v1589 = vunpack.c.l.b16 %v1550
        %v1590 = vunpack.c.l.b16 %v1551
        %v1591 = vunpack.c.l.b16 %v1552
        %v1592 = vunpack.c.l.b16 %v1553
        %v1593 = vunpack.c.l.b16 %v1554
        %v1594 = vpack.c.b16 %v1579, %v1578
        %v1595 = vpack.c.b16 %v1581, %v1580
        %v1596 = vpack.c.b16 %v1583, %v1582
        %v1597 = vpack.c.b16 %v1585, %v1584
        %v1598 = vpack.c.b16 %v1587, %v1586
        %v1599 = vpack.c.b16 %v1589, %v1588
        %v1600 = vpack.c.b16 %v1591, %v1590
        %v1601 = vpack.c.b16 %v1593, %v1592
        %1610 = vmatprep.subr.bf16.mxu0 0
        %1611 = vmatpush1.bf16.msra.mxu0 %v1594
        %1612 = vmatprep.subr.bf16.mxu0 0
        %1613 = vmatpush1.bf16.msra.mxu0 %v1595
        %1614 = vmatprep.subr.bf16.mxu0 0
        %1615 = vmatpush1.bf16.msra.mxu0 %v1596
        %1616 = vmatprep.subr.bf16.mxu0 0
        %1617 = vmatpush1.bf16.msra.mxu0 %v1597
        %1618 = vmatprep.subr.bf16.mxu0 0
        %1619 = vmatpush1.bf16.msra.mxu0 %v1598
        %1620 = vmatprep.subr.bf16.mxu0 0
        %1621 = vmatpush1.bf16.msra.mxu0 %v1599
        %1622 = vmatprep.subr.bf16.mxu0 0
        %1623 = vmatpush1.bf16.msra.mxu0 %v1600
        %1624 = vmatprep.subr.bf16.mxu0 0
        %1625 = vmatpush1.bf16.msra.mxu0 %v1601
        %1626 = vmatprep.subr.bf16.mxu0 0
        %1627 = vmatpush1.bf16.msra.mxu0 0
        %1628 = vmatprep.subr.bf16.mxu0 0
        %1629 = vmatpush1.bf16.msra.mxu0 0
        %1630 = vmatprep.subr.bf16.mxu0 0
        %1631 = vmatpush1.bf16.msra.mxu0 0
        %1632 = vmatprep.subr.bf16.mxu0 0
        %1633 = vmatpush1.bf16.msra.mxu0 0
        %1634 = vmatprep.subr.bf16.mxu0 0
        %1635 = vmatpush1.bf16.msra.mxu0 0
        %1636 = vmatprep.subr.bf16.mxu0 0
        %1637 = vmatpush1.bf16.msra.mxu0 0
        %1638 = vmatprep.subr.bf16.mxu0 0
        %1639 = vmatpush1.bf16.msra.mxu0 0
        %1640 = vmatprep.subr.bf16.mxu0 0
        %1641 = vmatpush1.bf16.msra.mxu0 0
        %1642 = vmatprep.mubr.bf16.mxu0 0
        %1643 = vmatmul.mubr.bf16.gmra.mrb[0].mxu0 %v1538
        %v1644 = vpop.f32.mrb[0].mxu0
        %v1645 = vadd.f32 %v1560, %v1644
        %v1646 = vpop.f32.mrb[0].mxu0
        %v1647 = vpop.f32.mrb[0].mxu0
        %v1648 = vadd.f32 %v1560, %v1647
        %v1649 = vpop.f32.mrb[0].mxu0
        %1650 = vdwg.mxu0
        %1651 = vst [vmem:[%s736] sm:$0xff] %v1422
        %1652 = vst [vmem:[%s736 + $0x8] sm:$0xff] %v1423
        %1653 = vst [vmem:[%s742] sm:$0xff] %v1138
        %1654 = vst [vmem:[%s742 + $0x8] sm:$0xff] %v1142
        %1655 = vst [vmem:[%s748] sm:$0xff] %v1140
        %1656 = vst [vmem:[%s748 + $0x8] sm:$0xff] %v1144
        %1657 = vst [vmem:[%s754] sm:$0xff] %v1645
        %1658 = vst [vmem:[%s754 + $0x8] sm:$0xff] %v1648
        %s1659 = smul.u32 2, %s35
        %p1660 = scmp.lt.s32.totalorder %s1659, 3
        %s1661 = scalar_select %p1660, %s1659, 3
        %s1662 = smul.addr %s1661, 8
        %s1663 = scalar_lea.vmem %s16, %s1662
        %s1664 = smul.u32 2, %s35
        %p1665 = scmp.lt.s32.totalorder %s1664, 3
        %s1666 = scalar_select %p1665, %s1664, 3
        %s1667 = smul.addr %s1666, 8
        %s1668 = scalar_lea.vmem %s17, %s1667
        %s1669 = smul.u32 2, %s35
        %p1670 = scmp.lt.s32.totalorder %s1669, 3
        %s1671 = scalar_select %p1670, %s1669, 3
        %s1672 = smul.addr %s1671, 8
        %s1673 = scalar_lea.vmem %s18, %s1672
        %s1674 = smul.u32 2, %s35
        %p1675 = scmp.lt.s32.totalorder %s1674, 3
        %s1676 = scalar_select %p1675, %s1674, 3
        %s1677 = smul.addr %s1676, 8
        %s1678 = scalar_lea.vmem %s19, %s1677
        // Predicated region
        $region109: #{vae_forward.1} parent=83 // pred_check
          %p1679 = pneg %p399
        $region110: #{vae_forward.1} parent=83 // pred_check_branch
          %1681 = sbr.rel (%p1679) target = $region112
        $region111: #{vae_forward.1} parent=83 // pred_region
          %s1682 = smul.u32 2, %s35
        $region112: #{vae_forward.1} parent=83 // pred_fallthru
          _
        // Predicated region
        $region113: #{vae_forward.1} parent=83 // pred_check
          %p1683 = pneg %p425
        $region114: #{vae_forward.1} parent=83 // pred_check_branch
          %1685 = sbr.rel (%p1683) target = $region116
        $region115: #{vae_forward.1} parent=83 // pred_region
          %s1686 = smul.u32 2, %s35
        $region116: #{vae_forward.1} parent=83 // pred_fallthru
          _
        // Predicated region
        $region117: #{vae_forward.1} parent=83 // pred_check
          %p1687 = pneg %p451
        $region118: #{vae_forward.1} parent=83 // pred_check_branch
          %1689 = sbr.rel (%p1687) target = $region120
        $region119: #{vae_forward.1} parent=83 // pred_region
          %s1690 = smul.u32 2, %s35
        $region120: #{vae_forward.1} parent=83 // pred_fallthru
          _
        // Predicated region
        $region121: #{vae_forward.1} parent=83 // pred_check
          %p1691 = pneg %p477
        $region122: #{vae_forward.1} parent=83 // pred_check_branch
          %1693 = sbr.rel (%p1691) target = $region124
        $region123: #{vae_forward.1} parent=83 // pred_region
          %s1694 = smul.u32 2, %s35
        $region124: #{vae_forward.1} parent=83 // pred_fallthru
          _
      $region84: #{vae_forward.1} parent=5 // pred_fallthru
        _
      %p1695 = scmp.le.s32.totalorder 2, %s30
      // Predicated region
      $region125: #{vae_forward.1} parent=5 // pred_check
        %p1696 = pneg %p1695
      $region126: #{vae_forward.1} parent=5 // pred_check_branch
        %1698 = sbr.rel (%p1696) target = $region128
      $region127: #{vae_forward.1} parent=5 // pred_region
        %s1699 = ssub.s32 %s30, 2
        // Predicated region
        $region129: #{vae_forward.1} parent=127 // pred_check
          %p1700 = pneg %p405
        $region130: #{vae_forward.1} parent=127 // pred_check_branch
          %1702 = sbr.rel (%p1700) target = $region132
        $region131: #{vae_forward.1} parent=127 // pred_region
          %s1703 = smul.u32 2, %s36
          %p1704 = scmp.lt.s32.totalorder %s1703, 3
          %s1705 = scalar_select %p1704, %s1703, 3
          %s1706 = smul.addr %s1705, 8
          %s1707 = scalar_lea.vmem %s16, %s1706
        $region132: #{vae_forward.1} parent=127 // pred_fallthru
          _
        // Predicated region
        $region133: #{vae_forward.1} parent=127 // pred_check
          %p1708 = pneg %p431
        $region134: #{vae_forward.1} parent=127 // pred_check_branch
          %1710 = sbr.rel (%p1708) target = $region136
        $region135: #{vae_forward.1} parent=127 // pred_region
          %s1711 = smul.u32 2, %s36
          %p1712 = scmp.lt.s32.totalorder %s1711, 3
          %s1713 = scalar_select %p1712, %s1711, 3
          %s1714 = smul.addr %s1713, 8
          %s1715 = scalar_lea.vmem %s17, %s1714
        $region136: #{vae_forward.1} parent=127 // pred_fallthru
          _
        // Predicated region
        $region137: #{vae_forward.1} parent=127 // pred_check
          %p1716 = pneg %p457
        $region138: #{vae_forward.1} parent=127 // pred_check_branch
          %1718 = sbr.rel (%p1716) target = $region140
        $region139: #{vae_forward.1} parent=127 // pred_region
          %s1719 = smul.u32 2, %s36
          %p1720 = scmp.lt.s32.totalorder %s1719, 3
          %s1721 = scalar_select %p1720, %s1719, 3
          %s1722 = smul.addr %s1721, 8
          %s1723 = scalar_lea.vmem %s18, %s1722
        $region140: #{vae_forward.1} parent=127 // pred_fallthru
          _
        // Predicated region
        $region141: #{vae_forward.1} parent=127 // pred_check
          %p1724 = pneg %p483
        $region142: #{vae_forward.1} parent=127 // pred_check_branch
          %1726 = sbr.rel (%p1724) target = $region144
        $region143: #{vae_forward.1} parent=127 // pred_region
          %s1727 = smul.u32 2, %s36
          %p1728 = scmp.lt.s32.totalorder %s1727, 3
          %s1729 = scalar_select %p1728, %s1727, 3
          %s1730 = smul.addr %s1729, 8
          %s1731 = scalar_lea.vmem %s19, %s1730
        $region144: #{vae_forward.1} parent=127 // pred_fallthru
          _
      $region128: #{vae_forward.1} parent=5 // pred_fallthru
        _
    $region6: #{vae_forward.1} parent=1 // loop_footer
      %s34 = sadd.s32 1, %s30
    $region7: #{vae_forward.1} parent=1 // loop_footer_branch
      %29 = sbr.rel target = $region3
    $region8: #{vae_forward.1} parent=1 // loop_exit
      _
    %1732 = vsyncpa [#allocation3], 1
    %s1733 = scalar_lea.sflag [#allocation3], 1
    %1734 = vsyncpa %s1733, 1
    %1735 = vsyncpa [#allocation5], 1
    %1736 = vsyncpa [#allocation8], 1
    %1737 = vsyncpa [#allocation11], 1

</llo_original>
